<compile_context>
chip_gen: v7x
topology: tpu7x:2x2x1
jax: 0.10.0
libtpu: 0.0.40
codegen_flags: <defaults>
</compile_context>

<pallas_src>
import functools
from typing import NamedTuple

import jax
import jax.numpy as jnp
from jax import lax
from jax.experimental import pallas as pl
from jax.experimental.pallas import tpu as pltpu


def _round_up(x, m):
    return (x + m - 1) // m * m


# ----------------------------------------------------------------------------
# Static per-layer configuration.
# ----------------------------------------------------------------------------
class LayerCfg(NamedTuple):
    cin: int
    cout: int
    k: int
    stride: int
    pad: int


def make_cfgs(channels, kernel_sizes, strides, paddings):
    return tuple(
        LayerCfg(channels[i], channels[i + 1], kernel_sizes[i],
                 strides[i], paddings[i])
        for i in range(len(channels) - 1))


def make_params(cfgs, key):
    """Synthetic deterministic parameters; kernel-ready weight layout hoisted here."""
    params = []
    for cfg in cfgs:
        key, kw_, kb_ = jax.random.split(key, 3)
        fan_in = cfg.cin * cfg.k * cfg.k
        w = jax.random.normal(kw_, (cfg.cout, cfg.cin, cfg.k, cfg.k),
                              jnp.float32) / jnp.sqrt(fan_in)
        b = 0.1 * jax.random.normal(kb_, (cfg.cout,), jnp.float32)
        # im2col K ordering is (kh*k + kw)*Cin + c -> OIHW -> (KH, KW, I, O) -> 2D
        wm = jnp.transpose(w, (2, 3, 1, 0)).reshape(
            cfg.k * cfg.k * cfg.cin, cfg.cout).astype(jnp.bfloat16)
        b2 = b.reshape(1, cfg.cout)
        params.append({"w": w, "bias": b,   # originals (reference path)
                       "wm": wm, "b2": b2})  # kernel-ready layout
    return params


# ----------------------------------------------------------------------------
# Pallas kernel: fused in-kernel im2col + single GEMM + bias + ReLU.
#   grid = (N,)  ["parallel" -> both v7x TensorCores when N >= 2]
#   x_ref : (1, H2, W2, s*s*Cin)  space-to-depth'd, spatially padded input (bf16)
#   w_ref : (k*k*Cin, Cout)       resident weight (bf16)
#   b_ref : (1, Cout)             resident bias (f32)
#   o_ref : (1, Ho*Wo, Cout)      output block (bf16 intermediate / f32 last)
#   p_ref : (Ho*Wo, k*k*Cin)      VMEM patches scratch (bf16)
# ----------------------------------------------------------------------------
def _conv_block_kernel(x_ref, w_ref, b_ref, o_ref, p_ref, *, k, s, cin, ho, wo):
    # In-kernel im2col: every tap is a static, contiguous slice of the
    # space-to-depth'd input (stride handled in the wrapper layout).
    for r in range(ho):
        row = r * wo
        for i in range(k):
            qi, ri = divmod(i, s)
            for j in range(k):
                qj, rj = divmod(j, s)
                cslot = ri * s + rj
                t = i * k + j
                p_ref[row:row + wo, t * cin:(t + 1) * cin] = \
                    x_ref[0, qi + r, qj:qj + wo,
                          cslot * cin:(cslot + 1) * cin]

    # One MXU GEMM per grid step, f32 accumulation, fused epilogue.
    y = jnp.dot(p_ref[...], w_ref[...], preferred_element_type=jnp.float32)
    y = jnp.maximum(y + b_ref[...], 0.0)
    o_ref[0] = y.astype(o_ref.dtype)


def _tile_bytes(shape, itemsize):
    """Approximate VMEM footprint of one block (lane/sublane padded)."""
    sh = list(shape)
    sh[-1] = _round_up(sh[-1], 128)
    if len(sh) >= 2:
        sh[-2] = _round_up(sh[-2], 8)
    n = 1
    for d in sh:
        n *= d
    return n * itemsize


# ----------------------------------------------------------------------------
# Per-layer wrapper: pad + space-to-depth (one pass), then the fused kernel.
# ----------------------------------------------------------------------------
def conv2d_bias_relu(x_nhwc, cfg, wm, b2, out_dtype):
    n, h, w, cin = x_nhwc.shape
    k, s, pad = cfg.k, cfg.stride, cfg.pad
    ho = (h + 2 * pad - k) // s + 1
    wo = (w + 2 * pad - k) // s + 1
    h2 = -(-(h + 2 * pad) // s)          # ceil(Hp / s)
    w2 = -(-(w + 2 * pad) // s)

    # Single jnp.pad: conv padding + round-up to a multiple of the stride.
    xp = jnp.pad(x_nhwc.astype(jnp.bfloat16),
                 ((0, 0),
                  (pad, h2 * s - h - pad),
                  (pad, w2 * s - w - pad),
                  (0, 0)))
    if s > 1:
        # Space-to-depth turns the strided conv into contiguous static slices.
        xp = xp.reshape(n, h2, s, w2, s, cin)
        xp = xp.transpose(0, 1, 3, 2, 4, 5).reshape(n, h2, w2, s * s * cin)
    cs = s * s * cin
    m = ho * wo
    kk = k * k * cin

    kernel = functools.partial(_conv_block_kernel,
                               k=k, s=s, cin=cin, ho=ho, wo=wo)

    out_itemsize = jnp.dtype(out_dtype).itemsize
    # Real per-step footprint (double-buffered blocks + scratch) + headroom;
    # stays far below v7x's 64 MiB physical VMEM.
    vmem_bytes = (2 * _tile_bytes((1, h2, w2, cs), 2)
                  + 2 * _tile_bytes((kk, cfg.cout), 2)
                  + 2 * _tile_bytes((1, cfg.cout), 4)
                  + 2 * _tile_bytes((1, m, cfg.cout), out_itemsize)
                  + _tile_bytes((m, kk), 2))
    vmem_limit = min(48 * 1024 * 1024,
                     _round_up(2 * vmem_bytes + 8 * 1024 * 1024, 1024 * 1024))

    out = pl.pallas_call(
        kernel,
        out_shape=jax.ShapeDtypeStruct((n, m, cfg.cout), out_dtype),
        grid_spec=pltpu.PrefetchScalarGridSpec(
            num_scalar_prefetch=0,
            grid=(n,),
            in_specs=[
                pl.BlockSpec((1, h2, w2, cs), lambda b: (b, 0, 0, 0)),
                pl.BlockSpec((kk, cfg.cout), lambda b: (0, 0)),   # resident
                pl.BlockSpec((1, cfg.cout), lambda b: (0, 0)),    # resident
            ],
            out_specs=pl.BlockSpec((1, m, cfg.cout), lambda b: (b, 0, 0)),
            scratch_shapes=[pltpu.VMEM((m, kk), jnp.bfloat16)],
        ),
        compiler_params=pltpu.CompilerParams(
            dimension_semantics=("parallel",),
            vmem_limit_bytes=vmem_limit,
        ),
        cost_estimate=pl.CostEstimate(
            flops=2 * n * m * kk * cfg.cout,
            transcendentals=0,
            bytes_accessed=(xp.size * 2 + wm.size * 2 + b2.size * 4
                            + n * m * cfg.cout * out_itemsize),
        ),
    )(xp, wm, b2)

    # (N, Ho*Wo, Cout) -> (N, Ho, Wo, Cout): row-major compatible, free reshape.
    return out.reshape(n, ho, wo, cfg.cout)


# ----------------------------------------------------------------------------
# Forward pass (matches CNNFeatureExtractor.forward: x = self.blocks(x)).
# ----------------------------------------------------------------------------
def make_forward(cfgs):
    @jax.jit
    def forward(x_nchw, params):
        x = jnp.transpose(x_nchw, (0, 2, 3, 1))           # NCHW -> NHWC
        last = len(cfgs) - 1
        for li, (cfg, p) in enumerate(zip(cfgs, params)):
            out_dtype = jnp.float32 if li == last else jnp.bfloat16
            x = conv2d_bias_relu(x, cfg, p["wm"], p["b2"], out_dtype)
        return jnp.transpose(x, (0, 3, 1, 2))             # NHWC -> NCHW
    return forward


# ----------------------------------------------------------------------------
# Pure-JAX reference (lax.conv, same bf16 operand quantization) for validation.
# ----------------------------------------------------------------------------
def ref_forward(x_nchw, params, cfgs):
    x = jnp.transpose(x_nchw, (0, 2, 3, 1))
    for cfg, p in zip(cfgs, params):
        w_hwio = jnp.transpose(p["w"], (2, 3, 1, 0)).astype(jnp.bfloat16)
        y = lax.conv_general_dilated(
            x.astype(jnp.bfloat16), w_hwio, (cfg.stride, cfg.stride),
            [(cfg.pad, cfg.pad), (cfg.pad, cfg.pad)],
            dimension_numbers=("NHWC", "HWIO", "NHWC"),
            preferred_element_type=jnp.float32)
        x = jnp.maximum(y + p["bias"].reshape(1, 1, 1, -1), 0.0)
    return jnp.transpose(x, (0, 3, 1, 2))


if __name__ == "__main__":
    key = jax.random.PRNGKey(0)
    k_params, k_x = jax.random.split(key)

    # Small config consistent with the module's constructor arguments.
    channels = [4, 16, 32, 32]
    kernel_sizes = [3, 3, 3]
    strides = [2, 2, 1]
    paddings = [1, 1, 1]

    cfgs = make_cfgs(channels, kernel_sizes, strides, paddings)
    params = make_params(cfgs, k_params)
    forward = make_forward(cfgs)

    x = jax.random.normal(k_x, (2, 4, 16, 16), jnp.float32)   # NCHW input

    out = jax.block_until_ready(forward(x, params))

    # Expected output spatial size.
    h = 16
    for k_, s_, p_ in zip(kernel_sizes, strides, paddings):
        h = (h + 2 * p_ - k_) // s_ + 1
    expected_shape = (2, channels[-1], h, h)
    assert out.shape == expected_shape, (out.shape, expected_shape)

    ref = jax.block_until_ready(ref_forward(x, params, cfgs))
    err = float(jnp.max(jnp.abs(out - ref)))
    assert jnp.allclose(out, ref, rtol=1e-2, atol=1e-2), err

    print("KERNEL_OK")
</pallas_src>

<mosaic_0001>
module attributes {stable_mosaic.version = 11 : i64} {
  func.func @_conv_block_kernel(%arg0: i32, %arg1: memref<1x9x9x16xbf16, #tpu.memory_space<vmem>>, %arg2: memref<36x16xbf16, #tpu.memory_space<vmem>>, %arg3: memref<1x16xf32, #tpu.memory_space<vmem>>, %arg4: memref<1x64x16xbf16, #tpu.memory_space<vmem>>, %arg5: memref<64x36xbf16, #tpu.memory_space<vmem>>) attributes {dimension_semantics = [#tpu.dimension_semantics<parallel>], iteration_bounds = array<i64: 2>, scalar_prefetch = 0 : i64, scratch_operands = 1 : i64, tpu.core_type = #tpu.core_type<tc>, window_params = [{transform_indices = @transform_0, window_bounds = array<i64: 1, 9, 9, 16>}, {pipeline_mode = #tpu.pipeline_mode<synchronous>, transform_indices = @transform_1, window_bounds = array<i64: 36, 16>}, {pipeline_mode = #tpu.pipeline_mode<synchronous>, transform_indices = @transform_2, window_bounds = array<i64: 1, 16>}, {transform_indices = @transform_3, window_bounds = array<i64: 1, 64, 16>}]} {
    %c0 = arith.constant 0 : index
    %c0_0 = arith.constant 0 : index
    %c0_1 = arith.constant 0 : index
    %c0_2 = arith.constant 0 : index
    %0 = vector.load %arg1[%c0, %c0_0, %c0_1, %c0_2] : memref<1x9x9x16xbf16, #tpu.memory_space<vmem>>, vector<1x1x8x4xbf16>
    %1 = vector.shape_cast %0 : vector<1x1x8x4xbf16> to vector<8x4xbf16>
    %c0_3 = arith.constant 0 : index
    %c0_4 = arith.constant 0 : index
    %2 = vector.load %arg5[%c0_3, %c0_4] : memref<64x36xbf16, #tpu.memory_space<vmem>>, vector<8x4xbf16>
    tpu.vector_store %arg5[%c0_3, %c0_4], %1 {strides = array<i32>} : memref<64x36xbf16, #tpu.memory_space<vmem>>, vector<8x4xbf16>,
    %c0_5 = arith.constant 0 : index
    %c0_6 = arith.constant 0 : index
    %c0_7 = arith.constant 0 : index
    %c4 = arith.constant 4 : index
    %3 = vector.load %arg1[%c0_5, %c0_6, %c0_7, %c4] : memref<1x9x9x16xbf16, #tpu.memory_space<vmem>>, vector<1x1x8x4xbf16>
    %4 = vector.shape_cast %3 : vector<1x1x8x4xbf16> to vector<8x4xbf16>
    %c0_8 = arith.constant 0 : index
    %c4_9 = arith.constant 4 : index
    %5 = vector.load %arg5[%c0_8, %c4_9] : memref<64x36xbf16, #tpu.memory_space<vmem>>, vector<8x4xbf16>
    tpu.vector_store %arg5[%c0_8, %c4_9], %4 {strides = array<i32>} : memref<64x36xbf16, #tpu.memory_space<vmem>>, vector<8x4xbf16>,
    %c0_10 = arith.constant 0 : index
    %c0_11 = arith.constant 0 : index
    %c1 = arith.constant 1 : index
    %c0_12 = arith.constant 0 : index
    %6 = vector.load %arg1[%c0_10, %c0_11, %c1, %c0_12] : memref<1x9x9x16xbf16, #tpu.memory_space<vmem>>, vector<1x1x8x4xbf16>
    %7 = vector.shape_cast %6 : vector<1x1x8x4xbf16> to vector<8x4xbf16>
    %c0_13 = arith.constant 0 : index
    %c8 = arith.constant 8 : index
    %8 = vector.load %arg5[%c0_13, %c8] : memref<64x36xbf16, #tpu.memory_space<vmem>>, vector<8x4xbf16>
    tpu.vector_store %arg5[%c0_13, %c8], %7 {strides = array<i32>} : memref<64x36xbf16, #tpu.memory_space<vmem>>, vector<8x4xbf16>,
    %c0_14 = arith.constant 0 : index
    %c0_15 = arith.constant 0 : index
    %c0_16 = arith.constant 0 : index
    %c8_17 = arith.constant 8 : index
    %9 = vector.load %arg1[%c0_14, %c0_15, %c0_16, %c8_17] : memref<1x9x9x16xbf16, #tpu.memory_space<vmem>>, vector<1x1x8x4xbf16>
    %10 = vector.shape_cast %9 : vector<1x1x8x4xbf16> to vector<8x4xbf16>
    %c0_18 = arith.constant 0 : index
    %c12 = arith.constant 12 : index
    %11 = vector.load %arg5[%c0_18, %c12] : memref<64x36xbf16, #tpu.memory_space<vmem>>, vector<8x4xbf16>
    tpu.vector_store %arg5[%c0_18, %c12], %10 {strides = array<i32>} : memref<64x36xbf16, #tpu.memory_space<vmem>>, vector<8x4xbf16>,
    %c0_19 = arith.constant 0 : index
    %c0_20 = arith.constant 0 : index
    %c0_21 = arith.constant 0 : index
    %c12_22 = arith.constant 12 : index
    %12 = vector.load %arg1[%c0_19, %c0_20, %c0_21, %c12_22] : memref<1x9x9x16xbf16, #tpu.memory_space<vmem>>, vector<1x1x8x4xbf16>
    %13 = vector.shape_cast %12 : vector<1x1x8x4xbf16> to vector<8x4xbf16>
    %c0_23 = arith.constant 0 : index
    %c16 = arith.constant 16 : index
    %14 = vector.load %arg5[%c0_23, %c16] : memref<64x36xbf16, #tpu.memory_space<vmem>>, vector<8x4xbf16>
    tpu.vector_store %arg5[%c0_23, %c16], %13 {strides = array<i32>} : memref<64x36xbf16, #tpu.memory_space<vmem>>, vector<8x4xbf16>,
    %c0_24 = arith.constant 0 : index
    %c0_25 = arith.constant 0 : index
    %c1_26 = arith.constant 1 : index
    %c8_27 = arith.constant 8 : index
    %15 = vector.load %arg1[%c0_24, %c0_25, %c1_26, %c8_27] : memref<1x9x9x16xbf16, #tpu.memory_space<vmem>>, vector<1x1x8x4xbf16>
    %16 = vector.shape_cast %15 : vector<1x1x8x4xbf16> to vector<8x4xbf16>
    %c0_28 = arith.constant 0 : index
    %c20 = arith.constant 20 : index
    %17 = vector.load %arg5[%c0_28, %c20] : memref<64x36xbf16, #tpu.memory_space<vmem>>, vector<8x4xbf16>
    tpu.vector_store %arg5[%c0_28, %c20], %16 {strides = array<i32>} : memref<64x36xbf16, #tpu.memory_space<vmem>>, vector<8x4xbf16>,
    %c0_29 = arith.constant 0 : index
    %c1_30 = arith.constant 1 : index
    %c0_31 = arith.constant 0 : index
    %c0_32 = arith.constant 0 : index
    %18 = vector.load %arg1[%c0_29, %c1_30, %c0_31, %c0_32] : memref<1x9x9x16xbf16, #tpu.memory_space<vmem>>, vector<1x1x8x4xbf16>
    %19 = vector.shape_cast %18 : vector<1x1x8x4xbf16> to vector<8x4xbf16>
    %c0_33 = arith.constant 0 : index
    %c24 = arith.constant 24 : index
    %20 = vector.load %arg5[%c0_33, %c24] : memref<64x36xbf16, #tpu.memory_space<vmem>>, vector<8x4xbf16>
    tpu.vector_store %arg5[%c0_33, %c24], %19 {strides = array<i32>} : memref<64x36xbf16, #tpu.memory_space<vmem>>, vector<8x4xbf16>,
    %c0_34 = arith.constant 0 : index
    %c1_35 = arith.constant 1 : index
    %c0_36 = arith.constant 0 : index
    %c4_37 = arith.constant 4 : index
    %21 = vector.load %arg1[%c0_34, %c1_35, %c0_36, %c4_37] : memref<1x9x9x16xbf16, #tpu.memory_space<vmem>>, vector<1x1x8x4xbf16>
    %22 = vector.shape_cast %21 : vector<1x1x8x4xbf16> to vector<8x4xbf16>
    %c0_38 = arith.constant 0 : index
    %c28 = arith.constant 28 : index
    %23 = vector.load %arg5[%c0_38, %c28] : memref<64x36xbf16, #tpu.memory_space<vmem>>, vector<8x4xbf16>
    tpu.vector_store %arg5[%c0_38, %c28], %22 {strides = array<i32>} : memref<64x36xbf16, #tpu.memory_space<vmem>>, vector<8x4xbf16>,
    %c0_39 = arith.constant 0 : index
    %c1_40 = arith.constant 1 : index
    %c1_41 = arith.constant 1 : index
    %c0_42 = arith.constant 0 : index
    %24 = vector.load %arg1[%c0_39, %c1_40, %c1_41, %c0_42] : memref<1x9x9x16xbf16, #tpu.memory_space<vmem>>, vector<1x1x8x4xbf16>
    %25 = vector.shape_cast %24 : vector<1x1x8x4xbf16> to vector<8x4xbf16>
    %c0_43 = arith.constant 0 : index
    %c32 = arith.constant 32 : index
    %26 = vector.load %arg5[%c0_43, %c32] : memref<64x36xbf16, #tpu.memory_space<vmem>>, vector<8x4xbf16>
    tpu.vector_store %arg5[%c0_43, %c32], %25 {strides = array<i32>} : memref<64x36xbf16, #tpu.memory_space<vmem>>, vector<8x4xbf16>,
    %c0_44 = arith.constant 0 : index
    %c1_45 = arith.constant 1 : index
    %c0_46 = arith.constant 0 : index
    %c0_47 = arith.constant 0 : index
    %27 = vector.load %arg1[%c0_44, %c1_45, %c0_46, %c0_47] : memref<1x9x9x16xbf16, #tpu.memory_space<vmem>>, vector<1x1x8x4xbf16>
    %28 = vector.shape_cast %27 : vector<1x1x8x4xbf16> to vector<8x4xbf16>
    %c8_48 = arith.constant 8 : index
    %c0_49 = arith.constant 0 : index
    %29 = vector.load %arg5[%c8_48, %c0_49] : memref<64x36xbf16, #tpu.memory_space<vmem>>, vector<8x4xbf16>
    tpu.vector_store %arg5[%c8_48, %c0_49], %28 {strides = array<i32>} : memref<64x36xbf16, #tpu.memory_space<vmem>>, vector<8x4xbf16>,
    %c0_50 = arith.constant 0 : index
    %c1_51 = arith.constant 1 : index
    %c0_52 = arith.constant 0 : index
    %c4_53 = arith.constant 4 : index
    %30 = vector.load %arg1[%c0_50, %c1_51, %c0_52, %c4_53] : memref<1x9x9x16xbf16, #tpu.memory_space<vmem>>, vector<1x1x8x4xbf16>
    %31 = vector.shape_cast %30 : vector<1x1x8x4xbf16> to vector<8x4xbf16>
    %c8_54 = arith.constant 8 : index
    %c4_55 = arith.constant 4 : index
    %32 = vector.load %arg5[%c8_54, %c4_55] : memref<64x36xbf16, #tpu.memory_space<vmem>>, vector<8x4xbf16>
    tpu.vector_store %arg5[%c8_54, %c4_55], %31 {strides = array<i32>} : memref<64x36xbf16, #tpu.memory_space<vmem>>, vector<8x4xbf16>,
    %c0_56 = arith.constant 0 : index
    %c1_57 = arith.constant 1 : index
    %c1_58 = arith.constant 1 : index
    %c0_59 = arith.constant 0 : index
    %33 = vector.load %arg1[%c0_56, %c1_57, %c1_58, %c0_59] : memref<1x9x9x16xbf16, #tpu.memory_space<vmem>>, vector<1x1x8x4xbf16>
    %34 = vector.shape_cast %33 : vector<1x1x8x4xbf16> to vector<8x4xbf16>
    %c8_60 = arith.constant 8 : index
    %c8_61 = arith.constant 8 : index
    %35 = vector.load %arg5[%c8_60, %c8_61] : memref<64x36xbf16, #tpu.memory_space<vmem>>, vector<8x4xbf16>
    tpu.vector_store %arg5[%c8_60, %c8_61], %34 {strides = array<i32>} : memref<64x36xbf16, #tpu.memory_space<vmem>>, vector<8x4xbf16>,
    %c0_62 = arith.constant 0 : index
    %c1_63 = arith.constant 1 : index
    %c0_64 = arith.constant 0 : index
    %c8_65 = arith.constant 8 : index
    %36 = vector.load %arg1[%c0_62, %c1_63, %c0_64, %c8_65] : memref<1x9x9x16xbf16, #tpu.memory_space<vmem>>, vector<1x1x8x4xbf16>
    %37 = vector.shape_cast %36 : vector<1x1x8x4xbf16> to vector<8x4xbf16>
    %c8_66 = arith.constant 8 : index
    %c12_67 = arith.constant 12 : index
    %38 = vector.load %arg5[%c8_66, %c12_67] : memref<64x36xbf16, #tpu.memory_space<vmem>>, vector<8x4xbf16>
    tpu.vector_store %arg5[%c8_66, %c12_67], %37 {strides = array<i32>} : memref<64x36xbf16, #tpu.memory_space<vmem>>, vector<8x4xbf16>,
    %c0_68 = arith.constant 0 : index
    %c1_69 = arith.constant 1 : index
    %c0_70 = arith.constant 0 : index
    %c12_71 = arith.constant 12 : index
    %39 = vector.load %arg1[%c0_68, %c1_69, %c0_70, %c12_71] : memref<1x9x9x16xbf16, #tpu.memory_space<vmem>>, vector<1x1x8x4xbf16>
    %40 = vector.shape_cast %39 : vector<1x1x8x4xbf16> to vector<8x4xbf16>
    %c8_72 = arith.constant 8 : index
    %c16_73 = arith.constant 16 : index
    %41 = vector.load %arg5[%c8_72, %c16_73] : memref<64x36xbf16, #tpu.memory_space<vmem>>, vector<8x4xbf16>
    tpu.vector_store %arg5[%c8_72, %c16_73], %40 {strides = array<i32>} : memref<64x36xbf16, #tpu.memory_space<vmem>>, vector<8x4xbf16>,
    %c0_74 = arith.constant 0 : index
    %c1_75 = arith.constant 1 : index
    %c1_76 = arith.constant 1 : index
    %c8_77 = arith.constant 8 : index
    %42 = vector.load %arg1[%c0_74, %c1_75, %c1_76, %c8_77] : memref<1x9x9x16xbf16, #tpu.memory_space<vmem>>, vector<1x1x8x4xbf16>
    %43 = vector.shape_cast %42 : vector<1x1x8x4xbf16> to vector<8x4xbf16>
    %c8_78 = arith.constant 8 : index
    %c20_79 = arith.constant 20 : index
    %44 = vector.load %arg5[%c8_78, %c20_79] : memref<64x36xbf16, #tpu.memory_space<vmem>>, vector<8x4xbf16>
    tpu.vector_store %arg5[%c8_78, %c20_79], %43 {strides = array<i32>} : memref<64x36xbf16, #tpu.memory_space<vmem>>, vector<8x4xbf16>,
    %c0_80 = arith.constant 0 : index
    %c2 = arith.constant 2 : index
    %c0_81 = arith.constant 0 : index
    %c0_82 = arith.constant 0 : index
    %45 = vector.load %arg1[%c0_80, %c2, %c0_81, %c0_82] : memref<1x9x9x16xbf16, #tpu.memory_space<vmem>>, vector<1x1x8x4xbf16>
    %46 = vector.shape_cast %45 : vector<1x1x8x4xbf16> to vector<8x4xbf16>
    %c8_83 = arith.constant 8 : index
    %c24_84 = arith.constant 24 : index
    %47 = vector.load %arg5[%c8_83, %c24_84] : memref<64x36xbf16, #tpu.memory_space<vmem>>, vector<8x4xbf16>
    tpu.vector_store %arg5[%c8_83, %c24_84], %46 {strides = array<i32>} : memref<64x36xbf16, #tpu.memory_space<vmem>>, vector<8x4xbf16>,
    %c0_85 = arith.constant 0 : index
    %c2_86 = arith.constant 2 : index
    %c0_87 = arith.constant 0 : index
    %c4_88 = arith.constant 4 : index
    %48 = vector.load %arg1[%c0_85, %c2_86, %c0_87, %c4_88] : memref<1x9x9x16xbf16, #tpu.memory_space<vmem>>, vector<1x1x8x4xbf16>
    %49 = vector.shape_cast %48 : vector<1x1x8x4xbf16> to vector<8x4xbf16>
    %c8_89 = arith.constant 8 : index
    %c28_90 = arith.constant 28 : index
    %50 = vector.load %arg5[%c8_89, %c28_90] : memref<64x36xbf16, #tpu.memory_space<vmem>>, vector<8x4xbf16>
    tpu.vector_store %arg5[%c8_89, %c28_90], %49 {strides = array<i32>} : memref<64x36xbf16, #tpu.memory_space<vmem>>, vector<8x4xbf16>,
    %c0_91 = arith.constant 0 : index
    %c2_92 = arith.constant 2 : index
    %c1_93 = arith.constant 1 : index
    %c0_94 = arith.constant 0 : index
    %51 = vector.load %arg1[%c0_91, %c2_92, %c1_93, %c0_94] : memref<1x9x9x16xbf16, #tpu.memory_space<vmem>>, vector<1x1x8x4xbf16>
    %52 = vector.shape_cast %51 : vector<1x1x8x4xbf16> to vector<8x4xbf16>
    %c8_95 = arith.constant 8 : index
    %c32_96 = arith.constant 32 : index
    %53 = vector.load %arg5[%c8_95, %c32_96] : memref<64x36xbf16, #tpu.memory_space<vmem>>, vector<8x4xbf16>
    tpu.vector_store %arg5[%c8_95, %c32_96], %52 {strides = array<i32>} : memref<64x36xbf16, #tpu.memory_space<vmem>>, vector<8x4xbf16>,
    %c0_97 = arith.constant 0 : index
    %c2_98 = arith.constant 2 : index
    %c0_99 = arith.constant 0 : index
    %c0_100 = arith.constant 0 : index
    %54 = vector.load %arg1[%c0_97, %c2_98, %c0_99, %c0_100] : memref<1x9x9x16xbf16, #tpu.memory_space<vmem>>, vector<1x1x8x4xbf16>
    %55 = vector.shape_cast %54 : vector<1x1x8x4xbf16> to vector<8x4xbf16>
    %c16_101 = arith.constant 16 : index
    %c0_102 = arith.constant 0 : index
    %56 = vector.load %arg5[%c16_101, %c0_102] : memref<64x36xbf16, #tpu.memory_space<vmem>>, vector<8x4xbf16>
    tpu.vector_store %arg5[%c16_101, %c0_102], %55 {strides = array<i32>} : memref<64x36xbf16, #tpu.memory_space<vmem>>, vector<8x4xbf16>,
    %c0_103 = arith.constant 0 : index
    %c2_104 = arith.constant 2 : index
    %c0_105 = arith.constant 0 : index
    %c4_106 = arith.constant 4 : index
    %57 = vector.load %arg1[%c0_103, %c2_104, %c0_105, %c4_106] : memref<1x9x9x16xbf16, #tpu.memory_space<vmem>>, vector<1x1x8x4xbf16>
    %58 = vector.shape_cast %57 : vector<1x1x8x4xbf16> to vector<8x4xbf16>
    %c16_107 = arith.constant 16 : index
    %c4_108 = arith.constant 4 : index
    %59 = vector.load %arg5[%c16_107, %c4_108] : memref<64x36xbf16, #tpu.memory_space<vmem>>, vector<8x4xbf16>
    tpu.vector_store %arg5[%c16_107, %c4_108], %58 {strides = array<i32>} : memref<64x36xbf16, #tpu.memory_space<vmem>>, vector<8x4xbf16>,
    %c0_109 = arith.constant 0 : index
    %c2_110 = arith.constant 2 : index
    %c1_111 = arith.constant 1 : index
    %c0_112 = arith.constant 0 : index
    %60 = vector.load %arg1[%c0_109, %c2_110, %c1_111, %c0_112] : memref<1x9x9x16xbf16, #tpu.memory_space<vmem>>, vector<1x1x8x4xbf16>
    %61 = vector.shape_cast %60 : vector<1x1x8x4xbf16> to vector<8x4xbf16>
    %c16_113 = arith.constant 16 : index
    %c8_114 = arith.constant 8 : index
    %62 = vector.load %arg5[%c16_113, %c8_114] : memref<64x36xbf16, #tpu.memory_space<vmem>>, vector<8x4xbf16>
    tpu.vector_store %arg5[%c16_113, %c8_114], %61 {strides = array<i32>} : memref<64x36xbf16, #tpu.memory_space<vmem>>, vector<8x4xbf16>,
    %c0_115 = arith.constant 0 : index
    %c2_116 = arith.constant 2 : index
    %c0_117 = arith.constant 0 : index
    %c8_118 = arith.constant 8 : index
    %63 = vector.load %arg1[%c0_115, %c2_116, %c0_117, %c8_118] : memref<1x9x9x16xbf16, #tpu.memory_space<vmem>>, vector<1x1x8x4xbf16>
    %64 = vector.shape_cast %63 : vector<1x1x8x4xbf16> to vector<8x4xbf16>
    %c16_119 = arith.constant 16 : index
    %c12_120 = arith.constant 12 : index
    %65 = vector.load %arg5[%c16_119, %c12_120] : memref<64x36xbf16, #tpu.memory_space<vmem>>, vector<8x4xbf16>
    tpu.vector_store %arg5[%c16_119, %c12_120], %64 {strides = array<i32>} : memref<64x36xbf16, #tpu.memory_space<vmem>>, vector<8x4xbf16>,
    %c0_121 = arith.constant 0 : index
    %c2_122 = arith.constant 2 : index
    %c0_123 = arith.constant 0 : index
    %c12_124 = arith.constant 12 : index
    %66 = vector.load %arg1[%c0_121, %c2_122, %c0_123, %c12_124] : memref<1x9x9x16xbf16, #tpu.memory_space<vmem>>, vector<1x1x8x4xbf16>
    %67 = vector.shape_cast %66 : vector<1x1x8x4xbf16> to vector<8x4xbf16>
    %c16_125 = arith.constant 16 : index
    %c16_126 = arith.constant 16 : index
    %68 = vector.load %arg5[%c16_125, %c16_126] : memref<64x36xbf16, #tpu.memory_space<vmem>>, vector<8x4xbf16>
    tpu.vector_store %arg5[%c16_125, %c16_126], %67 {strides = array<i32>} : memref<64x36xbf16, #tpu.memory_space<vmem>>, vector<8x4xbf16>,
    %c0_127 = arith.constant 0 : index
    %c2_128 = arith.constant 2 : index
    %c1_129 = arith.constant 1 : index
    %c8_130 = arith.constant 8 : index
    %69 = vector.load %arg1[%c0_127, %c2_128, %c1_129, %c8_130] : memref<1x9x9x16xbf16, #tpu.memory_space<vmem>>, vector<1x1x8x4xbf16>
    %70 = vector.shape_cast %69 : vector<1x1x8x4xbf16> to vector<8x4xbf16>
    %c16_131 = arith.constant 16 : index
    %c20_132 = arith.constant 20 : index
    %71 = vector.load %arg5[%c16_131, %c20_132] : memref<64x36xbf16, #tpu.memory_space<vmem>>, vector<8x4xbf16>
    tpu.vector_store %arg5[%c16_131, %c20_132], %70 {strides = array<i32>} : memref<64x36xbf16, #tpu.memory_space<vmem>>, vector<8x4xbf16>,
    %c0_133 = arith.constant 0 : index
    %c3 = arith.constant 3 : index
    %c0_134 = arith.constant 0 : index
    %c0_135 = arith.constant 0 : index
    %72 = vector.load %arg1[%c0_133, %c3, %c0_134, %c0_135] : memref<1x9x9x16xbf16, #tpu.memory_space<vmem>>, vector<1x1x8x4xbf16>
    %73 = vector.shape_cast %72 : vector<1x1x8x4xbf16> to vector<8x4xbf16>
    %c16_136 = arith.constant 16 : index
    %c24_137 = arith.constant 24 : index
    %74 = vector.load %arg5[%c16_136, %c24_137] : memref<64x36xbf16, #tpu.memory_space<vmem>>, vector<8x4xbf16>
    tpu.vector_store %arg5[%c16_136, %c24_137], %73 {strides = array<i32>} : memref<64x36xbf16, #tpu.memory_space<vmem>>, vector<8x4xbf16>,
    %c0_138 = arith.constant 0 : index
    %c3_139 = arith.constant 3 : index
    %c0_140 = arith.constant 0 : index
    %c4_141 = arith.constant 4 : index
    %75 = vector.load %arg1[%c0_138, %c3_139, %c0_140, %c4_141] : memref<1x9x9x16xbf16, #tpu.memory_space<vmem>>, vector<1x1x8x4xbf16>
    %76 = vector.shape_cast %75 : vector<1x1x8x4xbf16> to vector<8x4xbf16>
    %c16_142 = arith.constant 16 : index
    %c28_143 = arith.constant 28 : index
    %77 = vector.load %arg5[%c16_142, %c28_143] : memref<64x36xbf16, #tpu.memory_space<vmem>>, vector<8x4xbf16>
    tpu.vector_store %arg5[%c16_142, %c28_143], %76 {strides = array<i32>} : memref<64x36xbf16, #tpu.memory_space<vmem>>, vector<8x4xbf16>,
    %c0_144 = arith.constant 0 : index
    %c3_145 = arith.constant 3 : index
    %c1_146 = arith.constant 1 : index
    %c0_147 = arith.constant 0 : index
    %78 = vector.load %arg1[%c0_144, %c3_145, %c1_146, %c0_147] : memref<1x9x9x16xbf16, #tpu.memory_space<vmem>>, vector<1x1x8x4xbf16>
    %79 = vector.shape_cast %78 : vector<1x1x8x4xbf16> to vector<8x4xbf16>
    %c16_148 = arith.constant 16 : index
    %c32_149 = arith.constant 32 : index
    %80 = vector.load %arg5[%c16_148, %c32_149] : memref<64x36xbf16, #tpu.memory_space<vmem>>, vector<8x4xbf16>
    tpu.vector_store %arg5[%c16_148, %c32_149], %79 {strides = array<i32>} : memref<64x36xbf16, #tpu.memory_space<vmem>>, vector<8x4xbf16>,
    %c0_150 = arith.constant 0 : index
    %c3_151 = arith.constant 3 : index
    %c0_152 = arith.constant 0 : index
    %c0_153 = arith.constant 0 : index
    %81 = vector.load %arg1[%c0_150, %c3_151, %c0_152, %c0_153] : memref<1x9x9x16xbf16, #tpu.memory_space<vmem>>, vector<1x1x8x4xbf16>
    %82 = vector.shape_cast %81 : vector<1x1x8x4xbf16> to vector<8x4xbf16>
    %c24_154 = arith.constant 24 : index
    %c0_155 = arith.constant 0 : index
    %83 = vector.load %arg5[%c24_154, %c0_155] : memref<64x36xbf16, #tpu.memory_space<vmem>>, vector<8x4xbf16>
    tpu.vector_store %arg5[%c24_154, %c0_155], %82 {strides = array<i32>} : memref<64x36xbf16, #tpu.memory_space<vmem>>, vector<8x4xbf16>,
    %c0_156 = arith.constant 0 : index
    %c3_157 = arith.constant 3 : index
    %c0_158 = arith.constant 0 : index
    %c4_159 = arith.constant 4 : index
    %84 = vector.load %arg1[%c0_156, %c3_157, %c0_158, %c4_159] : memref<1x9x9x16xbf16, #tpu.memory_space<vmem>>, vector<1x1x8x4xbf16>
    %85 = vector.shape_cast %84 : vector<1x1x8x4xbf16> to vector<8x4xbf16>
    %c24_160 = arith.constant 24 : index
    %c4_161 = arith.constant 4 : index
    %86 = vector.load %arg5[%c24_160, %c4_161] : memref<64x36xbf16, #tpu.memory_space<vmem>>, vector<8x4xbf16>
    tpu.vector_store %arg5[%c24_160, %c4_161], %85 {strides = array<i32>} : memref<64x36xbf16, #tpu.memory_space<vmem>>, vector<8x4xbf16>,
    %c0_162 = arith.constant 0 : index
    %c3_163 = arith.constant 3 : index
    %c1_164 = arith.constant 1 : index
    %c0_165 = arith.constant 0 : index
    %87 = vector.load %arg1[%c0_162, %c3_163, %c1_164, %c0_165] : memref<1x9x9x16xbf16, #tpu.memory_space<vmem>>, vector<1x1x8x4xbf16>
    %88 = vector.shape_cast %87 : vector<1x1x8x4xbf16> to vector<8x4xbf16>
    %c24_166 = arith.constant 24 : index
    %c8_167 = arith.constant 8 : index
    %89 = vector.load %arg5[%c24_166, %c8_167] : memref<64x36xbf16, #tpu.memory_space<vmem>>, vector<8x4xbf16>
    tpu.vector_store %arg5[%c24_166, %c8_167], %88 {strides = array<i32>} : memref<64x36xbf16, #tpu.memory_space<vmem>>, vector<8x4xbf16>,
    %c0_168 = arith.constant 0 : index
    %c3_169 = arith.constant 3 : index
    %c0_170 = arith.constant 0 : index
    %c8_171 = arith.constant 8 : index
    %90 = vector.load %arg1[%c0_168, %c3_169, %c0_170, %c8_171] : memref<1x9x9x16xbf16, #tpu.memory_space<vmem>>, vector<1x1x8x4xbf16>
    %91 = vector.shape_cast %90 : vector<1x1x8x4xbf16> to vector<8x4xbf16>
    %c24_172 = arith.constant 24 : index
    %c12_173 = arith.constant 12 : index
    %92 = vector.load %arg5[%c24_172, %c12_173] : memref<64x36xbf16, #tpu.memory_space<vmem>>, vector<8x4xbf16>
    tpu.vector_store %arg5[%c24_172, %c12_173], %91 {strides = array<i32>} : memref<64x36xbf16, #tpu.memory_space<vmem>>, vector<8x4xbf16>,
    %c0_174 = arith.constant 0 : index
    %c3_175 = arith.constant 3 : index
    %c0_176 = arith.constant 0 : index
    %c12_177 = arith.constant 12 : index
    %93 = vector.load %arg1[%c0_174, %c3_175, %c0_176, %c12_177] : memref<1x9x9x16xbf16, #tpu.memory_space<vmem>>, vector<1x1x8x4xbf16>
    %94 = vector.shape_cast %93 : vector<1x1x8x4xbf16> to vector<8x4xbf16>
    %c24_178 = arith.constant 24 : index
    %c16_179 = arith.constant 16 : index
    %95 = vector.load %arg5[%c24_178, %c16_179] : memref<64x36xbf16, #tpu.memory_space<vmem>>, vector<8x4xbf16>
    tpu.vector_store %arg5[%c24_178, %c16_179], %94 {strides = array<i32>} : memref<64x36xbf16, #tpu.memory_space<vmem>>, vector<8x4xbf16>,
    %c0_180 = arith.constant 0 : index
    %c3_181 = arith.constant 3 : index
    %c1_182 = arith.constant 1 : index
    %c8_183 = arith.constant 8 : index
    %96 = vector.load %arg1[%c0_180, %c3_181, %c1_182, %c8_183] : memref<1x9x9x16xbf16, #tpu.memory_space<vmem>>, vector<1x1x8x4xbf16>
    %97 = vector.shape_cast %96 : vector<1x1x8x4xbf16> to vector<8x4xbf16>
    %c24_184 = arith.constant 24 : index
    %c20_185 = arith.constant 20 : index
    %98 = vector.load %arg5[%c24_184, %c20_185] : memref<64x36xbf16, #tpu.memory_space<vmem>>, vector<8x4xbf16>
    tpu.vector_store %arg5[%c24_184, %c20_185], %97 {strides = array<i32>} : memref<64x36xbf16, #tpu.memory_space<vmem>>, vector<8x4xbf16>,
    %c0_186 = arith.constant 0 : index
    %c4_187 = arith.constant 4 : index
    %c0_188 = arith.constant 0 : index
    %c0_189 = arith.constant 0 : index
    %99 = vector.load %arg1[%c0_186, %c4_187, %c0_188, %c0_189] : memref<1x9x9x16xbf16, #tpu.memory_space<vmem>>, vector<1x1x8x4xbf16>
    %100 = vector.shape_cast %99 : vector<1x1x8x4xbf16> to vector<8x4xbf16>
    %c24_190 = arith.constant 24 : index
    %c24_191 = arith.constant 24 : index
    %101 = vector.load %arg5[%c24_190, %c24_191] : memref<64x36xbf16, #tpu.memory_space<vmem>>, vector<8x4xbf16>
    tpu.vector_store %arg5[%c24_190, %c24_191], %100 {strides = array<i32>} : memref<64x36xbf16, #tpu.memory_space<vmem>>, vector<8x4xbf16>,
    %c0_192 = arith.constant 0 : index
    %c4_193 = arith.constant 4 : index
    %c0_194 = arith.constant 0 : index
    %c4_195 = arith.constant 4 : index
    %102 = vector.load %arg1[%c0_192, %c4_193, %c0_194, %c4_195] : memref<1x9x9x16xbf16, #tpu.memory_space<vmem>>, vector<1x1x8x4xbf16>
    %103 = vector.shape_cast %102 : vector<1x1x8x4xbf16> to vector<8x4xbf16>
    %c24_196 = arith.constant 24 : index
    %c28_197 = arith.constant 28 : index
    %104 = vector.load %arg5[%c24_196, %c28_197] : memref<64x36xbf16, #tpu.memory_space<vmem>>, vector<8x4xbf16>
    tpu.vector_store %arg5[%c24_196, %c28_197], %103 {strides = array<i32>} : memref<64x36xbf16, #tpu.memory_space<vmem>>, vector<8x4xbf16>,
    %c0_198 = arith.constant 0 : index
    %c4_199 = arith.constant 4 : index
    %c1_200 = arith.constant 1 : index
    %c0_201 = arith.constant 0 : index
    %105 = vector.load %arg1[%c0_198, %c4_199, %c1_200, %c0_201] : memref<1x9x9x16xbf16, #tpu.memory_space<vmem>>, vector<1x1x8x4xbf16>
    %106 = vector.shape_cast %105 : vector<1x1x8x4xbf16> to vector<8x4xbf16>
    %c24_202 = arith.constant 24 : index
    %c32_203 = arith.constant 32 : index
    %107 = vector.load %arg5[%c24_202, %c32_203] : memref<64x36xbf16, #tpu.memory_space<vmem>>, vector<8x4xbf16>
    tpu.vector_store %arg5[%c24_202, %c32_203], %106 {strides = array<i32>} : memref<64x36xbf16, #tpu.memory_space<vmem>>, vector<8x4xbf16>,
    %c0_204 = arith.constant 0 : index
    %c4_205 = arith.constant 4 : index
    %c0_206 = arith.constant 0 : index
    %c0_207 = arith.constant 0 : index
    %108 = vector.load %arg1[%c0_204, %c4_205, %c0_206, %c0_207] : memref<1x9x9x16xbf16, #tpu.memory_space<vmem>>, vector<1x1x8x4xbf16>
    %109 = vector.shape_cast %108 : vector<1x1x8x4xbf16> to vector<8x4xbf16>
    %c32_208 = arith.constant 32 : index
    %c0_209 = arith.constant 0 : index
    %110 = vector.load %arg5[%c32_208, %c0_209] : memref<64x36xbf16, #tpu.memory_space<vmem>>, vector<8x4xbf16>
    tpu.vector_store %arg5[%c32_208, %c0_209], %109 {strides = array<i32>} : memref<64x36xbf16, #tpu.memory_space<vmem>>, vector<8x4xbf16>,
    %c0_210 = arith.constant 0 : index
    %c4_211 = arith.constant 4 : index
    %c0_212 = arith.constant 0 : index
    %c4_213 = arith.constant 4 : index
    %111 = vector.load %arg1[%c0_210, %c4_211, %c0_212, %c4_213] : memref<1x9x9x16xbf16, #tpu.memory_space<vmem>>, vector<1x1x8x4xbf16>
    %112 = vector.shape_cast %111 : vector<1x1x8x4xbf16> to vector<8x4xbf16>
    %c32_214 = arith.constant 32 : index
    %c4_215 = arith.constant 4 : index
    %113 = vector.load %arg5[%c32_214, %c4_215] : memref<64x36xbf16, #tpu.memory_space<vmem>>, vector<8x4xbf16>
    tpu.vector_store %arg5[%c32_214, %c4_215], %112 {strides = array<i32>} : memref<64x36xbf16, #tpu.memory_space<vmem>>, vector<8x4xbf16>,
    %c0_216 = arith.constant 0 : index
    %c4_217 = arith.constant 4 : index
    %c1_218 = arith.constant 1 : index
    %c0_219 = arith.constant 0 : index
    %114 = vector.load %arg1[%c0_216, %c4_217, %c1_218, %c0_219] : memref<1x9x9x16xbf16, #tpu.memory_space<vmem>>, vector<1x1x8x4xbf16>
    %115 = vector.shape_cast %114 : vector<1x1x8x4xbf16> to vector<8x4xbf16>
    %c32_220 = arith.constant 32 : index
    %c8_221 = arith.constant 8 : index
    %116 = vector.load %arg5[%c32_220, %c8_221] : memref<64x36xbf16, #tpu.memory_space<vmem>>, vector<8x4xbf16>
    tpu.vector_store %arg5[%c32_220, %c8_221], %115 {strides = array<i32>} : memref<64x36xbf16, #tpu.memory_space<vmem>>, vector<8x4xbf16>,
    %c0_222 = arith.constant 0 : index
    %c4_223 = arith.constant 4 : index
    %c0_224 = arith.constant 0 : index
    %c8_225 = arith.constant 8 : index
    %117 = vector.load %arg1[%c0_222, %c4_223, %c0_224, %c8_225] : memref<1x9x9x16xbf16, #tpu.memory_space<vmem>>, vector<1x1x8x4xbf16>
    %118 = vector.shape_cast %117 : vector<1x1x8x4xbf16> to vector<8x4xbf16>
    %c32_226 = arith.constant 32 : index
    %c12_227 = arith.constant 12 : index
    %119 = vector.load %arg5[%c32_226, %c12_227] : memref<64x36xbf16, #tpu.memory_space<vmem>>, vector<8x4xbf16>
    tpu.vector_store %arg5[%c32_226, %c12_227], %118 {strides = array<i32>} : memref<64x36xbf16, #tpu.memory_space<vmem>>, vector<8x4xbf16>,
    %c0_228 = arith.constant 0 : index
    %c4_229 = arith.constant 4 : index
    %c0_230 = arith.constant 0 : index
    %c12_231 = arith.constant 12 : index
    %120 = vector.load %arg1[%c0_228, %c4_229, %c0_230, %c12_231] : memref<1x9x9x16xbf16, #tpu.memory_space<vmem>>, vector<1x1x8x4xbf16>
    %121 = vector.shape_cast %120 : vector<1x1x8x4xbf16> to vector<8x4xbf16>
    %c32_232 = arith.constant 32 : index
    %c16_233 = arith.constant 16 : index
    %122 = vector.load %arg5[%c32_232, %c16_233] : memref<64x36xbf16, #tpu.memory_space<vmem>>, vector<8x4xbf16>
    tpu.vector_store %arg5[%c32_232, %c16_233], %121 {strides = array<i32>} : memref<64x36xbf16, #tpu.memory_space<vmem>>, vector<8x4xbf16>,
    %c0_234 = arith.constant 0 : index
    %c4_235 = arith.constant 4 : index
    %c1_236 = arith.constant 1 : index
    %c8_237 = arith.constant 8 : index
    %123 = vector.load %arg1[%c0_234, %c4_235, %c1_236, %c8_237] : memref<1x9x9x16xbf16, #tpu.memory_space<vmem>>, vector<1x1x8x4xbf16>
    %124 = vector.shape_cast %123 : vector<1x1x8x4xbf16> to vector<8x4xbf16>
    %c32_238 = arith.constant 32 : index
    %c20_239 = arith.constant 20 : index
    %125 = vector.load %arg5[%c32_238, %c20_239] : memref<64x36xbf16, #tpu.memory_space<vmem>>, vector<8x4xbf16>
    tpu.vector_store %arg5[%c32_238, %c20_239], %124 {strides = array<i32>} : memref<64x36xbf16, #tpu.memory_space<vmem>>, vector<8x4xbf16>,
    %c0_240 = arith.constant 0 : index
    %c5 = arith.constant 5 : index
    %c0_241 = arith.constant 0 : index
    %c0_242 = arith.constant 0 : index
    %126 = vector.load %arg1[%c0_240, %c5, %c0_241, %c0_242] : memref<1x9x9x16xbf16, #tpu.memory_space<vmem>>, vector<1x1x8x4xbf16>
    %127 = vector.shape_cast %126 : vector<1x1x8x4xbf16> to vector<8x4xbf16>
    %c32_243 = arith.constant 32 : index
    %c24_244 = arith.constant 24 : index
    %128 = vector.load %arg5[%c32_243, %c24_244] : memref<64x36xbf16, #tpu.memory_space<vmem>>, vector<8x4xbf16>
    tpu.vector_store %arg5[%c32_243, %c24_244], %127 {strides = array<i32>} : memref<64x36xbf16, #tpu.memory_space<vmem>>, vector<8x4xbf16>,
    %c0_245 = arith.constant 0 : index
    %c5_246 = arith.constant 5 : index
    %c0_247 = arith.constant 0 : index
    %c4_248 = arith.constant 4 : index
    %129 = vector.load %arg1[%c0_245, %c5_246, %c0_247, %c4_248] : memref<1x9x9x16xbf16, #tpu.memory_space<vmem>>, vector<1x1x8x4xbf16>
    %130 = vector.shape_cast %129 : vector<1x1x8x4xbf16> to vector<8x4xbf16>
    %c32_249 = arith.constant 32 : index
    %c28_250 = arith.constant 28 : index
    %131 = vector.load %arg5[%c32_249, %c28_250] : memref<64x36xbf16, #tpu.memory_space<vmem>>, vector<8x4xbf16>
    tpu.vector_store %arg5[%c32_249, %c28_250], %130 {strides = array<i32>} : memref<64x36xbf16, #tpu.memory_space<vmem>>, vector<8x4xbf16>,
    %c0_251 = arith.constant 0 : index
    %c5_252 = arith.constant 5 : index
    %c1_253 = arith.constant 1 : index
    %c0_254 = arith.constant 0 : index
    %132 = vector.load %arg1[%c0_251, %c5_252, %c1_253, %c0_254] : memref<1x9x9x16xbf16, #tpu.memory_space<vmem>>, vector<1x1x8x4xbf16>
    %133 = vector.shape_cast %132 : vector<1x1x8x4xbf16> to vector<8x4xbf16>
    %c32_255 = arith.constant 32 : index
    %c32_256 = arith.constant 32 : index
    %134 = vector.load %arg5[%c32_255, %c32_256] : memref<64x36xbf16, #tpu.memory_space<vmem>>, vector<8x4xbf16>
    tpu.vector_store %arg5[%c32_255, %c32_256], %133 {strides = array<i32>} : memref<64x36xbf16, #tpu.memory_space<vmem>>, vector<8x4xbf16>,
    %c0_257 = arith.constant 0 : index
    %c5_258 = arith.constant 5 : index
    %c0_259 = arith.constant 0 : index
    %c0_260 = arith.constant 0 : index
    %135 = vector.load %arg1[%c0_257, %c5_258, %c0_259, %c0_260] : memref<1x9x9x16xbf16, #tpu.memory_space<vmem>>, vector<1x1x8x4xbf16>
    %136 = vector.shape_cast %135 : vector<1x1x8x4xbf16> to vector<8x4xbf16>
    %c40 = arith.constant 40 : index
    %c0_261 = arith.constant 0 : index
    %137 = vector.load %arg5[%c40, %c0_261] : memref<64x36xbf16, #tpu.memory_space<vmem>>, vector<8x4xbf16>
    tpu.vector_store %arg5[%c40, %c0_261], %136 {strides = array<i32>} : memref<64x36xbf16, #tpu.memory_space<vmem>>, vector<8x4xbf16>,
    %c0_262 = arith.constant 0 : index
    %c5_263 = arith.constant 5 : index
    %c0_264 = arith.constant 0 : index
    %c4_265 = arith.constant 4 : index
    %138 = vector.load %arg1[%c0_262, %c5_263, %c0_264, %c4_265] : memref<1x9x9x16xbf16, #tpu.memory_space<vmem>>, vector<1x1x8x4xbf16>
    %139 = vector.shape_cast %138 : vector<1x1x8x4xbf16> to vector<8x4xbf16>
    %c40_266 = arith.constant 40 : index
    %c4_267 = arith.constant 4 : index
    %140 = vector.load %arg5[%c40_266, %c4_267] : memref<64x36xbf16, #tpu.memory_space<vmem>>, vector<8x4xbf16>
    tpu.vector_store %arg5[%c40_266, %c4_267], %139 {strides = array<i32>} : memref<64x36xbf16, #tpu.memory_space<vmem>>, vector<8x4xbf16>,
    %c0_268 = arith.constant 0 : index
    %c5_269 = arith.constant 5 : index
    %c1_270 = arith.constant 1 : index
    %c0_271 = arith.constant 0 : index
    %141 = vector.load %arg1[%c0_268, %c5_269, %c1_270, %c0_271] : memref<1x9x9x16xbf16, #tpu.memory_space<vmem>>, vector<1x1x8x4xbf16>
    %142 = vector.shape_cast %141 : vector<1x1x8x4xbf16> to vector<8x4xbf16>
    %c40_272 = arith.constant 40 : index
    %c8_273 = arith.constant 8 : index
    %143 = vector.load %arg5[%c40_272, %c8_273] : memref<64x36xbf16, #tpu.memory_space<vmem>>, vector<8x4xbf16>
    tpu.vector_store %arg5[%c40_272, %c8_273], %142 {strides = array<i32>} : memref<64x36xbf16, #tpu.memory_space<vmem>>, vector<8x4xbf16>,
    %c0_274 = arith.constant 0 : index
    %c5_275 = arith.constant 5 : index
    %c0_276 = arith.constant 0 : index
    %c8_277 = arith.constant 8 : index
    %144 = vector.load %arg1[%c0_274, %c5_275, %c0_276, %c8_277] : memref<1x9x9x16xbf16, #tpu.memory_space<vmem>>, vector<1x1x8x4xbf16>
    %145 = vector.shape_cast %144 : vector<1x1x8x4xbf16> to vector<8x4xbf16>
    %c40_278 = arith.constant 40 : index
    %c12_279 = arith.constant 12 : index
    %146 = vector.load %arg5[%c40_278, %c12_279] : memref<64x36xbf16, #tpu.memory_space<vmem>>, vector<8x4xbf16>
    tpu.vector_store %arg5[%c40_278, %c12_279], %145 {strides = array<i32>} : memref<64x36xbf16, #tpu.memory_space<vmem>>, vector<8x4xbf16>,
    %c0_280 = arith.constant 0 : index
    %c5_281 = arith.constant 5 : index
    %c0_282 = arith.constant 0 : index
    %c12_283 = arith.constant 12 : index
    %147 = vector.load %arg1[%c0_280, %c5_281, %c0_282, %c12_283] : memref<1x9x9x16xbf16, #tpu.memory_space<vmem>>, vector<1x1x8x4xbf16>
    %148 = vector.shape_cast %147 : vector<1x1x8x4xbf16> to vector<8x4xbf16>
    %c40_284 = arith.constant 40 : index
    %c16_285 = arith.constant 16 : index
    %149 = vector.load %arg5[%c40_284, %c16_285] : memref<64x36xbf16, #tpu.memory_space<vmem>>, vector<8x4xbf16>
    tpu.vector_store %arg5[%c40_284, %c16_285], %148 {strides = array<i32>} : memref<64x36xbf16, #tpu.memory_space<vmem>>, vector<8x4xbf16>,
    %c0_286 = arith.constant 0 : index
    %c5_287 = arith.constant 5 : index
    %c1_288 = arith.constant 1 : index
    %c8_289 = arith.constant 8 : index
    %150 = vector.load %arg1[%c0_286, %c5_287, %c1_288, %c8_289] : memref<1x9x9x16xbf16, #tpu.memory_space<vmem>>, vector<1x1x8x4xbf16>
    %151 = vector.shape_cast %150 : vector<1x1x8x4xbf16> to vector<8x4xbf16>
    %c40_290 = arith.constant 40 : index
    %c20_291 = arith.constant 20 : index
    %152 = vector.load %arg5[%c40_290, %c20_291] : memref<64x36xbf16, #tpu.memory_space<vmem>>, vector<8x4xbf16>
    tpu.vector_store %arg5[%c40_290, %c20_291], %151 {strides = array<i32>} : memref<64x36xbf16, #tpu.memory_space<vmem>>, vector<8x4xbf16>,
    %c0_292 = arith.constant 0 : index
    %c6 = arith.constant 6 : index
    %c0_293 = arith.constant 0 : index
    %c0_294 = arith.constant 0 : index
    %153 = vector.load %arg1[%c0_292, %c6, %c0_293, %c0_294] : memref<1x9x9x16xbf16, #tpu.memory_space<vmem>>, vector<1x1x8x4xbf16>
    %154 = vector.shape_cast %153 : vector<1x1x8x4xbf16> to vector<8x4xbf16>
    %c40_295 = arith.constant 40 : index
    %c24_296 = arith.constant 24 : index
    %155 = vector.load %arg5[%c40_295, %c24_296] : memref<64x36xbf16, #tpu.memory_space<vmem>>, vector<8x4xbf16>
    tpu.vector_store %arg5[%c40_295, %c24_296], %154 {strides = array<i32>} : memref<64x36xbf16, #tpu.memory_space<vmem>>, vector<8x4xbf16>,
    %c0_297 = arith.constant 0 : index
    %c6_298 = arith.constant 6 : index
    %c0_299 = arith.constant 0 : index
    %c4_300 = arith.constant 4 : index
    %156 = vector.load %arg1[%c0_297, %c6_298, %c0_299, %c4_300] : memref<1x9x9x16xbf16, #tpu.memory_space<vmem>>, vector<1x1x8x4xbf16>
    %157 = vector.shape_cast %156 : vector<1x1x8x4xbf16> to vector<8x4xbf16>
    %c40_301 = arith.constant 40 : index
    %c28_302 = arith.constant 28 : index
    %158 = vector.load %arg5[%c40_301, %c28_302] : memref<64x36xbf16, #tpu.memory_space<vmem>>, vector<8x4xbf16>
    tpu.vector_store %arg5[%c40_301, %c28_302], %157 {strides = array<i32>} : memref<64x36xbf16, #tpu.memory_space<vmem>>, vector<8x4xbf16>,
    %c0_303 = arith.constant 0 : index
    %c6_304 = arith.constant 6 : index
    %c1_305 = arith.constant 1 : index
    %c0_306 = arith.constant 0 : index
    %159 = vector.load %arg1[%c0_303, %c6_304, %c1_305, %c0_306] : memref<1x9x9x16xbf16, #tpu.memory_space<vmem>>, vector<1x1x8x4xbf16>
    %160 = vector.shape_cast %159 : vector<1x1x8x4xbf16> to vector<8x4xbf16>
    %c40_307 = arith.constant 40 : index
    %c32_308 = arith.constant 32 : index
    %161 = vector.load %arg5[%c40_307, %c32_308] : memref<64x36xbf16, #tpu.memory_space<vmem>>, vector<8x4xbf16>
    tpu.vector_store %arg5[%c40_307, %c32_308], %160 {strides = array<i32>} : memref<64x36xbf16, #tpu.memory_space<vmem>>, vector<8x4xbf16>,
    %c0_309 = arith.constant 0 : index
    %c6_310 = arith.constant 6 : index
    %c0_311 = arith.constant 0 : index
    %c0_312 = arith.constant 0 : index
    %162 = vector.load %arg1[%c0_309, %c6_310, %c0_311, %c0_312] : memref<1x9x9x16xbf16, #tpu.memory_space<vmem>>, vector<1x1x8x4xbf16>
    %163 = vector.shape_cast %162 : vector<1x1x8x4xbf16> to vector<8x4xbf16>
    %c48 = arith.constant 48 : index
    %c0_313 = arith.constant 0 : index
    %164 = vector.load %arg5[%c48, %c0_313] : memref<64x36xbf16, #tpu.memory_space<vmem>>, vector<8x4xbf16>
    tpu.vector_store %arg5[%c48, %c0_313], %163 {strides = array<i32>} : memref<64x36xbf16, #tpu.memory_space<vmem>>, vector<8x4xbf16>,
    %c0_314 = arith.constant 0 : index
    %c6_315 = arith.constant 6 : index
    %c0_316 = arith.constant 0 : index
    %c4_317 = arith.constant 4 : index
    %165 = vector.load %arg1[%c0_314, %c6_315, %c0_316, %c4_317] : memref<1x9x9x16xbf16, #tpu.memory_space<vmem>>, vector<1x1x8x4xbf16>
    %166 = vector.shape_cast %165 : vector<1x1x8x4xbf16> to vector<8x4xbf16>
    %c48_318 = arith.constant 48 : index
    %c4_319 = arith.constant 4 : index
    %167 = vector.load %arg5[%c48_318, %c4_319] : memref<64x36xbf16, #tpu.memory_space<vmem>>, vector<8x4xbf16>
    tpu.vector_store %arg5[%c48_318, %c4_319], %166 {strides = array<i32>} : memref<64x36xbf16, #tpu.memory_space<vmem>>, vector<8x4xbf16>,
    %c0_320 = arith.constant 0 : index
    %c6_321 = arith.constant 6 : index
    %c1_322 = arith.constant 1 : index
    %c0_323 = arith.constant 0 : index
    %168 = vector.load %arg1[%c0_320, %c6_321, %c1_322, %c0_323] : memref<1x9x9x16xbf16, #tpu.memory_space<vmem>>, vector<1x1x8x4xbf16>
    %169 = vector.shape_cast %168 : vector<1x1x8x4xbf16> to vector<8x4xbf16>
    %c48_324 = arith.constant 48 : index
    %c8_325 = arith.constant 8 : index
    %170 = vector.load %arg5[%c48_324, %c8_325] : memref<64x36xbf16, #tpu.memory_space<vmem>>, vector<8x4xbf16>
    tpu.vector_store %arg5[%c48_324, %c8_325], %169 {strides = array<i32>} : memref<64x36xbf16, #tpu.memory_space<vmem>>, vector<8x4xbf16>,
    %c0_326 = arith.constant 0 : index
    %c6_327 = arith.constant 6 : index
    %c0_328 = arith.constant 0 : index
    %c8_329 = arith.constant 8 : index
    %171 = vector.load %arg1[%c0_326, %c6_327, %c0_328, %c8_329] : memref<1x9x9x16xbf16, #tpu.memory_space<vmem>>, vector<1x1x8x4xbf16>
    %172 = vector.shape_cast %171 : vector<1x1x8x4xbf16> to vector<8x4xbf16>
    %c48_330 = arith.constant 48 : index
    %c12_331 = arith.constant 12 : index
    %173 = vector.load %arg5[%c48_330, %c12_331] : memref<64x36xbf16, #tpu.memory_space<vmem>>, vector<8x4xbf16>
    tpu.vector_store %arg5[%c48_330, %c12_331], %172 {strides = array<i32>} : memref<64x36xbf16, #tpu.memory_space<vmem>>, vector<8x4xbf16>,
    %c0_332 = arith.constant 0 : index
    %c6_333 = arith.constant 6 : index
    %c0_334 = arith.constant 0 : index
    %c12_335 = arith.constant 12 : index
    %174 = vector.load %arg1[%c0_332, %c6_333, %c0_334, %c12_335] : memref<1x9x9x16xbf16, #tpu.memory_space<vmem>>, vector<1x1x8x4xbf16>
    %175 = vector.shape_cast %174 : vector<1x1x8x4xbf16> to vector<8x4xbf16>
    %c48_336 = arith.constant 48 : index
    %c16_337 = arith.constant 16 : index
    %176 = vector.load %arg5[%c48_336, %c16_337] : memref<64x36xbf16, #tpu.memory_space<vmem>>, vector<8x4xbf16>
    tpu.vector_store %arg5[%c48_336, %c16_337], %175 {strides = array<i32>} : memref<64x36xbf16, #tpu.memory_space<vmem>>, vector<8x4xbf16>,
    %c0_338 = arith.constant 0 : index
    %c6_339 = arith.constant 6 : index
    %c1_340 = arith.constant 1 : index
    %c8_341 = arith.constant 8 : index
    %177 = vector.load %arg1[%c0_338, %c6_339, %c1_340, %c8_341] : memref<1x9x9x16xbf16, #tpu.memory_space<vmem>>, vector<1x1x8x4xbf16>
    %178 = vector.shape_cast %177 : vector<1x1x8x4xbf16> to vector<8x4xbf16>
    %c48_342 = arith.constant 48 : index
    %c20_343 = arith.constant 20 : index
    %179 = vector.load %arg5[%c48_342, %c20_343] : memref<64x36xbf16, #tpu.memory_space<vmem>>, vector<8x4xbf16>
    tpu.vector_store %arg5[%c48_342, %c20_343], %178 {strides = array<i32>} : memref<64x36xbf16, #tpu.memory_space<vmem>>, vector<8x4xbf16>,
    %c0_344 = arith.constant 0 : index
    %c7 = arith.constant 7 : index
    %c0_345 = arith.constant 0 : index
    %c0_346 = arith.constant 0 : index
    %180 = vector.load %arg1[%c0_344, %c7, %c0_345, %c0_346] : memref<1x9x9x16xbf16, #tpu.memory_space<vmem>>, vector<1x1x8x4xbf16>
    %181 = vector.shape_cast %180 : vector<1x1x8x4xbf16> to vector<8x4xbf16>
    %c48_347 = arith.constant 48 : index
    %c24_348 = arith.constant 24 : index
    %182 = vector.load %arg5[%c48_347, %c24_348] : memref<64x36xbf16, #tpu.memory_space<vmem>>, vector<8x4xbf16>
    tpu.vector_store %arg5[%c48_347, %c24_348], %181 {strides = array<i32>} : memref<64x36xbf16, #tpu.memory_space<vmem>>, vector<8x4xbf16>,
    %c0_349 = arith.constant 0 : index
    %c7_350 = arith.constant 7 : index
    %c0_351 = arith.constant 0 : index
    %c4_352 = arith.constant 4 : index
    %183 = vector.load %arg1[%c0_349, %c7_350, %c0_351, %c4_352] : memref<1x9x9x16xbf16, #tpu.memory_space<vmem>>, vector<1x1x8x4xbf16>
    %184 = vector.shape_cast %183 : vector<1x1x8x4xbf16> to vector<8x4xbf16>
    %c48_353 = arith.constant 48 : index
    %c28_354 = arith.constant 28 : index
    %185 = vector.load %arg5[%c48_353, %c28_354] : memref<64x36xbf16, #tpu.memory_space<vmem>>, vector<8x4xbf16>
    tpu.vector_store %arg5[%c48_353, %c28_354], %184 {strides = array<i32>} : memref<64x36xbf16, #tpu.memory_space<vmem>>, vector<8x4xbf16>,
    %c0_355 = arith.constant 0 : index
    %c7_356 = arith.constant 7 : index
    %c1_357 = arith.constant 1 : index
    %c0_358 = arith.constant 0 : index
    %186 = vector.load %arg1[%c0_355, %c7_356, %c1_357, %c0_358] : memref<1x9x9x16xbf16, #tpu.memory_space<vmem>>, vector<1x1x8x4xbf16>
    %187 = vector.shape_cast %186 : vector<1x1x8x4xbf16> to vector<8x4xbf16>
    %c48_359 = arith.constant 48 : index
    %c32_360 = arith.constant 32 : index
    %188 = vector.load %arg5[%c48_359, %c32_360] : memref<64x36xbf16, #tpu.memory_space<vmem>>, vector<8x4xbf16>
    tpu.vector_store %arg5[%c48_359, %c32_360], %187 {strides = array<i32>} : memref<64x36xbf16, #tpu.memory_space<vmem>>, vector<8x4xbf16>,
    %c0_361 = arith.constant 0 : index
    %c7_362 = arith.constant 7 : index
    %c0_363 = arith.constant 0 : index
    %c0_364 = arith.constant 0 : index
    %189 = vector.load %arg1[%c0_361, %c7_362, %c0_363, %c0_364] : memref<1x9x9x16xbf16, #tpu.memory_space<vmem>>, vector<1x1x8x4xbf16>
    %190 = vector.shape_cast %189 : vector<1x1x8x4xbf16> to vector<8x4xbf16>
    %c56 = arith.constant 56 : index
    %c0_365 = arith.constant 0 : index
    %191 = vector.load %arg5[%c56, %c0_365] : memref<64x36xbf16, #tpu.memory_space<vmem>>, vector<8x4xbf16>
    tpu.vector_store %arg5[%c56, %c0_365], %190 {strides = array<i32>} : memref<64x36xbf16, #tpu.memory_space<vmem>>, vector<8x4xbf16>,
    %c0_366 = arith.constant 0 : index
    %c7_367 = arith.constant 7 : index
    %c0_368 = arith.constant 0 : index
    %c4_369 = arith.constant 4 : index
    %192 = vector.load %arg1[%c0_366, %c7_367, %c0_368, %c4_369] : memref<1x9x9x16xbf16, #tpu.memory_space<vmem>>, vector<1x1x8x4xbf16>
    %193 = vector.shape_cast %192 : vector<1x1x8x4xbf16> to vector<8x4xbf16>
    %c56_370 = arith.constant 56 : index
    %c4_371 = arith.constant 4 : index
    %194 = vector.load %arg5[%c56_370, %c4_371] : memref<64x36xbf16, #tpu.memory_space<vmem>>, vector<8x4xbf16>
    tpu.vector_store %arg5[%c56_370, %c4_371], %193 {strides = array<i32>} : memref<64x36xbf16, #tpu.memory_space<vmem>>, vector<8x4xbf16>,
    %c0_372 = arith.constant 0 : index
    %c7_373 = arith.constant 7 : index
    %c1_374 = arith.constant 1 : index
    %c0_375 = arith.constant 0 : index
    %195 = vector.load %arg1[%c0_372, %c7_373, %c1_374, %c0_375] : memref<1x9x9x16xbf16, #tpu.memory_space<vmem>>, vector<1x1x8x4xbf16>
    %196 = vector.shape_cast %195 : vector<1x1x8x4xbf16> to vector<8x4xbf16>
    %c56_376 = arith.constant 56 : index
    %c8_377 = arith.constant 8 : index
    %197 = vector.load %arg5[%c56_376, %c8_377] : memref<64x36xbf16, #tpu.memory_space<vmem>>, vector<8x4xbf16>
    tpu.vector_store %arg5[%c56_376, %c8_377], %196 {strides = array<i32>} : memref<64x36xbf16, #tpu.memory_space<vmem>>, vector<8x4xbf16>,
    %c0_378 = arith.constant 0 : index
    %c7_379 = arith.constant 7 : index
    %c0_380 = arith.constant 0 : index
    %c8_381 = arith.constant 8 : index
    %198 = vector.load %arg1[%c0_378, %c7_379, %c0_380, %c8_381] : memref<1x9x9x16xbf16, #tpu.memory_space<vmem>>, vector<1x1x8x4xbf16>
    %199 = vector.shape_cast %198 : vector<1x1x8x4xbf16> to vector<8x4xbf16>
    %c56_382 = arith.constant 56 : index
    %c12_383 = arith.constant 12 : index
    %200 = vector.load %arg5[%c56_382, %c12_383] : memref<64x36xbf16, #tpu.memory_space<vmem>>, vector<8x4xbf16>
    tpu.vector_store %arg5[%c56_382, %c12_383], %199 {strides = array<i32>} : memref<64x36xbf16, #tpu.memory_space<vmem>>, vector<8x4xbf16>,
    %c0_384 = arith.constant 0 : index
    %c7_385 = arith.constant 7 : index
    %c0_386 = arith.constant 0 : index
    %c12_387 = arith.constant 12 : index
    %201 = vector.load %arg1[%c0_384, %c7_385, %c0_386, %c12_387] : memref<1x9x9x16xbf16, #tpu.memory_space<vmem>>, vector<1x1x8x4xbf16>
    %202 = vector.shape_cast %201 : vector<1x1x8x4xbf16> to vector<8x4xbf16>
    %c56_388 = arith.constant 56 : index
    %c16_389 = arith.constant 16 : index
    %203 = vector.load %arg5[%c56_388, %c16_389] : memref<64x36xbf16, #tpu.memory_space<vmem>>, vector<8x4xbf16>
    tpu.vector_store %arg5[%c56_388, %c16_389], %202 {strides = array<i32>} : memref<64x36xbf16, #tpu.memory_space<vmem>>, vector<8x4xbf16>,
    %c0_390 = arith.constant 0 : index
    %c7_391 = arith.constant 7 : index
    %c1_392 = arith.constant 1 : index
    %c8_393 = arith.constant 8 : index
    %204 = vector.load %arg1[%c0_390, %c7_391, %c1_392, %c8_393] : memref<1x9x9x16xbf16, #tpu.memory_space<vmem>>, vector<1x1x8x4xbf16>
    %205 = vector.shape_cast %204 : vector<1x1x8x4xbf16> to vector<8x4xbf16>
    %c56_394 = arith.constant 56 : index
    %c20_395 = arith.constant 20 : index
    %206 = vector.load %arg5[%c56_394, %c20_395] : memref<64x36xbf16, #tpu.memory_space<vmem>>, vector<8x4xbf16>
    tpu.vector_store %arg5[%c56_394, %c20_395], %205 {strides = array<i32>} : memref<64x36xbf16, #tpu.memory_space<vmem>>, vector<8x4xbf16>,
    %c0_396 = arith.constant 0 : index
    %c8_397 = arith.constant 8 : index
    %c0_398 = arith.constant 0 : index
    %c0_399 = arith.constant 0 : index
    %207 = vector.load %arg1[%c0_396, %c8_397, %c0_398, %c0_399] : memref<1x9x9x16xbf16, #tpu.memory_space<vmem>>, vector<1x1x8x4xbf16>
    %208 = vector.shape_cast %207 : vector<1x1x8x4xbf16> to vector<8x4xbf16>
    %c56_400 = arith.constant 56 : index
    %c24_401 = arith.constant 24 : index
    %209 = vector.load %arg5[%c56_400, %c24_401] : memref<64x36xbf16, #tpu.memory_space<vmem>>, vector<8x4xbf16>
    tpu.vector_store %arg5[%c56_400, %c24_401], %208 {strides = array<i32>} : memref<64x36xbf16, #tpu.memory_space<vmem>>, vector<8x4xbf16>,
    %c0_402 = arith.constant 0 : index
    %c8_403 = arith.constant 8 : index
    %c0_404 = arith.constant 0 : index
    %c4_405 = arith.constant 4 : index
    %210 = vector.load %arg1[%c0_402, %c8_403, %c0_404, %c4_405] : memref<1x9x9x16xbf16, #tpu.memory_space<vmem>>, vector<1x1x8x4xbf16>
    %211 = vector.shape_cast %210 : vector<1x1x8x4xbf16> to vector<8x4xbf16>
    %c56_406 = arith.constant 56 : index
    %c28_407 = arith.constant 28 : index
    %212 = vector.load %arg5[%c56_406, %c28_407] : memref<64x36xbf16, #tpu.memory_space<vmem>>, vector<8x4xbf16>
    tpu.vector_store %arg5[%c56_406, %c28_407], %211 {strides = array<i32>} : memref<64x36xbf16, #tpu.memory_space<vmem>>, vector<8x4xbf16>,
    %c0_408 = arith.constant 0 : index
    %c8_409 = arith.constant 8 : index
    %c1_410 = arith.constant 1 : index
    %c0_411 = arith.constant 0 : index
    %213 = vector.load %arg1[%c0_408, %c8_409, %c1_410, %c0_411] : memref<1x9x9x16xbf16, #tpu.memory_space<vmem>>, vector<1x1x8x4xbf16>
    %214 = vector.shape_cast %213 : vector<1x1x8x4xbf16> to vector<8x4xbf16>
    %c56_412 = arith.constant 56 : index
    %c32_413 = arith.constant 32 : index
    %215 = vector.load %arg5[%c56_412, %c32_413] : memref<64x36xbf16, #tpu.memory_space<vmem>>, vector<8x4xbf16>
    tpu.vector_store %arg5[%c56_412, %c32_413], %214 {strides = array<i32>} : memref<64x36xbf16, #tpu.memory_space<vmem>>, vector<8x4xbf16>,
    %c0_414 = arith.constant 0 : index
    %c0_415 = arith.constant 0 : index
    %216 = vector.load %arg5[%c0_414, %c0_415] : memref<64x36xbf16, #tpu.memory_space<vmem>>, vector<64x36xbf16>
    %c0_416 = arith.constant 0 : index
    %c0_417 = arith.constant 0 : index
    %217 = vector.load %arg2[%c0_416, %c0_417] : memref<36x16xbf16, #tpu.memory_space<vmem>>, vector<36x16xbf16>
    %cst = arith.constant dense<0.000000e+00> : vector<64x16xf32>
    %218 = tpu.matmul %216, %217, %cst {dimension_numbers = #tpu.dot_dimension_numbers<[1], [0], [0], [1], [0, 0, 1, 1], [], []>} : vector<64x36xbf16>, vector<36x16xbf16>, vector<64x16xf32> -> vector<64x16xf32>
    %c0_418 = arith.constant 0 : index
    %c0_419 = arith.constant 0 : index
    %219 = vector.load %arg3[%c0_418, %c0_419] : memref<1x16xf32, #tpu.memory_space<vmem>>, vector<1x16xf32>
    %220 = vector.broadcast %219 : vector<1x16xf32> to vector<64x16xf32>
    %221 = arith.addf %218, %220 : vector<64x16xf32>
    %cst_420 = arith.constant 0.000000e+00 : f32
    %222 = vector.broadcast %cst_420 : f32 to vector<64x16xf32>
    %223 = arith.maximumf %221, %222 : vector<64x16xf32>
    %224 = arith.truncf %223 : vector<64x16xf32> to vector<64x16xbf16>
    %c0_421 = arith.constant 0 : index
    %c0_422 = arith.constant 0 : index
    %c0_423 = arith.constant 0 : index
    %225 = vector.load %arg4[%c0_421, %c0_422, %c0_423] : memref<1x64x16xbf16, #tpu.memory_space<vmem>>, vector<1x64x16xbf16>
    %226 = vector.shape_cast %225 : vector<1x64x16xbf16> to vector<64x16xbf16>
    %227 = vector.shape_cast %224 : vector<64x16xbf16> to vector<1x64x16xbf16>
    tpu.vector_store %arg4[%c0_421, %c0_422, %c0_423], %227 {strides = array<i32>} : memref<1x64x16xbf16, #tpu.memory_space<vmem>>, vector<1x64x16xbf16>,
    return
  }
  func.func @transform_0(%arg0: i32) -> (i32, i32, i32, i32) {
    %c0_i32 = arith.constant 0 : i32
    %c0_i32_0 = arith.constant 0 : i32
    %c0_i32_1 = arith.constant 0 : i32
    %c0_i32_2 = arith.constant 0 : i32
    return %arg0, %c0_i32, %c0_i32_0, %c0_i32_1 : i32, i32, i32, i32
  }
  func.func @transform_1(%arg0: i32) -> (i32, i32) {
    %c0_i32 = arith.constant 0 : i32
    %c0_i32_0 = arith.constant 0 : i32
    %c0_i32_1 = arith.constant 0 : i32
    return %c0_i32, %c0_i32_0 : i32, i32
  }
  func.func @transform_2(%arg0: i32) -> (i32, i32) {
    %c0_i32 = arith.constant 0 : i32
    %c0_i32_0 = arith.constant 0 : i32
    %c0_i32_1 = arith.constant 0 : i32
    return %c0_i32, %c0_i32_0 : i32, i32
  }
  func.func @transform_3(%arg0: i32) -> (i32, i32, i32) {
    %c0_i32 = arith.constant 0 : i32
    %c0_i32_0 = arith.constant 0 : i32
    %c0_i32_1 = arith.constant 0 : i32
    return %arg0, %c0_i32, %c0_i32_0 : i32, i32, i32
  }
}

module attributes {stable_mosaic.version = 11 : i64} {
  func.func @_conv_block_kernel(%arg0: i32, %arg1: memref<1x5x5x64xbf16, #tpu.memory_space<vmem>>, %arg2: memref<144x32xbf16, #tpu.memory_space<vmem>>, %arg3: memref<1x32xf32, #tpu.memory_space<vmem>>, %arg4: memref<1x16x32xbf16, #tpu.memory_space<vmem>>, %arg5: memref<16x144xbf16, #tpu.memory_space<vmem>>) attributes {dimension_semantics = [#tpu.dimension_semantics<parallel>], iteration_bounds = array<i64: 2>, scalar_prefetch = 0 : i64, scratch_operands = 1 : i64, tpu.core_type = #tpu.core_type<tc>, window_params = [{transform_indices = @transform_0, window_bounds = array<i64: 1, 5, 5, 64>}, {pipeline_mode = #tpu.pipeline_mode<synchronous>, transform_indices = @transform_1, window_bounds = array<i64: 144, 32>}, {pipeline_mode = #tpu.pipeline_mode<synchronous>, transform_indices = @transform_2, window_bounds = array<i64: 1, 32>}, {transform_indices = @transform_3, window_bounds = array<i64: 1, 16, 32>}]} {
    %c0 = arith.constant 0 : index
    %c0_0 = arith.constant 0 : index
    %c0_1 = arith.constant 0 : index
    %c0_2 = arith.constant 0 : index
    %0 = vector.load %arg1[%c0, %c0_0, %c0_1, %c0_2] : memref<1x5x5x64xbf16, #tpu.memory_space<vmem>>, vector<1x1x4x16xbf16>
    %1 = vector.shape_cast %0 : vector<1x1x4x16xbf16> to vector<4x16xbf16>
    %c0_3 = arith.constant 0 : index
    %c0_4 = arith.constant 0 : index
    %2 = vector.load %arg5[%c0_3, %c0_4] : memref<16x144xbf16, #tpu.memory_space<vmem>>, vector<4x16xbf16>
    tpu.vector_store %arg5[%c0_3, %c0_4], %1 {strides = array<i32>} : memref<16x144xbf16, #tpu.memory_space<vmem>>, vector<4x16xbf16>,
    %c0_5 = arith.constant 0 : index
    %c0_6 = arith.constant 0 : index
    %c0_7 = arith.constant 0 : index
    %c16 = arith.constant 16 : index
    %3 = vector.load %arg1[%c0_5, %c0_6, %c0_7, %c16] : memref<1x5x5x64xbf16, #tpu.memory_space<vmem>>, vector<1x1x4x16xbf16>
    %4 = vector.shape_cast %3 : vector<1x1x4x16xbf16> to vector<4x16xbf16>
    %c0_8 = arith.constant 0 : index
    %c16_9 = arith.constant 16 : index
    %5 = vector.load %arg5[%c0_8, %c16_9] : memref<16x144xbf16, #tpu.memory_space<vmem>>, vector<4x16xbf16>
    tpu.vector_store %arg5[%c0_8, %c16_9], %4 {strides = array<i32>} : memref<16x144xbf16, #tpu.memory_space<vmem>>, vector<4x16xbf16>,
    %c0_10 = arith.constant 0 : index
    %c0_11 = arith.constant 0 : index
    %c1 = arith.constant 1 : index
    %c0_12 = arith.constant 0 : index
    %6 = vector.load %arg1[%c0_10, %c0_11, %c1, %c0_12] : memref<1x5x5x64xbf16, #tpu.memory_space<vmem>>, vector<1x1x4x16xbf16>
    %7 = vector.shape_cast %6 : vector<1x1x4x16xbf16> to vector<4x16xbf16>
    %c0_13 = arith.constant 0 : index
    %c32 = arith.constant 32 : index
    %8 = vector.load %arg5[%c0_13, %c32] : memref<16x144xbf16, #tpu.memory_space<vmem>>, vector<4x16xbf16>
    tpu.vector_store %arg5[%c0_13, %c32], %7 {strides = array<i32>} : memref<16x144xbf16, #tpu.memory_space<vmem>>, vector<4x16xbf16>,
    %c0_14 = arith.constant 0 : index
    %c0_15 = arith.constant 0 : index
    %c0_16 = arith.constant 0 : index
    %c32_17 = arith.constant 32 : index
    %9 = vector.load %arg1[%c0_14, %c0_15, %c0_16, %c32_17] : memref<1x5x5x64xbf16, #tpu.memory_space<vmem>>, vector<1x1x4x16xbf16>
    %10 = vector.shape_cast %9 : vector<1x1x4x16xbf16> to vector<4x16xbf16>
    %c0_18 = arith.constant 0 : index
    %c48 = arith.constant 48 : index
    %11 = vector.load %arg5[%c0_18, %c48] : memref<16x144xbf16, #tpu.memory_space<vmem>>, vector<4x16xbf16>
    tpu.vector_store %arg5[%c0_18, %c48], %10 {strides = array<i32>} : memref<16x144xbf16, #tpu.memory_space<vmem>>, vector<4x16xbf16>,
    %c0_19 = arith.constant 0 : index
    %c0_20 = arith.constant 0 : index
    %c0_21 = arith.constant 0 : index
    %c48_22 = arith.constant 48 : index
    %12 = vector.load %arg1[%c0_19, %c0_20, %c0_21, %c48_22] : memref<1x5x5x64xbf16, #tpu.memory_space<vmem>>, vector<1x1x4x16xbf16>
    %13 = vector.shape_cast %12 : vector<1x1x4x16xbf16> to vector<4x16xbf16>
    %c0_23 = arith.constant 0 : index
    %c64 = arith.constant 64 : index
    %14 = vector.load %arg5[%c0_23, %c64] : memref<16x144xbf16, #tpu.memory_space<vmem>>, vector<4x16xbf16>
    tpu.vector_store %arg5[%c0_23, %c64], %13 {strides = array<i32>} : memref<16x144xbf16, #tpu.memory_space<vmem>>, vector<4x16xbf16>,
    %c0_24 = arith.constant 0 : index
    %c0_25 = arith.constant 0 : index
    %c1_26 = arith.constant 1 : index
    %c32_27 = arith.constant 32 : index
    %15 = vector.load %arg1[%c0_24, %c0_25, %c1_26, %c32_27] : memref<1x5x5x64xbf16, #tpu.memory_space<vmem>>, vector<1x1x4x16xbf16>
    %16 = vector.shape_cast %15 : vector<1x1x4x16xbf16> to vector<4x16xbf16>
    %c0_28 = arith.constant 0 : index
    %c80 = arith.constant 80 : index
    %17 = vector.load %arg5[%c0_28, %c80] : memref<16x144xbf16, #tpu.memory_space<vmem>>, vector<4x16xbf16>
    tpu.vector_store %arg5[%c0_28, %c80], %16 {strides = array<i32>} : memref<16x144xbf16, #tpu.memory_space<vmem>>, vector<4x16xbf16>,
    %c0_29 = arith.constant 0 : index
    %c1_30 = arith.constant 1 : index
    %c0_31 = arith.constant 0 : index
    %c0_32 = arith.constant 0 : index
    %18 = vector.load %arg1[%c0_29, %c1_30, %c0_31, %c0_32] : memref<1x5x5x64xbf16, #tpu.memory_space<vmem>>, vector<1x1x4x16xbf16>
    %19 = vector.shape_cast %18 : vector<1x1x4x16xbf16> to vector<4x16xbf16>
    %c0_33 = arith.constant 0 : index
    %c96 = arith.constant 96 : index
    %20 = vector.load %arg5[%c0_33, %c96] : memref<16x144xbf16, #tpu.memory_space<vmem>>, vector<4x16xbf16>
    tpu.vector_store %arg5[%c0_33, %c96], %19 {strides = array<i32>} : memref<16x144xbf16, #tpu.memory_space<vmem>>, vector<4x16xbf16>,
    %c0_34 = arith.constant 0 : index
    %c1_35 = arith.constant 1 : index
    %c0_36 = arith.constant 0 : index
    %c16_37 = arith.constant 16 : index
    %21 = vector.load %arg1[%c0_34, %c1_35, %c0_36, %c16_37] : memref<1x5x5x64xbf16, #tpu.memory_space<vmem>>, vector<1x1x4x16xbf16>
    %22 = vector.shape_cast %21 : vector<1x1x4x16xbf16> to vector<4x16xbf16>
    %c0_38 = arith.constant 0 : index
    %c112 = arith.constant 112 : index
    %23 = vector.load %arg5[%c0_38, %c112] : memref<16x144xbf16, #tpu.memory_space<vmem>>, vector<4x16xbf16>
    tpu.vector_store %arg5[%c0_38, %c112], %22 {strides = array<i32>} : memref<16x144xbf16, #tpu.memory_space<vmem>>, vector<4x16xbf16>,
    %c0_39 = arith.constant 0 : index
    %c1_40 = arith.constant 1 : index
    %c1_41 = arith.constant 1 : index
    %c0_42 = arith.constant 0 : index
    %24 = vector.load %arg1[%c0_39, %c1_40, %c1_41, %c0_42] : memref<1x5x5x64xbf16, #tpu.memory_space<vmem>>, vector<1x1x4x16xbf16>
    %25 = vector.shape_cast %24 : vector<1x1x4x16xbf16> to vector<4x16xbf16>
    %c0_43 = arith.constant 0 : index
    %c128 = arith.constant 128 : index
    %26 = vector.load %arg5[%c0_43, %c128] : memref<16x144xbf16, #tpu.memory_space<vmem>>, vector<4x16xbf16>
    tpu.vector_store %arg5[%c0_43, %c128], %25 {strides = array<i32>} : memref<16x144xbf16, #tpu.memory_space<vmem>>, vector<4x16xbf16>,
    %c0_44 = arith.constant 0 : index
    %c1_45 = arith.constant 1 : index
    %c0_46 = arith.constant 0 : index
    %c0_47 = arith.constant 0 : index
    %27 = vector.load %arg1[%c0_44, %c1_45, %c0_46, %c0_47] : memref<1x5x5x64xbf16, #tpu.memory_space<vmem>>, vector<1x1x4x16xbf16>
    %28 = vector.shape_cast %27 : vector<1x1x4x16xbf16> to vector<4x16xbf16>
    %c4 = arith.constant 4 : index
    %c0_48 = arith.constant 0 : index
    %29 = vector.load %arg5[%c4, %c0_48] : memref<16x144xbf16, #tpu.memory_space<vmem>>, vector<4x16xbf16>
    tpu.vector_store %arg5[%c4, %c0_48], %28 {strides = array<i32>} : memref<16x144xbf16, #tpu.memory_space<vmem>>, vector<4x16xbf16>,
    %c0_49 = arith.constant 0 : index
    %c1_50 = arith.constant 1 : index
    %c0_51 = arith.constant 0 : index
    %c16_52 = arith.constant 16 : index
    %30 = vector.load %arg1[%c0_49, %c1_50, %c0_51, %c16_52] : memref<1x5x5x64xbf16, #tpu.memory_space<vmem>>, vector<1x1x4x16xbf16>
    %31 = vector.shape_cast %30 : vector<1x1x4x16xbf16> to vector<4x16xbf16>
    %c4_53 = arith.constant 4 : index
    %c16_54 = arith.constant 16 : index
    %32 = vector.load %arg5[%c4_53, %c16_54] : memref<16x144xbf16, #tpu.memory_space<vmem>>, vector<4x16xbf16>
    tpu.vector_store %arg5[%c4_53, %c16_54], %31 {strides = array<i32>} : memref<16x144xbf16, #tpu.memory_space<vmem>>, vector<4x16xbf16>,
    %c0_55 = arith.constant 0 : index
    %c1_56 = arith.constant 1 : index
    %c1_57 = arith.constant 1 : index
    %c0_58 = arith.constant 0 : index
    %33 = vector.load %arg1[%c0_55, %c1_56, %c1_57, %c0_58] : memref<1x5x5x64xbf16, #tpu.memory_space<vmem>>, vector<1x1x4x16xbf16>
    %34 = vector.shape_cast %33 : vector<1x1x4x16xbf16> to vector<4x16xbf16>
    %c4_59 = arith.constant 4 : index
    %c32_60 = arith.constant 32 : index
    %35 = vector.load %arg5[%c4_59, %c32_60] : memref<16x144xbf16, #tpu.memory_space<vmem>>, vector<4x16xbf16>
    tpu.vector_store %arg5[%c4_59, %c32_60], %34 {strides = array<i32>} : memref<16x144xbf16, #tpu.memory_space<vmem>>, vector<4x16xbf16>,
    %c0_61 = arith.constant 0 : index
    %c1_62 = arith.constant 1 : index
    %c0_63 = arith.constant 0 : index
    %c32_64 = arith.constant 32 : index
    %36 = vector.load %arg1[%c0_61, %c1_62, %c0_63, %c32_64] : memref<1x5x5x64xbf16, #tpu.memory_space<vmem>>, vector<1x1x4x16xbf16>
    %37 = vector.shape_cast %36 : vector<1x1x4x16xbf16> to vector<4x16xbf16>
    %c4_65 = arith.constant 4 : index
    %c48_66 = arith.constant 48 : index
    %38 = vector.load %arg5[%c4_65, %c48_66] : memref<16x144xbf16, #tpu.memory_space<vmem>>, vector<4x16xbf16>
    tpu.vector_store %arg5[%c4_65, %c48_66], %37 {strides = array<i32>} : memref<16x144xbf16, #tpu.memory_space<vmem>>, vector<4x16xbf16>,
    %c0_67 = arith.constant 0 : index
    %c1_68 = arith.constant 1 : index
    %c0_69 = arith.constant 0 : index
    %c48_70 = arith.constant 48 : index
    %39 = vector.load %arg1[%c0_67, %c1_68, %c0_69, %c48_70] : memref<1x5x5x64xbf16, #tpu.memory_space<vmem>>, vector<1x1x4x16xbf16>
    %40 = vector.shape_cast %39 : vector<1x1x4x16xbf16> to vector<4x16xbf16>
    %c4_71 = arith.constant 4 : index
    %c64_72 = arith.constant 64 : index
    %41 = vector.load %arg5[%c4_71, %c64_72] : memref<16x144xbf16, #tpu.memory_space<vmem>>, vector<4x16xbf16>
    tpu.vector_store %arg5[%c4_71, %c64_72], %40 {strides = array<i32>} : memref<16x144xbf16, #tpu.memory_space<vmem>>, vector<4x16xbf16>,
    %c0_73 = arith.constant 0 : index
    %c1_74 = arith.constant 1 : index
    %c1_75 = arith.constant 1 : index
    %c32_76 = arith.constant 32 : index
    %42 = vector.load %arg1[%c0_73, %c1_74, %c1_75, %c32_76] : memref<1x5x5x64xbf16, #tpu.memory_space<vmem>>, vector<1x1x4x16xbf16>
    %43 = vector.shape_cast %42 : vector<1x1x4x16xbf16> to vector<4x16xbf16>
    %c4_77 = arith.constant 4 : index
    %c80_78 = arith.constant 80 : index
    %44 = vector.load %arg5[%c4_77, %c80_78] : memref<16x144xbf16, #tpu.memory_space<vmem>>, vector<4x16xbf16>
    tpu.vector_store %arg5[%c4_77, %c80_78], %43 {strides = array<i32>} : memref<16x144xbf16, #tpu.memory_space<vmem>>, vector<4x16xbf16>,
    %c0_79 = arith.constant 0 : index
    %c2 = arith.constant 2 : index
    %c0_80 = arith.constant 0 : index
    %c0_81 = arith.constant 0 : index
    %45 = vector.load %arg1[%c0_79, %c2, %c0_80, %c0_81] : memref<1x5x5x64xbf16, #tpu.memory_space<vmem>>, vector<1x1x4x16xbf16>
    %46 = vector.shape_cast %45 : vector<1x1x4x16xbf16> to vector<4x16xbf16>
    %c4_82 = arith.constant 4 : index
    %c96_83 = arith.constant 96 : index
    %47 = vector.load %arg5[%c4_82, %c96_83] : memref<16x144xbf16, #tpu.memory_space<vmem>>, vector<4x16xbf16>
    tpu.vector_store %arg5[%c4_82, %c96_83], %46 {strides = array<i32>} : memref<16x144xbf16, #tpu.memory_space<vmem>>, vector<4x16xbf16>,
    %c0_84 = arith.constant 0 : index
    %c2_85 = arith.constant 2 : index
    %c0_86 = arith.constant 0 : index
    %c16_87 = arith.constant 16 : index
    %48 = vector.load %arg1[%c0_84, %c2_85, %c0_86, %c16_87] : memref<1x5x5x64xbf16, #tpu.memory_space<vmem>>, vector<1x1x4x16xbf16>
    %49 = vector.shape_cast %48 : vector<1x1x4x16xbf16> to vector<4x16xbf16>
    %c4_88 = arith.constant 4 : index
    %c112_89 = arith.constant 112 : index
    %50 = vector.load %arg5[%c4_88, %c112_89] : memref<16x144xbf16, #tpu.memory_space<vmem>>, vector<4x16xbf16>
    tpu.vector_store %arg5[%c4_88, %c112_89], %49 {strides = array<i32>} : memref<16x144xbf16, #tpu.memory_space<vmem>>, vector<4x16xbf16>,
    %c0_90 = arith.constant 0 : index
    %c2_91 = arith.constant 2 : index
    %c1_92 = arith.constant 1 : index
    %c0_93 = arith.constant 0 : index
    %51 = vector.load %arg1[%c0_90, %c2_91, %c1_92, %c0_93] : memref<1x5x5x64xbf16, #tpu.memory_space<vmem>>, vector<1x1x4x16xbf16>
    %52 = vector.shape_cast %51 : vector<1x1x4x16xbf16> to vector<4x16xbf16>
    %c4_94 = arith.constant 4 : index
    %c128_95 = arith.constant 128 : index
    %53 = vector.load %arg5[%c4_94, %c128_95] : memref<16x144xbf16, #tpu.memory_space<vmem>>, vector<4x16xbf16>
    tpu.vector_store %arg5[%c4_94, %c128_95], %52 {strides = array<i32>} : memref<16x144xbf16, #tpu.memory_space<vmem>>, vector<4x16xbf16>,
    %c0_96 = arith.constant 0 : index
    %c2_97 = arith.constant 2 : index
    %c0_98 = arith.constant 0 : index
    %c0_99 = arith.constant 0 : index
    %54 = vector.load %arg1[%c0_96, %c2_97, %c0_98, %c0_99] : memref<1x5x5x64xbf16, #tpu.memory_space<vmem>>, vector<1x1x4x16xbf16>
    %55 = vector.shape_cast %54 : vector<1x1x4x16xbf16> to vector<4x16xbf16>
    %c8 = arith.constant 8 : index
    %c0_100 = arith.constant 0 : index
    %56 = vector.load %arg5[%c8, %c0_100] : memref<16x144xbf16, #tpu.memory_space<vmem>>, vector<4x16xbf16>
    tpu.vector_store %arg5[%c8, %c0_100], %55 {strides = array<i32>} : memref<16x144xbf16, #tpu.memory_space<vmem>>, vector<4x16xbf16>,
    %c0_101 = arith.constant 0 : index
    %c2_102 = arith.constant 2 : index
    %c0_103 = arith.constant 0 : index
    %c16_104 = arith.constant 16 : index
    %57 = vector.load %arg1[%c0_101, %c2_102, %c0_103, %c16_104] : memref<1x5x5x64xbf16, #tpu.memory_space<vmem>>, vector<1x1x4x16xbf16>
    %58 = vector.shape_cast %57 : vector<1x1x4x16xbf16> to vector<4x16xbf16>
    %c8_105 = arith.constant 8 : index
    %c16_106 = arith.constant 16 : index
    %59 = vector.load %arg5[%c8_105, %c16_106] : memref<16x144xbf16, #tpu.memory_space<vmem>>, vector<4x16xbf16>
    tpu.vector_store %arg5[%c8_105, %c16_106], %58 {strides = array<i32>} : memref<16x144xbf16, #tpu.memory_space<vmem>>, vector<4x16xbf16>,
    %c0_107 = arith.constant 0 : index
    %c2_108 = arith.constant 2 : index
    %c1_109 = arith.constant 1 : index
    %c0_110 = arith.constant 0 : index
    %60 = vector.load %arg1[%c0_107, %c2_108, %c1_109, %c0_110] : memref<1x5x5x64xbf16, #tpu.memory_space<vmem>>, vector<1x1x4x16xbf16>
    %61 = vector.shape_cast %60 : vector<1x1x4x16xbf16> to vector<4x16xbf16>
    %c8_111 = arith.constant 8 : index
    %c32_112 = arith.constant 32 : index
    %62 = vector.load %arg5[%c8_111, %c32_112] : memref<16x144xbf16, #tpu.memory_space<vmem>>, vector<4x16xbf16>
    tpu.vector_store %arg5[%c8_111, %c32_112], %61 {strides = array<i32>} : memref<16x144xbf16, #tpu.memory_space<vmem>>, vector<4x16xbf16>,
    %c0_113 = arith.constant 0 : index
    %c2_114 = arith.constant 2 : index
    %c0_115 = arith.constant 0 : index
    %c32_116 = arith.constant 32 : index
    %63 = vector.load %arg1[%c0_113, %c2_114, %c0_115, %c32_116] : memref<1x5x5x64xbf16, #tpu.memory_space<vmem>>, vector<1x1x4x16xbf16>
    %64 = vector.shape_cast %63 : vector<1x1x4x16xbf16> to vector<4x16xbf16>
    %c8_117 = arith.constant 8 : index
    %c48_118 = arith.constant 48 : index
    %65 = vector.load %arg5[%c8_117, %c48_118] : memref<16x144xbf16, #tpu.memory_space<vmem>>, vector<4x16xbf16>
    tpu.vector_store %arg5[%c8_117, %c48_118], %64 {strides = array<i32>} : memref<16x144xbf16, #tpu.memory_space<vmem>>, vector<4x16xbf16>,
    %c0_119 = arith.constant 0 : index
    %c2_120 = arith.constant 2 : index
    %c0_121 = arith.constant 0 : index
    %c48_122 = arith.constant 48 : index
    %66 = vector.load %arg1[%c0_119, %c2_120, %c0_121, %c48_122] : memref<1x5x5x64xbf16, #tpu.memory_space<vmem>>, vector<1x1x4x16xbf16>
    %67 = vector.shape_cast %66 : vector<1x1x4x16xbf16> to vector<4x16xbf16>
    %c8_123 = arith.constant 8 : index
    %c64_124 = arith.constant 64 : index
    %68 = vector.load %arg5[%c8_123, %c64_124] : memref<16x144xbf16, #tpu.memory_space<vmem>>, vector<4x16xbf16>
    tpu.vector_store %arg5[%c8_123, %c64_124], %67 {strides = array<i32>} : memref<16x144xbf16, #tpu.memory_space<vmem>>, vector<4x16xbf16>,
    %c0_125 = arith.constant 0 : index
    %c2_126 = arith.constant 2 : index
    %c1_127 = arith.constant 1 : index
    %c32_128 = arith.constant 32 : index
    %69 = vector.load %arg1[%c0_125, %c2_126, %c1_127, %c32_128] : memref<1x5x5x64xbf16, #tpu.memory_space<vmem>>, vector<1x1x4x16xbf16>
    %70 = vector.shape_cast %69 : vector<1x1x4x16xbf16> to vector<4x16xbf16>
    %c8_129 = arith.constant 8 : index
    %c80_130 = arith.constant 80 : index
    %71 = vector.load %arg5[%c8_129, %c80_130] : memref<16x144xbf16, #tpu.memory_space<vmem>>, vector<4x16xbf16>
    tpu.vector_store %arg5[%c8_129, %c80_130], %70 {strides = array<i32>} : memref<16x144xbf16, #tpu.memory_space<vmem>>, vector<4x16xbf16>,
    %c0_131 = arith.constant 0 : index
    %c3 = arith.constant 3 : index
    %c0_132 = arith.constant 0 : index
    %c0_133 = arith.constant 0 : index
    %72 = vector.load %arg1[%c0_131, %c3, %c0_132, %c0_133] : memref<1x5x5x64xbf16, #tpu.memory_space<vmem>>, vector<1x1x4x16xbf16>
    %73 = vector.shape_cast %72 : vector<1x1x4x16xbf16> to vector<4x16xbf16>
    %c8_134 = arith.constant 8 : index
    %c96_135 = arith.constant 96 : index
    %74 = vector.load %arg5[%c8_134, %c96_135] : memref<16x144xbf16, #tpu.memory_space<vmem>>, vector<4x16xbf16>
    tpu.vector_store %arg5[%c8_134, %c96_135], %73 {strides = array<i32>} : memref<16x144xbf16, #tpu.memory_space<vmem>>, vector<4x16xbf16>,
    %c0_136 = arith.constant 0 : index
    %c3_137 = arith.constant 3 : index
    %c0_138 = arith.constant 0 : index
    %c16_139 = arith.constant 16 : index
    %75 = vector.load %arg1[%c0_136, %c3_137, %c0_138, %c16_139] : memref<1x5x5x64xbf16, #tpu.memory_space<vmem>>, vector<1x1x4x16xbf16>
    %76 = vector.shape_cast %75 : vector<1x1x4x16xbf16> to vector<4x16xbf16>
    %c8_140 = arith.constant 8 : index
    %c112_141 = arith.constant 112 : index
    %77 = vector.load %arg5[%c8_140, %c112_141] : memref<16x144xbf16, #tpu.memory_space<vmem>>, vector<4x16xbf16>
    tpu.vector_store %arg5[%c8_140, %c112_141], %76 {strides = array<i32>} : memref<16x144xbf16, #tpu.memory_space<vmem>>, vector<4x16xbf16>,
    %c0_142 = arith.constant 0 : index
    %c3_143 = arith.constant 3 : index
    %c1_144 = arith.constant 1 : index
    %c0_145 = arith.constant 0 : index
    %78 = vector.load %arg1[%c0_142, %c3_143, %c1_144, %c0_145] : memref<1x5x5x64xbf16, #tpu.memory_space<vmem>>, vector<1x1x4x16xbf16>
    %79 = vector.shape_cast %78 : vector<1x1x4x16xbf16> to vector<4x16xbf16>
    %c8_146 = arith.constant 8 : index
    %c128_147 = arith.constant 128 : index
    %80 = vector.load %arg5[%c8_146, %c128_147] : memref<16x144xbf16, #tpu.memory_space<vmem>>, vector<4x16xbf16>
    tpu.vector_store %arg5[%c8_146, %c128_147], %79 {strides = array<i32>} : memref<16x144xbf16, #tpu.memory_space<vmem>>, vector<4x16xbf16>,
    %c0_148 = arith.constant 0 : index
    %c3_149 = arith.constant 3 : index
    %c0_150 = arith.constant 0 : index
    %c0_151 = arith.constant 0 : index
    %81 = vector.load %arg1[%c0_148, %c3_149, %c0_150, %c0_151] : memref<1x5x5x64xbf16, #tpu.memory_space<vmem>>, vector<1x1x4x16xbf16>
    %82 = vector.shape_cast %81 : vector<1x1x4x16xbf16> to vector<4x16xbf16>
    %c12 = arith.constant 12 : index
    %c0_152 = arith.constant 0 : index
    %83 = vector.load %arg5[%c12, %c0_152] : memref<16x144xbf16, #tpu.memory_space<vmem>>, vector<4x16xbf16>
    tpu.vector_store %arg5[%c12, %c0_152], %82 {strides = array<i32>} : memref<16x144xbf16, #tpu.memory_space<vmem>>, vector<4x16xbf16>,
    %c0_153 = arith.constant 0 : index
    %c3_154 = arith.constant 3 : index
    %c0_155 = arith.constant 0 : index
    %c16_156 = arith.constant 16 : index
    %84 = vector.load %arg1[%c0_153, %c3_154, %c0_155, %c16_156] : memref<1x5x5x64xbf16, #tpu.memory_space<vmem>>, vector<1x1x4x16xbf16>
    %85 = vector.shape_cast %84 : vector<1x1x4x16xbf16> to vector<4x16xbf16>
    %c12_157 = arith.constant 12 : index
    %c16_158 = arith.constant 16 : index
    %86 = vector.load %arg5[%c12_157, %c16_158] : memref<16x144xbf16, #tpu.memory_space<vmem>>, vector<4x16xbf16>
    tpu.vector_store %arg5[%c12_157, %c16_158], %85 {strides = array<i32>} : memref<16x144xbf16, #tpu.memory_space<vmem>>, vector<4x16xbf16>,
    %c0_159 = arith.constant 0 : index
    %c3_160 = arith.constant 3 : index
    %c1_161 = arith.constant 1 : index
    %c0_162 = arith.constant 0 : index
    %87 = vector.load %arg1[%c0_159, %c3_160, %c1_161, %c0_162] : memref<1x5x5x64xbf16, #tpu.memory_space<vmem>>, vector<1x1x4x16xbf16>
    %88 = vector.shape_cast %87 : vector<1x1x4x16xbf16> to vector<4x16xbf16>
    %c12_163 = arith.constant 12 : index
    %c32_164 = arith.constant 32 : index
    %89 = vector.load %arg5[%c12_163, %c32_164] : memref<16x144xbf16, #tpu.memory_space<vmem>>, vector<4x16xbf16>
    tpu.vector_store %arg5[%c12_163, %c32_164], %88 {strides = array<i32>} : memref<16x144xbf16, #tpu.memory_space<vmem>>, vector<4x16xbf16>,
    %c0_165 = arith.constant 0 : index
    %c3_166 = arith.constant 3 : index
    %c0_167 = arith.constant 0 : index
    %c32_168 = arith.constant 32 : index
    %90 = vector.load %arg1[%c0_165, %c3_166, %c0_167, %c32_168] : memref<1x5x5x64xbf16, #tpu.memory_space<vmem>>, vector<1x1x4x16xbf16>
    %91 = vector.shape_cast %90 : vector<1x1x4x16xbf16> to vector<4x16xbf16>
    %c12_169 = arith.constant 12 : index
    %c48_170 = arith.constant 48 : index
    %92 = vector.load %arg5[%c12_169, %c48_170] : memref<16x144xbf16, #tpu.memory_space<vmem>>, vector<4x16xbf16>
    tpu.vector_store %arg5[%c12_169, %c48_170], %91 {strides = array<i32>} : memref<16x144xbf16, #tpu.memory_space<vmem>>, vector<4x16xbf16>,
    %c0_171 = arith.constant 0 : index
    %c3_172 = arith.constant 3 : index
    %c0_173 = arith.constant 0 : index
    %c48_174 = arith.constant 48 : index
    %93 = vector.load %arg1[%c0_171, %c3_172, %c0_173, %c48_174] : memref<1x5x5x64xbf16, #tpu.memory_space<vmem>>, vector<1x1x4x16xbf16>
    %94 = vector.shape_cast %93 : vector<1x1x4x16xbf16> to vector<4x16xbf16>
    %c12_175 = arith.constant 12 : index
    %c64_176 = arith.constant 64 : index
    %95 = vector.load %arg5[%c12_175, %c64_176] : memref<16x144xbf16, #tpu.memory_space<vmem>>, vector<4x16xbf16>
    tpu.vector_store %arg5[%c12_175, %c64_176], %94 {strides = array<i32>} : memref<16x144xbf16, #tpu.memory_space<vmem>>, vector<4x16xbf16>,
    %c0_177 = arith.constant 0 : index
    %c3_178 = arith.constant 3 : index
    %c1_179 = arith.constant 1 : index
    %c32_180 = arith.constant 32 : index
    %96 = vector.load %arg1[%c0_177, %c3_178, %c1_179, %c32_180] : memref<1x5x5x64xbf16, #tpu.memory_space<vmem>>, vector<1x1x4x16xbf16>
    %97 = vector.shape_cast %96 : vector<1x1x4x16xbf16> to vector<4x16xbf16>
    %c12_181 = arith.constant 12 : index
    %c80_182 = arith.constant 80 : index
    %98 = vector.load %arg5[%c12_181, %c80_182] : memref<16x144xbf16, #tpu.memory_space<vmem>>, vector<4x16xbf16>
    tpu.vector_store %arg5[%c12_181, %c80_182], %97 {strides = array<i32>} : memref<16x144xbf16, #tpu.memory_space<vmem>>, vector<4x16xbf16>,
    %c0_183 = arith.constant 0 : index
    %c4_184 = arith.constant 4 : index
    %c0_185 = arith.constant 0 : index
    %c0_186 = arith.constant 0 : index
    %99 = vector.load %arg1[%c0_183, %c4_184, %c0_185, %c0_186] : memref<1x5x5x64xbf16, #tpu.memory_space<vmem>>, vector<1x1x4x16xbf16>
    %100 = vector.shape_cast %99 : vector<1x1x4x16xbf16> to vector<4x16xbf16>
    %c12_187 = arith.constant 12 : index
    %c96_188 = arith.constant 96 : index
    %101 = vector.load %arg5[%c12_187, %c96_188] : memref<16x144xbf16, #tpu.memory_space<vmem>>, vector<4x16xbf16>
    tpu.vector_store %arg5[%c12_187, %c96_188], %100 {strides = array<i32>} : memref<16x144xbf16, #tpu.memory_space<vmem>>, vector<4x16xbf16>,
    %c0_189 = arith.constant 0 : index
    %c4_190 = arith.constant 4 : index
    %c0_191 = arith.constant 0 : index
    %c16_192 = arith.constant 16 : index
    %102 = vector.load %arg1[%c0_189, %c4_190, %c0_191, %c16_192] : memref<1x5x5x64xbf16, #tpu.memory_space<vmem>>, vector<1x1x4x16xbf16>
    %103 = vector.shape_cast %102 : vector<1x1x4x16xbf16> to vector<4x16xbf16>
    %c12_193 = arith.constant 12 : index
    %c112_194 = arith.constant 112 : index
    %104 = vector.load %arg5[%c12_193, %c112_194] : memref<16x144xbf16, #tpu.memory_space<vmem>>, vector<4x16xbf16>
    tpu.vector_store %arg5[%c12_193, %c112_194], %103 {strides = array<i32>} : memref<16x144xbf16, #tpu.memory_space<vmem>>, vector<4x16xbf16>,
    %c0_195 = arith.constant 0 : index
    %c4_196 = arith.constant 4 : index
    %c1_197 = arith.constant 1 : index
    %c0_198 = arith.constant 0 : index
    %105 = vector.load %arg1[%c0_195, %c4_196, %c1_197, %c0_198] : memref<1x5x5x64xbf16, #tpu.memory_space<vmem>>, vector<1x1x4x16xbf16>
    %106 = vector.shape_cast %105 : vector<1x1x4x16xbf16> to vector<4x16xbf16>
    %c12_199 = arith.constant 12 : index
    %c128_200 = arith.constant 128 : index
    %107 = vector.load %arg5[%c12_199, %c128_200] : memref<16x144xbf16, #tpu.memory_space<vmem>>, vector<4x16xbf16>
    tpu.vector_store %arg5[%c12_199, %c128_200], %106 {strides = array<i32>} : memref<16x144xbf16, #tpu.memory_space<vmem>>, vector<4x16xbf16>,
    %c0_201 = arith.constant 0 : index
    %c0_202 = arith.constant 0 : index
    %108 = vector.load %arg5[%c0_201, %c0_202] : memref<16x144xbf16, #tpu.memory_space<vmem>>, vector<16x144xbf16>
    %c0_203 = arith.constant 0 : index
    %c0_204 = arith.constant 0 : index
    %109 = vector.load %arg2[%c0_203, %c0_204] : memref<144x32xbf16, #tpu.memory_space<vmem>>, vector<144x32xbf16>
    %cst = arith.constant dense<0.000000e+00> : vector<16x32xf32>
    %110 = tpu.matmul %108, %109, %cst {dimension_numbers = #tpu.dot_dimension_numbers<[1], [0], [0], [1], [0, 0, 1, 1], [], []>} : vector<16x144xbf16>, vector<144x32xbf16>, vector<16x32xf32> -> vector<16x32xf32>
    %c0_205 = arith.constant 0 : index
    %c0_206 = arith.constant 0 : index
    %111 = vector.load %arg3[%c0_205, %c0_206] : memref<1x32xf32, #tpu.memory_space<vmem>>, vector<1x32xf32>
    %112 = vector.broadcast %111 : vector<1x32xf32> to vector<16x32xf32>
    %113 = arith.addf %110, %112 : vector<16x32xf32>
    %cst_207 = arith.constant 0.000000e+00 : f32
    %114 = vector.broadcast %cst_207 : f32 to vector<16x32xf32>
    %115 = arith.maximumf %113, %114 : vector<16x32xf32>
    %116 = arith.truncf %115 : vector<16x32xf32> to vector<16x32xbf16>
    %c0_208 = arith.constant 0 : index
    %c0_209 = arith.constant 0 : index
    %c0_210 = arith.constant 0 : index
    %117 = vector.load %arg4[%c0_208, %c0_209, %c0_210] : memref<1x16x32xbf16, #tpu.memory_space<vmem>>, vector<1x16x32xbf16>
    %118 = vector.shape_cast %117 : vector<1x16x32xbf16> to vector<16x32xbf16>
    %119 = vector.shape_cast %116 : vector<16x32xbf16> to vector<1x16x32xbf16>
    tpu.vector_store %arg4[%c0_208, %c0_209, %c0_210], %119 {strides = array<i32>} : memref<1x16x32xbf16, #tpu.memory_space<vmem>>, vector<1x16x32xbf16>,
    return
  }
  func.func @transform_0(%arg0: i32) -> (i32, i32, i32, i32) {
    %c0_i32 = arith.constant 0 : i32
    %c0_i32_0 = arith.constant 0 : i32
    %c0_i32_1 = arith.constant 0 : i32
    %c0_i32_2 = arith.constant 0 : i32
    return %arg0, %c0_i32, %c0_i32_0, %c0_i32_1 : i32, i32, i32, i32
  }
  func.func @transform_1(%arg0: i32) -> (i32, i32) {
    %c0_i32 = arith.constant 0 : i32
    %c0_i32_0 = arith.constant 0 : i32
    %c0_i32_1 = arith.constant 0 : i32
    return %c0_i32, %c0_i32_0 : i32, i32
  }
  func.func @transform_2(%arg0: i32) -> (i32, i32) {
    %c0_i32 = arith.constant 0 : i32
    %c0_i32_0 = arith.constant 0 : i32
    %c0_i32_1 = arith.constant 0 : i32
    return %c0_i32, %c0_i32_0 : i32, i32
  }
  func.func @transform_3(%arg0: i32) -> (i32, i32, i32) {
    %c0_i32 = arith.constant 0 : i32
    %c0_i32_0 = arith.constant 0 : i32
    %c0_i32_1 = arith.constant 0 : i32
    return %arg0, %c0_i32, %c0_i32_0 : i32, i32, i32
  }
}

module attributes {stable_mosaic.version = 11 : i64} {
  func.func @_conv_block_kernel(%arg0: i32, %arg1: memref<1x6x6x32xbf16, #tpu.memory_space<vmem>>, %arg2: memref<288x32xbf16, #tpu.memory_space<vmem>>, %arg3: memref<1x32xf32, #tpu.memory_space<vmem>>, %arg4: memref<1x16x32xf32, #tpu.memory_space<vmem>>, %arg5: memref<16x288xbf16, #tpu.memory_space<vmem>>) attributes {dimension_semantics = [#tpu.dimension_semantics<parallel>], iteration_bounds = array<i64: 2>, scalar_prefetch = 0 : i64, scratch_operands = 1 : i64, tpu.core_type = #tpu.core_type<tc>, window_params = [{transform_indices = @transform_0, window_bounds = array<i64: 1, 6, 6, 32>}, {pipeline_mode = #tpu.pipeline_mode<synchronous>, transform_indices = @transform_1, window_bounds = array<i64: 288, 32>}, {pipeline_mode = #tpu.pipeline_mode<synchronous>, transform_indices = @transform_2, window_bounds = array<i64: 1, 32>}, {transform_indices = @transform_3, window_bounds = array<i64: 1, 16, 32>}]} {
    %c0 = arith.constant 0 : index
    %c0_0 = arith.constant 0 : index
    %c0_1 = arith.constant 0 : index
    %c0_2 = arith.constant 0 : index
    %0 = vector.load %arg1[%c0, %c0_0, %c0_1, %c0_2] : memref<1x6x6x32xbf16, #tpu.memory_space<vmem>>, vector<1x1x4x32xbf16>
    %1 = vector.shape_cast %0 : vector<1x1x4x32xbf16> to vector<4x32xbf16>
    %c0_3 = arith.constant 0 : index
    %c0_4 = arith.constant 0 : index
    %2 = vector.load %arg5[%c0_3, %c0_4] : memref<16x288xbf16, #tpu.memory_space<vmem>>, vector<4x32xbf16>
    tpu.vector_store %arg5[%c0_3, %c0_4], %1 {strides = array<i32>} : memref<16x288xbf16, #tpu.memory_space<vmem>>, vector<4x32xbf16>,
    %c0_5 = arith.constant 0 : index
    %c0_6 = arith.constant 0 : index
    %c1 = arith.constant 1 : index
    %c0_7 = arith.constant 0 : index
    %3 = vector.load %arg1[%c0_5, %c0_6, %c1, %c0_7] : memref<1x6x6x32xbf16, #tpu.memory_space<vmem>>, vector<1x1x4x32xbf16>
    %4 = vector.shape_cast %3 : vector<1x1x4x32xbf16> to vector<4x32xbf16>
    %c0_8 = arith.constant 0 : index
    %c32 = arith.constant 32 : index
    %5 = vector.load %arg5[%c0_8, %c32] : memref<16x288xbf16, #tpu.memory_space<vmem>>, vector<4x32xbf16>
    tpu.vector_store %arg5[%c0_8, %c32], %4 {strides = array<i32>} : memref<16x288xbf16, #tpu.memory_space<vmem>>, vector<4x32xbf16>,
    %c0_9 = arith.constant 0 : index
    %c0_10 = arith.constant 0 : index
    %c2 = arith.constant 2 : index
    %c0_11 = arith.constant 0 : index
    %6 = vector.load %arg1[%c0_9, %c0_10, %c2, %c0_11] : memref<1x6x6x32xbf16, #tpu.memory_space<vmem>>, vector<1x1x4x32xbf16>
    %7 = vector.shape_cast %6 : vector<1x1x4x32xbf16> to vector<4x32xbf16>
    %c0_12 = arith.constant 0 : index
    %c64 = arith.constant 64 : index
    %8 = vector.load %arg5[%c0_12, %c64] : memref<16x288xbf16, #tpu.memory_space<vmem>>, vector<4x32xbf16>
    tpu.vector_store %arg5[%c0_12, %c64], %7 {strides = array<i32>} : memref<16x288xbf16, #tpu.memory_space<vmem>>, vector<4x32xbf16>,
    %c0_13 = arith.constant 0 : index
    %c1_14 = arith.constant 1 : index
    %c0_15 = arith.constant 0 : index
    %c0_16 = arith.constant 0 : index
    %9 = vector.load %arg1[%c0_13, %c1_14, %c0_15, %c0_16] : memref<1x6x6x32xbf16, #tpu.memory_space<vmem>>, vector<1x1x4x32xbf16>
    %10 = vector.shape_cast %9 : vector<1x1x4x32xbf16> to vector<4x32xbf16>
    %c0_17 = arith.constant 0 : index
    %c96 = arith.constant 96 : index
    %11 = vector.load %arg5[%c0_17, %c96] : memref<16x288xbf16, #tpu.memory_space<vmem>>, vector<4x32xbf16>
    tpu.vector_store %arg5[%c0_17, %c96], %10 {strides = array<i32>} : memref<16x288xbf16, #tpu.memory_space<vmem>>, vector<4x32xbf16>,
    %c0_18 = arith.constant 0 : index
    %c1_19 = arith.constant 1 : index
    %c1_20 = arith.constant 1 : index
    %c0_21 = arith.constant 0 : index
    %12 = vector.load %arg1[%c0_18, %c1_19, %c1_20, %c0_21] : memref<1x6x6x32xbf16, #tpu.memory_space<vmem>>, vector<1x1x4x32xbf16>
    %13 = vector.shape_cast %12 : vector<1x1x4x32xbf16> to vector<4x32xbf16>
    %c0_22 = arith.constant 0 : index
    %c128 = arith.constant 128 : index
    %14 = vector.load %arg5[%c0_22, %c128] : memref<16x288xbf16, #tpu.memory_space<vmem>>, vector<4x32xbf16>
    tpu.vector_store %arg5[%c0_22, %c128], %13 {strides = array<i32>} : memref<16x288xbf16, #tpu.memory_space<vmem>>, vector<4x32xbf16>,
    %c0_23 = arith.constant 0 : index
    %c1_24 = arith.constant 1 : index
    %c2_25 = arith.constant 2 : index
    %c0_26 = arith.constant 0 : index
    %15 = vector.load %arg1[%c0_23, %c1_24, %c2_25, %c0_26] : memref<1x6x6x32xbf16, #tpu.memory_space<vmem>>, vector<1x1x4x32xbf16>
    %16 = vector.shape_cast %15 : vector<1x1x4x32xbf16> to vector<4x32xbf16>
    %c0_27 = arith.constant 0 : index
    %c160 = arith.constant 160 : index
    %17 = vector.load %arg5[%c0_27, %c160] : memref<16x288xbf16, #tpu.memory_space<vmem>>, vector<4x32xbf16>
    tpu.vector_store %arg5[%c0_27, %c160], %16 {strides = array<i32>} : memref<16x288xbf16, #tpu.memory_space<vmem>>, vector<4x32xbf16>,
    %c0_28 = arith.constant 0 : index
    %c2_29 = arith.constant 2 : index
    %c0_30 = arith.constant 0 : index
    %c0_31 = arith.constant 0 : index
    %18 = vector.load %arg1[%c0_28, %c2_29, %c0_30, %c0_31] : memref<1x6x6x32xbf16, #tpu.memory_space<vmem>>, vector<1x1x4x32xbf16>
    %19 = vector.shape_cast %18 : vector<1x1x4x32xbf16> to vector<4x32xbf16>
    %c0_32 = arith.constant 0 : index
    %c192 = arith.constant 192 : index
    %20 = vector.load %arg5[%c0_32, %c192] : memref<16x288xbf16, #tpu.memory_space<vmem>>, vector<4x32xbf16>
    tpu.vector_store %arg5[%c0_32, %c192], %19 {strides = array<i32>} : memref<16x288xbf16, #tpu.memory_space<vmem>>, vector<4x32xbf16>,
    %c0_33 = arith.constant 0 : index
    %c2_34 = arith.constant 2 : index
    %c1_35 = arith.constant 1 : index
    %c0_36 = arith.constant 0 : index
    %21 = vector.load %arg1[%c0_33, %c2_34, %c1_35, %c0_36] : memref<1x6x6x32xbf16, #tpu.memory_space<vmem>>, vector<1x1x4x32xbf16>
    %22 = vector.shape_cast %21 : vector<1x1x4x32xbf16> to vector<4x32xbf16>
    %c0_37 = arith.constant 0 : index
    %c224 = arith.constant 224 : index
    %23 = vector.load %arg5[%c0_37, %c224] : memref<16x288xbf16, #tpu.memory_space<vmem>>, vector<4x32xbf16>
    tpu.vector_store %arg5[%c0_37, %c224], %22 {strides = array<i32>} : memref<16x288xbf16, #tpu.memory_space<vmem>>, vector<4x32xbf16>,
    %c0_38 = arith.constant 0 : index
    %c2_39 = arith.constant 2 : index
    %c2_40 = arith.constant 2 : index
    %c0_41 = arith.constant 0 : index
    %24 = vector.load %arg1[%c0_38, %c2_39, %c2_40, %c0_41] : memref<1x6x6x32xbf16, #tpu.memory_space<vmem>>, vector<1x1x4x32xbf16>
    %25 = vector.shape_cast %24 : vector<1x1x4x32xbf16> to vector<4x32xbf16>
    %c0_42 = arith.constant 0 : index
    %c256 = arith.constant 256 : index
    %26 = vector.load %arg5[%c0_42, %c256] : memref<16x288xbf16, #tpu.memory_space<vmem>>, vector<4x32xbf16>
    tpu.vector_store %arg5[%c0_42, %c256], %25 {strides = array<i32>} : memref<16x288xbf16, #tpu.memory_space<vmem>>, vector<4x32xbf16>,
    %c0_43 = arith.constant 0 : index
    %c1_44 = arith.constant 1 : index
    %c0_45 = arith.constant 0 : index
    %c0_46 = arith.constant 0 : index
    %27 = vector.load %arg1[%c0_43, %c1_44, %c0_45, %c0_46] : memref<1x6x6x32xbf16, #tpu.memory_space<vmem>>, vector<1x1x4x32xbf16>
    %28 = vector.shape_cast %27 : vector<1x1x4x32xbf16> to vector<4x32xbf16>
    %c4 = arith.constant 4 : index
    %c0_47 = arith.constant 0 : index
    %29 = vector.load %arg5[%c4, %c0_47] : memref<16x288xbf16, #tpu.memory_space<vmem>>, vector<4x32xbf16>
    tpu.vector_store %arg5[%c4, %c0_47], %28 {strides = array<i32>} : memref<16x288xbf16, #tpu.memory_space<vmem>>, vector<4x32xbf16>,
    %c0_48 = arith.constant 0 : index
    %c1_49 = arith.constant 1 : index
    %c1_50 = arith.constant 1 : index
    %c0_51 = arith.constant 0 : index
    %30 = vector.load %arg1[%c0_48, %c1_49, %c1_50, %c0_51] : memref<1x6x6x32xbf16, #tpu.memory_space<vmem>>, vector<1x1x4x32xbf16>
    %31 = vector.shape_cast %30 : vector<1x1x4x32xbf16> to vector<4x32xbf16>
    %c4_52 = arith.constant 4 : index
    %c32_53 = arith.constant 32 : index
    %32 = vector.load %arg5[%c4_52, %c32_53] : memref<16x288xbf16, #tpu.memory_space<vmem>>, vector<4x32xbf16>
    tpu.vector_store %arg5[%c4_52, %c32_53], %31 {strides = array<i32>} : memref<16x288xbf16, #tpu.memory_space<vmem>>, vector<4x32xbf16>,
    %c0_54 = arith.constant 0 : index
    %c1_55 = arith.constant 1 : index
    %c2_56 = arith.constant 2 : index
    %c0_57 = arith.constant 0 : index
    %33 = vector.load %arg1[%c0_54, %c1_55, %c2_56, %c0_57] : memref<1x6x6x32xbf16, #tpu.memory_space<vmem>>, vector<1x1x4x32xbf16>
    %34 = vector.shape_cast %33 : vector<1x1x4x32xbf16> to vector<4x32xbf16>
    %c4_58 = arith.constant 4 : index
    %c64_59 = arith.constant 64 : index
    %35 = vector.load %arg5[%c4_58, %c64_59] : memref<16x288xbf16, #tpu.memory_space<vmem>>, vector<4x32xbf16>
    tpu.vector_store %arg5[%c4_58, %c64_59], %34 {strides = array<i32>} : memref<16x288xbf16, #tpu.memory_space<vmem>>, vector<4x32xbf16>,
    %c0_60 = arith.constant 0 : index
    %c2_61 = arith.constant 2 : index
    %c0_62 = arith.constant 0 : index
    %c0_63 = arith.constant 0 : index
    %36 = vector.load %arg1[%c0_60, %c2_61, %c0_62, %c0_63] : memref<1x6x6x32xbf16, #tpu.memory_space<vmem>>, vector<1x1x4x32xbf16>
    %37 = vector.shape_cast %36 : vector<1x1x4x32xbf16> to vector<4x32xbf16>
    %c4_64 = arith.constant 4 : index
    %c96_65 = arith.constant 96 : index
    %38 = vector.load %arg5[%c4_64, %c96_65] : memref<16x288xbf16, #tpu.memory_space<vmem>>, vector<4x32xbf16>
    tpu.vector_store %arg5[%c4_64, %c96_65], %37 {strides = array<i32>} : memref<16x288xbf16, #tpu.memory_space<vmem>>, vector<4x32xbf16>,
    %c0_66 = arith.constant 0 : index
    %c2_67 = arith.constant 2 : index
    %c1_68 = arith.constant 1 : index
    %c0_69 = arith.constant 0 : index
    %39 = vector.load %arg1[%c0_66, %c2_67, %c1_68, %c0_69] : memref<1x6x6x32xbf16, #tpu.memory_space<vmem>>, vector<1x1x4x32xbf16>
    %40 = vector.shape_cast %39 : vector<1x1x4x32xbf16> to vector<4x32xbf16>
    %c4_70 = arith.constant 4 : index
    %c128_71 = arith.constant 128 : index
    %41 = vector.load %arg5[%c4_70, %c128_71] : memref<16x288xbf16, #tpu.memory_space<vmem>>, vector<4x32xbf16>
    tpu.vector_store %arg5[%c4_70, %c128_71], %40 {strides = array<i32>} : memref<16x288xbf16, #tpu.memory_space<vmem>>, vector<4x32xbf16>,
    %c0_72 = arith.constant 0 : index
    %c2_73 = arith.constant 2 : index
    %c2_74 = arith.constant 2 : index
    %c0_75 = arith.constant 0 : index
    %42 = vector.load %arg1[%c0_72, %c2_73, %c2_74, %c0_75] : memref<1x6x6x32xbf16, #tpu.memory_space<vmem>>, vector<1x1x4x32xbf16>
    %43 = vector.shape_cast %42 : vector<1x1x4x32xbf16> to vector<4x32xbf16>
    %c4_76 = arith.constant 4 : index
    %c160_77 = arith.constant 160 : index
    %44 = vector.load %arg5[%c4_76, %c160_77] : memref<16x288xbf16, #tpu.memory_space<vmem>>, vector<4x32xbf16>
    tpu.vector_store %arg5[%c4_76, %c160_77], %43 {strides = array<i32>} : memref<16x288xbf16, #tpu.memory_space<vmem>>, vector<4x32xbf16>,
    %c0_78 = arith.constant 0 : index
    %c3 = arith.constant 3 : index
    %c0_79 = arith.constant 0 : index
    %c0_80 = arith.constant 0 : index
    %45 = vector.load %arg1[%c0_78, %c3, %c0_79, %c0_80] : memref<1x6x6x32xbf16, #tpu.memory_space<vmem>>, vector<1x1x4x32xbf16>
    %46 = vector.shape_cast %45 : vector<1x1x4x32xbf16> to vector<4x32xbf16>
    %c4_81 = arith.constant 4 : index
    %c192_82 = arith.constant 192 : index
    %47 = vector.load %arg5[%c4_81, %c192_82] : memref<16x288xbf16, #tpu.memory_space<vmem>>, vector<4x32xbf16>
    tpu.vector_store %arg5[%c4_81, %c192_82], %46 {strides = array<i32>} : memref<16x288xbf16, #tpu.memory_space<vmem>>, vector<4x32xbf16>,
    %c0_83 = arith.constant 0 : index
    %c3_84 = arith.constant 3 : index
    %c1_85 = arith.constant 1 : index
    %c0_86 = arith.constant 0 : index
    %48 = vector.load %arg1[%c0_83, %c3_84, %c1_85, %c0_86] : memref<1x6x6x32xbf16, #tpu.memory_space<vmem>>, vector<1x1x4x32xbf16>
    %49 = vector.shape_cast %48 : vector<1x1x4x32xbf16> to vector<4x32xbf16>
    %c4_87 = arith.constant 4 : index
    %c224_88 = arith.constant 224 : index
    %50 = vector.load %arg5[%c4_87, %c224_88] : memref<16x288xbf16, #tpu.memory_space<vmem>>, vector<4x32xbf16>
    tpu.vector_store %arg5[%c4_87, %c224_88], %49 {strides = array<i32>} : memref<16x288xbf16, #tpu.memory_space<vmem>>, vector<4x32xbf16>,
    %c0_89 = arith.constant 0 : index
    %c3_90 = arith.constant 3 : index
    %c2_91 = arith.constant 2 : index
    %c0_92 = arith.constant 0 : index
    %51 = vector.load %arg1[%c0_89, %c3_90, %c2_91, %c0_92] : memref<1x6x6x32xbf16, #tpu.memory_space<vmem>>, vector<1x1x4x32xbf16>
    %52 = vector.shape_cast %51 : vector<1x1x4x32xbf16> to vector<4x32xbf16>
    %c4_93 = arith.constant 4 : index
    %c256_94 = arith.constant 256 : index
    %53 = vector.load %arg5[%c4_93, %c256_94] : memref<16x288xbf16, #tpu.memory_space<vmem>>, vector<4x32xbf16>
    tpu.vector_store %arg5[%c4_93, %c256_94], %52 {strides = array<i32>} : memref<16x288xbf16, #tpu.memory_space<vmem>>, vector<4x32xbf16>,
    %c0_95 = arith.constant 0 : index
    %c2_96 = arith.constant 2 : index
    %c0_97 = arith.constant 0 : index
    %c0_98 = arith.constant 0 : index
    %54 = vector.load %arg1[%c0_95, %c2_96, %c0_97, %c0_98] : memref<1x6x6x32xbf16, #tpu.memory_space<vmem>>, vector<1x1x4x32xbf16>
    %55 = vector.shape_cast %54 : vector<1x1x4x32xbf16> to vector<4x32xbf16>
    %c8 = arith.constant 8 : index
    %c0_99 = arith.constant 0 : index
    %56 = vector.load %arg5[%c8, %c0_99] : memref<16x288xbf16, #tpu.memory_space<vmem>>, vector<4x32xbf16>
    tpu.vector_store %arg5[%c8, %c0_99], %55 {strides = array<i32>} : memref<16x288xbf16, #tpu.memory_space<vmem>>, vector<4x32xbf16>,
    %c0_100 = arith.constant 0 : index
    %c2_101 = arith.constant 2 : index
    %c1_102 = arith.constant 1 : index
    %c0_103 = arith.constant 0 : index
    %57 = vector.load %arg1[%c0_100, %c2_101, %c1_102, %c0_103] : memref<1x6x6x32xbf16, #tpu.memory_space<vmem>>, vector<1x1x4x32xbf16>
    %58 = vector.shape_cast %57 : vector<1x1x4x32xbf16> to vector<4x32xbf16>
    %c8_104 = arith.constant 8 : index
    %c32_105 = arith.constant 32 : index
    %59 = vector.load %arg5[%c8_104, %c32_105] : memref<16x288xbf16, #tpu.memory_space<vmem>>, vector<4x32xbf16>
    tpu.vector_store %arg5[%c8_104, %c32_105], %58 {strides = array<i32>} : memref<16x288xbf16, #tpu.memory_space<vmem>>, vector<4x32xbf16>,
    %c0_106 = arith.constant 0 : index
    %c2_107 = arith.constant 2 : index
    %c2_108 = arith.constant 2 : index
    %c0_109 = arith.constant 0 : index
    %60 = vector.load %arg1[%c0_106, %c2_107, %c2_108, %c0_109] : memref<1x6x6x32xbf16, #tpu.memory_space<vmem>>, vector<1x1x4x32xbf16>
    %61 = vector.shape_cast %60 : vector<1x1x4x32xbf16> to vector<4x32xbf16>
    %c8_110 = arith.constant 8 : index
    %c64_111 = arith.constant 64 : index
    %62 = vector.load %arg5[%c8_110, %c64_111] : memref<16x288xbf16, #tpu.memory_space<vmem>>, vector<4x32xbf16>
    tpu.vector_store %arg5[%c8_110, %c64_111], %61 {strides = array<i32>} : memref<16x288xbf16, #tpu.memory_space<vmem>>, vector<4x32xbf16>,
    %c0_112 = arith.constant 0 : index
    %c3_113 = arith.constant 3 : index
    %c0_114 = arith.constant 0 : index
    %c0_115 = arith.constant 0 : index
    %63 = vector.load %arg1[%c0_112, %c3_113, %c0_114, %c0_115] : memref<1x6x6x32xbf16, #tpu.memory_space<vmem>>, vector<1x1x4x32xbf16>
    %64 = vector.shape_cast %63 : vector<1x1x4x32xbf16> to vector<4x32xbf16>
    %c8_116 = arith.constant 8 : index
    %c96_117 = arith.constant 96 : index
    %65 = vector.load %arg5[%c8_116, %c96_117] : memref<16x288xbf16, #tpu.memory_space<vmem>>, vector<4x32xbf16>
    tpu.vector_store %arg5[%c8_116, %c96_117], %64 {strides = array<i32>} : memref<16x288xbf16, #tpu.memory_space<vmem>>, vector<4x32xbf16>,
    %c0_118 = arith.constant 0 : index
    %c3_119 = arith.constant 3 : index
    %c1_120 = arith.constant 1 : index
    %c0_121 = arith.constant 0 : index
    %66 = vector.load %arg1[%c0_118, %c3_119, %c1_120, %c0_121] : memref<1x6x6x32xbf16, #tpu.memory_space<vmem>>, vector<1x1x4x32xbf16>
    %67 = vector.shape_cast %66 : vector<1x1x4x32xbf16> to vector<4x32xbf16>
    %c8_122 = arith.constant 8 : index
    %c128_123 = arith.constant 128 : index
    %68 = vector.load %arg5[%c8_122, %c128_123] : memref<16x288xbf16, #tpu.memory_space<vmem>>, vector<4x32xbf16>
    tpu.vector_store %arg5[%c8_122, %c128_123], %67 {strides = array<i32>} : memref<16x288xbf16, #tpu.memory_space<vmem>>, vector<4x32xbf16>,
    %c0_124 = arith.constant 0 : index
    %c3_125 = arith.constant 3 : index
    %c2_126 = arith.constant 2 : index
    %c0_127 = arith.constant 0 : index
    %69 = vector.load %arg1[%c0_124, %c3_125, %c2_126, %c0_127] : memref<1x6x6x32xbf16, #tpu.memory_space<vmem>>, vector<1x1x4x32xbf16>
    %70 = vector.shape_cast %69 : vector<1x1x4x32xbf16> to vector<4x32xbf16>
    %c8_128 = arith.constant 8 : index
    %c160_129 = arith.constant 160 : index
    %71 = vector.load %arg5[%c8_128, %c160_129] : memref<16x288xbf16, #tpu.memory_space<vmem>>, vector<4x32xbf16>
    tpu.vector_store %arg5[%c8_128, %c160_129], %70 {strides = array<i32>} : memref<16x288xbf16, #tpu.memory_space<vmem>>, vector<4x32xbf16>,
    %c0_130 = arith.constant 0 : index
    %c4_131 = arith.constant 4 : index
    %c0_132 = arith.constant 0 : index
    %c0_133 = arith.constant 0 : index
    %72 = vector.load %arg1[%c0_130, %c4_131, %c0_132, %c0_133] : memref<1x6x6x32xbf16, #tpu.memory_space<vmem>>, vector<1x1x4x32xbf16>
    %73 = vector.shape_cast %72 : vector<1x1x4x32xbf16> to vector<4x32xbf16>
    %c8_134 = arith.constant 8 : index
    %c192_135 = arith.constant 192 : index
    %74 = vector.load %arg5[%c8_134, %c192_135] : memref<16x288xbf16, #tpu.memory_space<vmem>>, vector<4x32xbf16>
    tpu.vector_store %arg5[%c8_134, %c192_135], %73 {strides = array<i32>} : memref<16x288xbf16, #tpu.memory_space<vmem>>, vector<4x32xbf16>,
    %c0_136 = arith.constant 0 : index
    %c4_137 = arith.constant 4 : index
    %c1_138 = arith.constant 1 : index
    %c0_139 = arith.constant 0 : index
    %75 = vector.load %arg1[%c0_136, %c4_137, %c1_138, %c0_139] : memref<1x6x6x32xbf16, #tpu.memory_space<vmem>>, vector<1x1x4x32xbf16>
    %76 = vector.shape_cast %75 : vector<1x1x4x32xbf16> to vector<4x32xbf16>
    %c8_140 = arith.constant 8 : index
    %c224_141 = arith.constant 224 : index
    %77 = vector.load %arg5[%c8_140, %c224_141] : memref<16x288xbf16, #tpu.memory_space<vmem>>, vector<4x32xbf16>
    tpu.vector_store %arg5[%c8_140, %c224_141], %76 {strides = array<i32>} : memref<16x288xbf16, #tpu.memory_space<vmem>>, vector<4x32xbf16>,
    %c0_142 = arith.constant 0 : index
    %c4_143 = arith.constant 4 : index
    %c2_144 = arith.constant 2 : index
    %c0_145 = arith.constant 0 : index
    %78 = vector.load %arg1[%c0_142, %c4_143, %c2_144, %c0_145] : memref<1x6x6x32xbf16, #tpu.memory_space<vmem>>, vector<1x1x4x32xbf16>
    %79 = vector.shape_cast %78 : vector<1x1x4x32xbf16> to vector<4x32xbf16>
    %c8_146 = arith.constant 8 : index
    %c256_147 = arith.constant 256 : index
    %80 = vector.load %arg5[%c8_146, %c256_147] : memref<16x288xbf16, #tpu.memory_space<vmem>>, vector<4x32xbf16>
    tpu.vector_store %arg5[%c8_146, %c256_147], %79 {strides = array<i32>} : memref<16x288xbf16, #tpu.memory_space<vmem>>, vector<4x32xbf16>,
    %c0_148 = arith.constant 0 : index
    %c3_149 = arith.constant 3 : index
    %c0_150 = arith.constant 0 : index
    %c0_151 = arith.constant 0 : index
    %81 = vector.load %arg1[%c0_148, %c3_149, %c0_150, %c0_151] : memref<1x6x6x32xbf16, #tpu.memory_space<vmem>>, vector<1x1x4x32xbf16>
    %82 = vector.shape_cast %81 : vector<1x1x4x32xbf16> to vector<4x32xbf16>
    %c12 = arith.constant 12 : index
    %c0_152 = arith.constant 0 : index
    %83 = vector.load %arg5[%c12, %c0_152] : memref<16x288xbf16, #tpu.memory_space<vmem>>, vector<4x32xbf16>
    tpu.vector_store %arg5[%c12, %c0_152], %82 {strides = array<i32>} : memref<16x288xbf16, #tpu.memory_space<vmem>>, vector<4x32xbf16>,
    %c0_153 = arith.constant 0 : index
    %c3_154 = arith.constant 3 : index
    %c1_155 = arith.constant 1 : index
    %c0_156 = arith.constant 0 : index
    %84 = vector.load %arg1[%c0_153, %c3_154, %c1_155, %c0_156] : memref<1x6x6x32xbf16, #tpu.memory_space<vmem>>, vector<1x1x4x32xbf16>
    %85 = vector.shape_cast %84 : vector<1x1x4x32xbf16> to vector<4x32xbf16>
    %c12_157 = arith.constant 12 : index
    %c32_158 = arith.constant 32 : index
    %86 = vector.load %arg5[%c12_157, %c32_158] : memref<16x288xbf16, #tpu.memory_space<vmem>>, vector<4x32xbf16>
    tpu.vector_store %arg5[%c12_157, %c32_158], %85 {strides = array<i32>} : memref<16x288xbf16, #tpu.memory_space<vmem>>, vector<4x32xbf16>,
    %c0_159 = arith.constant 0 : index
    %c3_160 = arith.constant 3 : index
    %c2_161 = arith.constant 2 : index
    %c0_162 = arith.constant 0 : index
    %87 = vector.load %arg1[%c0_159, %c3_160, %c2_161, %c0_162] : memref<1x6x6x32xbf16, #tpu.memory_space<vmem>>, vector<1x1x4x32xbf16>
    %88 = vector.shape_cast %87 : vector<1x1x4x32xbf16> to vector<4x32xbf16>
    %c12_163 = arith.constant 12 : index
    %c64_164 = arith.constant 64 : index
    %89 = vector.load %arg5[%c12_163, %c64_164] : memref<16x288xbf16, #tpu.memory_space<vmem>>, vector<4x32xbf16>
    tpu.vector_store %arg5[%c12_163, %c64_164], %88 {strides = array<i32>} : memref<16x288xbf16, #tpu.memory_space<vmem>>, vector<4x32xbf16>,
    %c0_165 = arith.constant 0 : index
    %c4_166 = arith.constant 4 : index
    %c0_167 = arith.constant 0 : index
    %c0_168 = arith.constant 0 : index
    %90 = vector.load %arg1[%c0_165, %c4_166, %c0_167, %c0_168] : memref<1x6x6x32xbf16, #tpu.memory_space<vmem>>, vector<1x1x4x32xbf16>
    %91 = vector.shape_cast %90 : vector<1x1x4x32xbf16> to vector<4x32xbf16>
    %c12_169 = arith.constant 12 : index
    %c96_170 = arith.constant 96 : index
    %92 = vector.load %arg5[%c12_169, %c96_170] : memref<16x288xbf16, #tpu.memory_space<vmem>>, vector<4x32xbf16>
    tpu.vector_store %arg5[%c12_169, %c96_170], %91 {strides = array<i32>} : memref<16x288xbf16, #tpu.memory_space<vmem>>, vector<4x32xbf16>,
    %c0_171 = arith.constant 0 : index
    %c4_172 = arith.constant 4 : index
    %c1_173 = arith.constant 1 : index
    %c0_174 = arith.constant 0 : index
    %93 = vector.load %arg1[%c0_171, %c4_172, %c1_173, %c0_174] : memref<1x6x6x32xbf16, #tpu.memory_space<vmem>>, vector<1x1x4x32xbf16>
    %94 = vector.shape_cast %93 : vector<1x1x4x32xbf16> to vector<4x32xbf16>
    %c12_175 = arith.constant 12 : index
    %c128_176 = arith.constant 128 : index
    %95 = vector.load %arg5[%c12_175, %c128_176] : memref<16x288xbf16, #tpu.memory_space<vmem>>, vector<4x32xbf16>
    tpu.vector_store %arg5[%c12_175, %c128_176], %94 {strides = array<i32>} : memref<16x288xbf16, #tpu.memory_space<vmem>>, vector<4x32xbf16>,
    %c0_177 = arith.constant 0 : index
    %c4_178 = arith.constant 4 : index
    %c2_179 = arith.constant 2 : index
    %c0_180 = arith.constant 0 : index
    %96 = vector.load %arg1[%c0_177, %c4_178, %c2_179, %c0_180] : memref<1x6x6x32xbf16, #tpu.memory_space<vmem>>, vector<1x1x4x32xbf16>
    %97 = vector.shape_cast %96 : vector<1x1x4x32xbf16> to vector<4x32xbf16>
    %c12_181 = arith.constant 12 : index
    %c160_182 = arith.constant 160 : index
    %98 = vector.load %arg5[%c12_181, %c160_182] : memref<16x288xbf16, #tpu.memory_space<vmem>>, vector<4x32xbf16>
    tpu.vector_store %arg5[%c12_181, %c160_182], %97 {strides = array<i32>} : memref<16x288xbf16, #tpu.memory_space<vmem>>, vector<4x32xbf16>,
    %c0_183 = arith.constant 0 : index
    %c5 = arith.constant 5 : index
    %c0_184 = arith.constant 0 : index
    %c0_185 = arith.constant 0 : index
    %99 = vector.load %arg1[%c0_183, %c5, %c0_184, %c0_185] : memref<1x6x6x32xbf16, #tpu.memory_space<vmem>>, vector<1x1x4x32xbf16>
    %100 = vector.shape_cast %99 : vector<1x1x4x32xbf16> to vector<4x32xbf16>
    %c12_186 = arith.constant 12 : index
    %c192_187 = arith.constant 192 : index
    %101 = vector.load %arg5[%c12_186, %c192_187] : memref<16x288xbf16, #tpu.memory_space<vmem>>, vector<4x32xbf16>
    tpu.vector_store %arg5[%c12_186, %c192_187], %100 {strides = array<i32>} : memref<16x288xbf16, #tpu.memory_space<vmem>>, vector<4x32xbf16>,
    %c0_188 = arith.constant 0 : index
    %c5_189 = arith.constant 5 : index
    %c1_190 = arith.constant 1 : index
    %c0_191 = arith.constant 0 : index
    %102 = vector.load %arg1[%c0_188, %c5_189, %c1_190, %c0_191] : memref<1x6x6x32xbf16, #tpu.memory_space<vmem>>, vector<1x1x4x32xbf16>
    %103 = vector.shape_cast %102 : vector<1x1x4x32xbf16> to vector<4x32xbf16>
    %c12_192 = arith.constant 12 : index
    %c224_193 = arith.constant 224 : index
    %104 = vector.load %arg5[%c12_192, %c224_193] : memref<16x288xbf16, #tpu.memory_space<vmem>>, vector<4x32xbf16>
    tpu.vector_store %arg5[%c12_192, %c224_193], %103 {strides = array<i32>} : memref<16x288xbf16, #tpu.memory_space<vmem>>, vector<4x32xbf16>,
    %c0_194 = arith.constant 0 : index
    %c5_195 = arith.constant 5 : index
    %c2_196 = arith.constant 2 : index
    %c0_197 = arith.constant 0 : index
    %105 = vector.load %arg1[%c0_194, %c5_195, %c2_196, %c0_197] : memref<1x6x6x32xbf16, #tpu.memory_space<vmem>>, vector<1x1x4x32xbf16>
    %106 = vector.shape_cast %105 : vector<1x1x4x32xbf16> to vector<4x32xbf16>
    %c12_198 = arith.constant 12 : index
    %c256_199 = arith.constant 256 : index
    %107 = vector.load %arg5[%c12_198, %c256_199] : memref<16x288xbf16, #tpu.memory_space<vmem>>, vector<4x32xbf16>
    tpu.vector_store %arg5[%c12_198, %c256_199], %106 {strides = array<i32>} : memref<16x288xbf16, #tpu.memory_space<vmem>>, vector<4x32xbf16>,
    %c0_200 = arith.constant 0 : index
    %c0_201 = arith.constant 0 : index
    %108 = vector.load %arg5[%c0_200, %c0_201] : memref<16x288xbf16, #tpu.memory_space<vmem>>, vector<16x288xbf16>
    %c0_202 = arith.constant 0 : index
    %c0_203 = arith.constant 0 : index
    %109 = vector.load %arg2[%c0_202, %c0_203] : memref<288x32xbf16, #tpu.memory_space<vmem>>, vector<288x32xbf16>
    %cst = arith.constant dense<0.000000e+00> : vector<16x32xf32>
    %110 = tpu.matmul %108, %109, %cst {dimension_numbers = #tpu.dot_dimension_numbers<[1], [0], [0], [1], [0, 0, 1, 1], [], []>} : vector<16x288xbf16>, vector<288x32xbf16>, vector<16x32xf32> -> vector<16x32xf32>
    %c0_204 = arith.constant 0 : index
    %c0_205 = arith.constant 0 : index
    %111 = vector.load %arg3[%c0_204, %c0_205] : memref<1x32xf32, #tpu.memory_space<vmem>>, vector<1x32xf32>
    %112 = vector.broadcast %111 : vector<1x32xf32> to vector<16x32xf32>
    %113 = arith.addf %110, %112 : vector<16x32xf32>
    %cst_206 = arith.constant 0.000000e+00 : f32
    %114 = vector.broadcast %cst_206 : f32 to vector<16x32xf32>
    %115 = arith.maximumf %113, %114 : vector<16x32xf32>
    %c0_207 = arith.constant 0 : index
    %c0_208 = arith.constant 0 : index
    %c0_209 = arith.constant 0 : index
    %116 = vector.load %arg4[%c0_207, %c0_208, %c0_209] : memref<1x16x32xf32, #tpu.memory_space<vmem>>, vector<1x16x32xf32>
    %117 = vector.shape_cast %116 : vector<1x16x32xf32> to vector<16x32xf32>
    %118 = vector.shape_cast %115 : vector<16x32xf32> to vector<1x16x32xf32>
    tpu.vector_store %arg4[%c0_207, %c0_208, %c0_209], %118 {strides = array<i32>} : memref<1x16x32xf32, #tpu.memory_space<vmem>>, vector<1x16x32xf32>,
    return
  }
  func.func @transform_0(%arg0: i32) -> (i32, i32, i32, i32) {
    %c0_i32 = arith.constant 0 : i32
    %c0_i32_0 = arith.constant 0 : i32
    %c0_i32_1 = arith.constant 0 : i32
    %c0_i32_2 = arith.constant 0 : i32
    return %arg0, %c0_i32, %c0_i32_0, %c0_i32_1 : i32, i32, i32, i32
  }
  func.func @transform_1(%arg0: i32) -> (i32, i32) {
    %c0_i32 = arith.constant 0 : i32
    %c0_i32_0 = arith.constant 0 : i32
    %c0_i32_1 = arith.constant 0 : i32
    return %c0_i32, %c0_i32_0 : i32, i32
  }
  func.func @transform_2(%arg0: i32) -> (i32, i32) {
    %c0_i32 = arith.constant 0 : i32
    %c0_i32_0 = arith.constant 0 : i32
    %c0_i32_1 = arith.constant 0 : i32
    return %c0_i32, %c0_i32_0 : i32, i32
  }
  func.func @transform_3(%arg0: i32) -> (i32, i32, i32) {
    %c0_i32 = arith.constant 0 : i32
    %c0_i32_0 = arith.constant 0 : i32
    %c0_i32_1 = arith.constant 0 : i32
    return %arg0, %c0_i32, %c0_i32_0 : i32, i32, i32
  }
}

</mosaic_0001>

<llo_original>
// kernel: forward.3
$region0: #{forward.3}
  #allocation0 [shape = 'u32[]', space=smem, size = 0x4, offset = 0x4, fixed_abs, tag = 'smem constant byte address 0x4 - core index']
  #allocation1 [shape = 'u32[144,128]{1,0:T(1,128)}', space=vmem, size = 0x12000, scoped, tag = 'internal scratch']
  #allocation2 [shape = 'bf16[64,36]{1,0:T(16,128)(2,1)}', space=vmem, size = 0x4000, scoped, tag = 'scratch operand']
  %s0 = inlined_call_operand.vmem [shape: bf16[2,9,9,16], index: 0, kind: input, shape index: {}]
  %s1 = inlined_call_operand.vmem [shape: bf16[36,16], index: 1, kind: input, shape index: {}]
  %s2 = inlined_call_operand.vmem [shape: f32[1,16], index: 2, kind: input, shape index: {}]
  %s3 = inlined_call_operand.vmem [shape: bf16[2,64,16], index: 3, kind: output, shape index: {}]
  %s4 = sld [smem:[#allocation0]]
  $region45: #{forward.3} parent=0
    _
  %s6 = ssub.s32 1, %s4
  %s7 = scalar_select 0, %s6, %s4
  loop: start=0, step=1, limit=4
  $region2: #{forward.3} parent=0 // loop_pre_header
    _
  $region3: #{forward.3} parent=0 // loop_header
    %s9 = sphi 0, %s13
    %p10 = scmp.ge.s32.totalorder %s9, 4
    %s19 = sphi 0, %s21
    %s22 = sphi 0, %s19
    %s23 = sphi 0, %s22
    %s39 = sphi 0, %s23
    %s43 = sphi 0, %s43
    %s45 = sphi 0, %s43
    %s46 = sphi 0, %s45
    %s60 = sphi 0, %s46
    %s64 = sphi 0, %s64
    %s66 = sphi 0, %s64
    %s67 = sphi 0, %s66
    %s81 = sphi 0, %s67
    %s87 = sphi 0, %s89
    %s90 = sphi 0, %s87
    %s91 = sphi 0, %s90
    %s107 = sphi 0, %s91
  $region4: #{forward.3} parent=0 // loop_header_branch
    %12 = sbr.rel (%p10) target = $region8
  $region5: #{forward.3} parent=0 // loop_body
    %s14 = ssub.s32 %s9, 1
    %s15 = ssub.s32 %s9, 2
    %s16 = sadd.s32 %s9, 1
    %s17 = ssub.s32 %s9, %s16
    %p18 = scmp.eq.s32.totalorder %s17, 0
    %s20 = sadd.s32 %s19, 1
    %s21 = scalar_select %p18, %s19, %s20
    %p24 = pneg %p18
    %p25 = scmp.eq.s32.totalorder %s9, 1
    %p26 = por %p24, %p25
    %p27 = scmp.ne.s32.totalorder %s19, %s22
    %p28 = scmp.eq.s32.totalorder %s9, 0
    %p29 = por %p27, %p28
    %p30 = scmp.ne.s32.totalorder %s19, %s22
    %p31 = scmp.eq.s32.totalorder %s14, 1
    %p32 = por %p30, %p31
    %p33 = scmp.ne.s32.totalorder %s22, %s23
    %p34 = scmp.eq.s32.totalorder %s14, 0
    %p35 = por %p33, %p34
    %p36 = scmp.ne.s32.totalorder %s22, %s23
    %p37 = scmp.eq.s32.totalorder %s15, 1
    %p38 = por %p36, %p37
    %p40 = scmp.ne.s32.totalorder %s23, %s39
    %p41 = scmp.eq.s32.totalorder %s15, 0
    %p42 = por %p40, %p41
    %s44 = sadd.s32 %s43, 1
    %p47 = scmp.eq.s32.totalorder %s9, 1
    %p48 = scmp.ne.s32.totalorder %s43, %s45
    %p49 = scmp.eq.s32.totalorder %s9, 0
    %p50 = por %p48, %p49
    %p51 = scmp.ne.s32.totalorder %s43, %s45
    %p52 = scmp.eq.s32.totalorder %s14, 1
    %p53 = por %p51, %p52
    %p54 = scmp.ne.s32.totalorder %s45, %s46
    %p55 = scmp.eq.s32.totalorder %s14, 0
    %p56 = por %p54, %p55
    %p57 = scmp.ne.s32.totalorder %s45, %s46
    %p58 = scmp.eq.s32.totalorder %s15, 1
    %p59 = por %p57, %p58
    %p61 = scmp.ne.s32.totalorder %s46, %s60
    %p62 = scmp.eq.s32.totalorder %s15, 0
    %p63 = por %p61, %p62
    %s65 = sadd.s32 %s64, 1
    %p68 = scmp.eq.s32.totalorder %s9, 1
    %p69 = scmp.ne.s32.totalorder %s64, %s66
    %p70 = scmp.eq.s32.totalorder %s9, 0
    %p71 = por %p69, %p70
    %p72 = scmp.ne.s32.totalorder %s64, %s66
    %p73 = scmp.eq.s32.totalorder %s14, 1
    %p74 = por %p72, %p73
    %p75 = scmp.ne.s32.totalorder %s66, %s67
    %p76 = scmp.eq.s32.totalorder %s14, 0
    %p77 = por %p75, %p76
    %p78 = scmp.ne.s32.totalorder %s66, %s67
    %p79 = scmp.eq.s32.totalorder %s15, 1
    %p80 = por %p78, %p79
    %p82 = scmp.ne.s32.totalorder %s67, %s81
    %p83 = scmp.eq.s32.totalorder %s15, 0
    %p84 = por %p82, %p83
    %s85 = ssub.s32 %s9, %s16
    %p86 = scmp.eq.s32.totalorder %s85, 0
    %s88 = sadd.s32 %s87, 1
    %s89 = scalar_select %p86, %s87, %s88
    %p92 = pneg %p86
    %p93 = scmp.eq.s32.totalorder %s9, 1
    %p94 = por %p92, %p93
    %p95 = scmp.ne.s32.totalorder %s87, %s90
    %p96 = scmp.eq.s32.totalorder %s9, 0
    %p97 = por %p95, %p96
    %p98 = scmp.ne.s32.totalorder %s87, %s90
    %p99 = scmp.eq.s32.totalorder %s14, 1
    %p100 = por %p98, %p99
    %p101 = scmp.ne.s32.totalorder %s90, %s91
    %p102 = scmp.eq.s32.totalorder %s14, 0
    %p103 = por %p101, %p102
    %p104 = scmp.ne.s32.totalorder %s90, %s91
    %p105 = scmp.eq.s32.totalorder %s15, 1
    %p106 = por %p104, %p105
    %p108 = scmp.ne.s32.totalorder %s91, %s107
    %p109 = scmp.eq.s32.totalorder %s15, 0
    %p110 = por %p108, %p109
    %p111 = scmp.le.s32.totalorder 1, %s9
    %p112 = scmp.lt.s32.totalorder %s9, 3
    %p113 = pnand %p111, %p112
    %p114 = pneg %p113
    // Predicated region
    $region9: #{forward.3} parent=5 // pred_check
      _
    $region10: #{forward.3} parent=5 // pred_check_branch
      %116 = sbr.rel (%p113) target = $region12
    $region11: #{forward.3} parent=5 // pred_region
      %s117 = ssub.s32 %s9, 1
      // Predicated region
      $region13: #{forward.3} parent=11 // pred_check
        %p118 = pneg %p56
      $region14: #{forward.3} parent=11 // pred_check_branch
        %120 = sbr.rel (%p118) target = $region16
      $region15: #{forward.3} parent=11 // pred_region
        _
      $region16: #{forward.3} parent=11 // pred_fallthru
        _
      // Predicated region
      $region17: #{forward.3} parent=11 // pred_check
        %p121 = pneg %p77
      $region18: #{forward.3} parent=11 // pred_check_branch
        %123 = sbr.rel (%p121) target = $region20
      $region19: #{forward.3} parent=11 // pred_region
        _
      $region20: #{forward.3} parent=11 // pred_fallthru
        _
    $region12: #{forward.3} parent=5 // pred_fallthru
      _
    %p124 = scmp.lt.s32.totalorder %s9, 2
    // Predicated region
    $region21: #{forward.3} parent=5 // pred_check
      %p125 = pneg %p124
    $region22: #{forward.3} parent=5 // pred_check_branch
      %127 = sbr.rel (%p125) target = $region24
    $region23: #{forward.3} parent=5 // pred_region
      // Predicated region
      $region25: #{forward.3} parent=23 // pred_check
        %p128 = pneg %p29
      $region26: #{forward.3} parent=23 // pred_check_branch
        %130 = sbr.rel (%p128) target = $region28
      $region27: #{forward.3} parent=23 // pred_region
        %p131 = scmp.lt.s32.totalorder %s9, 1
        %s132 = scalar_select %p131, %s9, 1
        %s133 = smul.addr %s132, 18
        %s134 = smul.addr %s133, 4
        %s135 = scalar_lea.vmem %s0, %s134
      $region28: #{forward.3} parent=23 // pred_fallthru
        _
    $region24: #{forward.3} parent=5 // pred_fallthru
      _
    %p136 = scmp.le.s32.totalorder 1, %s9
    %p137 = scmp.lt.s32.totalorder %s9, 3
    %p138 = pnand %p136, %p137
    %p139 = pneg %p138
    // Predicated region
    $region29: #{forward.3} parent=5 // pred_check
      _
    $region30: #{forward.3} parent=5 // pred_check_branch
      %141 = sbr.rel (%p138) target = $region32
    $region31: #{forward.3} parent=5 // pred_region
      %s142 = ssub.s32 %s9, 1
      %p143 = scmp.lt.s32.totalorder %s14, 1
      %s144 = scalar_select %p143, %s14, 1
      %s145 = smul.addr %s144, 18
      %s146 = smul.addr %s145, 4
      %s147 = scalar_lea.vmem %s0, %s146
      %p148 = pneg %p35
      %p149 = pneg %p32
      %p150 = pneg %p56
      %p151 = pneg %p53
      %p152 = pneg %p77
      %p153 = pneg %p74
      %p154 = pneg %p103
      %p155 = pneg %p100
      %p156 = scmp.lt.s32.totalorder %s14, 1
      %s157 = scalar_select %p156, %s14, 1
      %s158 = smul.addr %s157, 8
      %s159 = smul.addr %s158, 4
      %s160 = scalar_lea.vmem %s3, %s159
      %p161 = scmp.lt.s32.totalorder %s14, 1
      %s162 = scalar_select %p161, %s14, 1
      %s163 = smul.addr %s162, 18
      %s164 = smul.addr %s163, 4
      %s165 = scalar_lea.vmem %s0, %s164
      %p166 = scmp.lt.s32.totalorder %s14, 1
      %s167 = scalar_select %p166, %s14, 1
      %s168 = smul.addr %s167, 8
      %s169 = smul.addr %s168, 4
      %s170 = scalar_lea.vmem %s3, %s169
      %v172 = vld [vmem:[%s165] sm:$0xf]
      %vm173 = vcmask 27648
      %174 = vst.msk [vmem:[#allocation2] sm:$0xf] %vm173, %v172
      %v175 = vld [vmem:[%s165] sm:$0xf]
      %vm176 = vcmask 60448
      %177 = vst.msk [vmem:[#allocation2] sm:$0xf] %vm176, %v175
      %v178 = vld [vmem:[%s165] sm:$0xf]
      %v179 = vld [vmem:[%s165 + $0x4] sm:$0x1]
      %v182 = vunpack.c.l.b16 %v178
      %v183 = vunpack.c.l.b16 %v179
      %v184 = vpack.c.b16 %v183, %v182
      %v186 = vshrl.u32 %v184, 16
      %v188 = vshll.u32 %v184, 16
      %v190 = vrot.slane %v188, 1
      %v191 = vor.u32 %v186, %v190
      %192 = vrot.lane.b32.xlu0 %v191, 8
      %v193 = vpop.permute.xlu0 %192
      %vm195 = vcmask 93248
      %196 = vst.msk [vmem:[#allocation2] sm:$0xf] %vm195, %v193
      %v197 = vld [vmem:[%s165] sm:$0xf]
      %v199 = vunpack.c.l.b16 %v197
      %v200 = vpack.c.b16 %v199, %v199
      %201 = vrot.lane.b32.xlu0 %v200, 4
      %v202 = vpop.permute.xlu0 %201
      %vm204 = vcmask 126048
      %205 = vst.msk [vmem:[#allocation2] sm:$0xf] %vm204, %v202
      %v206 = vld [vmem:[%s165] sm:$0xf]
      %v208 = vunpack.c.l.b16 %v206
      %v209 = vpack.c.b16 %v208, %v208
      %210 = vrot.lane.b32.xlu0 %v209, 4
      %v211 = vpop.permute.xlu0 %210
      %vm213 = vcmask 158848
      %214 = vst.msk [vmem:[#allocation2] sm:$0xf] %vm213, %v211
      %v215 = vld [vmem:[%s165] sm:$0xf]
      %v216 = vld [vmem:[%s165 + $0x4] sm:$0x1]
      %v219 = vunpack.c.l.b16 %v215
      %v220 = vunpack.c.l.b16 %v216
      %v221 = vpack.c.b16 %v220, %v219
      %v223 = vshrl.u32 %v221, 16
      %v225 = vshll.u32 %v221, 16
      %v227 = vrot.slane %v225, 1
      %v228 = vor.u32 %v223, %v227
      %229 = vrot.lane.b32.xlu0 %v228, 12
      %v230 = vpop.permute.xlu0 %229
      %vm232 = vcmask 191648
      %233 = vst.msk [vmem:[#allocation2] sm:$0xf] %vm232, %v230
      %s234 = scalar_lea.vmem %s165, 8
      %v235 = vld [vmem:[%s234] sm:$0xf]
      %v237 = vunpack.c.l.b16 %v235
      %v238 = vpack.c.b16 %v237, %v237
      %239 = vrot.lane.b32.xlu0 %v238, 24
      %v240 = vpop.permute.xlu0 %239
      %vm242 = vcmask 224448
      %243 = vst.msk [vmem:[#allocation2] sm:$0xf] %vm242, %v240
      %v244 = vld [vmem:[%s234] sm:$0xf]
      %v246 = vunpack.c.l.b16 %v244
      %v247 = vpack.c.b16 %v246, %v246
      %248 = vrot.lane.b32.xlu0 %v247, 24
      %v249 = vpop.permute.xlu0 %248
      %vm251 = vcmask 257248
      %252 = vst.msk [vmem:[#allocation2] sm:$0xf] %vm251, %v249
      %v253 = vld [vmem:[%s234] sm:$0xf]
      %v254 = vld [vmem:[%s234 + $0x4] sm:$0x1]
      %v257 = vunpack.c.l.b16 %v253
      %v258 = vunpack.c.l.b16 %v254
      %v259 = vpack.c.b16 %v258, %v257
      %v261 = vshrl.u32 %v259, 16
      %v263 = vshll.u32 %v259, 16
      %v265 = vrot.slane %v263, 1
      %v266 = vor.u32 %v261, %v265
      %267 = vrot.lane.b32.xlu0 %v266, 32
      %v268 = vpop.permute.xlu0 %267
      %vm270 = vcmask 290048
      %271 = vst.msk [vmem:[#allocation2] sm:$0xf] %vm270, %v268
      %v272 = vld [vmem:[%s234] sm:$0xf]
      %v274 = vunpack.c.l.b16 %v272
      %v275 = vpack.c.b16 %v274, %v274
      %vm277 = vcmask 31748
      %278 = vst.msk [vmem:[#allocation2] sm:$0xf0] %vm277, %v275
      %v279 = vld [vmem:[%s234] sm:$0xf]
      %v281 = vunpack.c.l.b16 %v279
      %v282 = vpack.c.b16 %v281, %v281
      %vm284 = vcmask 64548
      %285 = vst.msk [vmem:[#allocation2] sm:$0xf0] %vm284, %v282
      %v286 = vld [vmem:[%s234] sm:$0xf]
      %v287 = vld [vmem:[%s234 + $0x4] sm:$0x1]
      %v290 = vunpack.c.l.b16 %v286
      %v291 = vunpack.c.l.b16 %v287
      %v292 = vpack.c.b16 %v291, %v290
      %v294 = vshrl.u32 %v292, 16
      %v296 = vrot.slane %v294, 4
      %v297 = vshll.u32 %v292, 16
      %v299 = vrot.slane %v297, 5
      %v300 = vor.u32 %v296, %v299
      %301 = vrot.lane.b32.xlu0 %v300, 8
      %v302 = vpop.permute.xlu0 %301
      %vm304 = vcmask 97348
      %305 = vst.msk [vmem:[#allocation2] sm:$0xf0] %vm304, %v302
      %v306 = vld [vmem:[%s234] sm:$0xf]
      %v308 = vunpack.c.l.b16 %v306
      %v309 = vpack.c.b16 %v308, %v308
      %310 = vrot.lane.b32.xlu0 %v309, 4
      %v311 = vpop.permute.xlu0 %310
      %vm313 = vcmask 130148
      %314 = vst.msk [vmem:[#allocation2] sm:$0xf0] %vm313, %v311
      %v315 = vld [vmem:[%s234] sm:$0xf]
      %v317 = vunpack.c.l.b16 %v315
      %v318 = vpack.c.b16 %v317, %v317
      %319 = vrot.lane.b32.xlu0 %v318, 4
      %v320 = vpop.permute.xlu0 %319
      %vm322 = vcmask 162948
      %323 = vst.msk [vmem:[#allocation2] sm:$0xf0] %vm322, %v320
      %v324 = vld [vmem:[%s234] sm:$0xf]
      %v325 = vld [vmem:[%s234 + $0x4] sm:$0x1]
      %v328 = vunpack.c.l.b16 %v324
      %v329 = vunpack.c.l.b16 %v325
      %v330 = vpack.c.b16 %v329, %v328
      %v332 = vshrl.u32 %v330, 16
      %v334 = vrot.slane %v332, 4
      %v335 = vshll.u32 %v330, 16
      %v337 = vrot.slane %v335, 5
      %v338 = vor.u32 %v334, %v337
      %339 = vrot.lane.b32.xlu0 %v338, 12
      %v340 = vpop.permute.xlu0 %339
      %vm342 = vcmask 195748
      %343 = vst.msk [vmem:[#allocation2] sm:$0xf0] %vm342, %v340
      %s344 = scalar_lea.vmem %s165, 16
      %v345 = vld [vmem:[%s344] sm:$0xf]
      %v347 = vunpack.c.l.b16 %v345
      %v348 = vpack.c.b16 %v347, %v347
      %349 = vrot.lane.b32.xlu0 %v348, 24
      %v350 = vpop.permute.xlu0 %349
      %vm352 = vcmask 228548
      %353 = vst.msk [vmem:[#allocation2] sm:$0xf0] %vm352, %v350
      %v354 = vld [vmem:[%s344] sm:$0xf]
      %v356 = vunpack.c.l.b16 %v354
      %v357 = vpack.c.b16 %v356, %v356
      %358 = vrot.lane.b32.xlu0 %v357, 24
      %v359 = vpop.permute.xlu0 %358
      %vm361 = vcmask 261348
      %362 = vst.msk [vmem:[#allocation2] sm:$0xf0] %vm361, %v359
      %v363 = vld [vmem:[%s344] sm:$0xf]
      %v364 = vld [vmem:[%s344 + $0x4] sm:$0x1]
      %v367 = vunpack.c.l.b16 %v363
      %v368 = vunpack.c.l.b16 %v364
      %v369 = vpack.c.b16 %v368, %v367
      %v371 = vshrl.u32 %v369, 16
      %v373 = vrot.slane %v371, 4
      %v374 = vshll.u32 %v369, 16
      %v376 = vrot.slane %v374, 5
      %v377 = vor.u32 %v373, %v376
      %378 = vrot.lane.b32.xlu0 %v377, 32
      %v379 = vpop.permute.xlu0 %378
      %vm381 = vcmask 294148
      %382 = vst.msk [vmem:[#allocation2] sm:$0xf0] %vm381, %v379
      %v383 = vld [vmem:[%s344] sm:$0xf]
      %384 = vst.msk [vmem:[#allocation2 + $0x8] sm:$0xf] %vm173, %v383
      %v385 = vld [vmem:[%s344] sm:$0xf]
      %386 = vst.msk [vmem:[#allocation2 + $0x8] sm:$0xf] %vm176, %v385
      %v387 = vld [vmem:[%s344] sm:$0xf]
      %v388 = vld [vmem:[%s344 + $0x4] sm:$0x1]
      %v391 = vunpack.c.l.b16 %v387
      %v392 = vunpack.c.l.b16 %v388
      %v393 = vpack.c.b16 %v392, %v391
      %v395 = vshrl.u32 %v393, 16
      %v397 = vshll.u32 %v393, 16
      %v399 = vrot.slane %v397, 1
      %v400 = vor.u32 %v395, %v399
      %401 = vrot.lane.b32.xlu0 %v400, 8
      %v402 = vpop.permute.xlu0 %401
      %404 = vst.msk [vmem:[#allocation2 + $0x8] sm:$0xf] %vm195, %v402
      %v405 = vld [vmem:[%s344] sm:$0xf]
      %v407 = vunpack.c.l.b16 %v405
      %v408 = vpack.c.b16 %v407, %v407
      %409 = vrot.lane.b32.xlu0 %v408, 4
      %v410 = vpop.permute.xlu0 %409
      %412 = vst.msk [vmem:[#allocation2 + $0x8] sm:$0xf] %vm204, %v410
      %v413 = vld [vmem:[%s344] sm:$0xf]
      %v415 = vunpack.c.l.b16 %v413
      %v416 = vpack.c.b16 %v415, %v415
      %417 = vrot.lane.b32.xlu0 %v416, 4
      %v418 = vpop.permute.xlu0 %417
      %420 = vst.msk [vmem:[#allocation2 + $0x8] sm:$0xf] %vm213, %v418
      %v421 = vld [vmem:[%s344] sm:$0xf]
      %v422 = vld [vmem:[%s344 + $0x4] sm:$0x1]
      %v425 = vunpack.c.l.b16 %v421
      %v426 = vunpack.c.l.b16 %v422
      %v427 = vpack.c.b16 %v426, %v425
      %v429 = vshrl.u32 %v427, 16
      %v431 = vshll.u32 %v427, 16
      %v433 = vrot.slane %v431, 1
      %v434 = vor.u32 %v429, %v433
      %435 = vrot.lane.b32.xlu0 %v434, 12
      %v436 = vpop.permute.xlu0 %435
      %438 = vst.msk [vmem:[#allocation2 + $0x8] sm:$0xf] %vm232, %v436
      %s439 = scalar_lea.vmem %s165, 24
      %v440 = vld [vmem:[%s439] sm:$0xf]
      %v442 = vunpack.c.l.b16 %v440
      %v443 = vpack.c.b16 %v442, %v442
      %444 = vrot.lane.b32.xlu0 %v443, 24
      %v445 = vpop.permute.xlu0 %444
      %447 = vst.msk [vmem:[#allocation2 + $0x8] sm:$0xf] %vm242, %v445
      %v448 = vld [vmem:[%s439] sm:$0xf]
      %v450 = vunpack.c.l.b16 %v448
      %v451 = vpack.c.b16 %v450, %v450
      %452 = vrot.lane.b32.xlu0 %v451, 24
      %v453 = vpop.permute.xlu0 %452
      %455 = vst.msk [vmem:[#allocation2 + $0x8] sm:$0xf] %vm251, %v453
      %v456 = vld [vmem:[%s439] sm:$0xf]
      %v457 = vld [vmem:[%s439 + $0x4] sm:$0x1]
      %v460 = vunpack.c.l.b16 %v456
      %v461 = vunpack.c.l.b16 %v457
      %v462 = vpack.c.b16 %v461, %v460
      %v464 = vshrl.u32 %v462, 16
      %v466 = vshll.u32 %v462, 16
      %v468 = vrot.slane %v466, 1
      %v469 = vor.u32 %v464, %v468
      %470 = vrot.lane.b32.xlu0 %v469, 32
      %v471 = vpop.permute.xlu0 %470
      %473 = vst.msk [vmem:[#allocation2 + $0x8] sm:$0xf] %vm270, %v471
      %v474 = vld [vmem:[%s439] sm:$0xf]
      %v476 = vunpack.c.l.b16 %v474
      %v477 = vpack.c.b16 %v476, %v476
      %479 = vst.msk [vmem:[#allocation2 + $0x8] sm:$0xf0] %vm277, %v477
      %v480 = vld [vmem:[%s439] sm:$0xf]
      %v482 = vunpack.c.l.b16 %v480
      %v483 = vpack.c.b16 %v482, %v482
      %485 = vst.msk [vmem:[#allocation2 + $0x8] sm:$0xf0] %vm284, %v483
      %v486 = vld [vmem:[%s439] sm:$0xf]
      %v487 = vld [vmem:[%s439 + $0x4] sm:$0x1]
      %v490 = vunpack.c.l.b16 %v486
      %v491 = vunpack.c.l.b16 %v487
      %v492 = vpack.c.b16 %v491, %v490
      %v494 = vshrl.u32 %v492, 16
      %v496 = vrot.slane %v494, 4
      %v497 = vshll.u32 %v492, 16
      %v499 = vrot.slane %v497, 5
      %v500 = vor.u32 %v496, %v499
      %501 = vrot.lane.b32.xlu0 %v500, 8
      %v502 = vpop.permute.xlu0 %501
      %504 = vst.msk [vmem:[#allocation2 + $0x8] sm:$0xf0] %vm304, %v502
      %v505 = vld [vmem:[%s439] sm:$0xf]
      %v507 = vunpack.c.l.b16 %v505
      %v508 = vpack.c.b16 %v507, %v507
      %509 = vrot.lane.b32.xlu0 %v508, 4
      %v510 = vpop.permute.xlu0 %509
      %512 = vst.msk [vmem:[#allocation2 + $0x8] sm:$0xf0] %vm313, %v510
      %v513 = vld [vmem:[%s439] sm:$0xf]
      %v515 = vunpack.c.l.b16 %v513
      %v516 = vpack.c.b16 %v515, %v515
      %517 = vrot.lane.b32.xlu0 %v516, 4
      %v518 = vpop.permute.xlu0 %517
      %520 = vst.msk [vmem:[#allocation2 + $0x8] sm:$0xf0] %vm322, %v518
      %v521 = vld [vmem:[%s439] sm:$0xf]
      %v522 = vld [vmem:[%s439 + $0x4] sm:$0x1]
      %v525 = vunpack.c.l.b16 %v521
      %v526 = vunpack.c.l.b16 %v522
      %v527 = vpack.c.b16 %v526, %v525
      %v529 = vshrl.u32 %v527, 16
      %v531 = vrot.slane %v529, 4
      %v532 = vshll.u32 %v527, 16
      %v534 = vrot.slane %v532, 5
      %v535 = vor.u32 %v531, %v534
      %536 = vrot.lane.b32.xlu0 %v535, 12
      %v537 = vpop.permute.xlu0 %536
      %539 = vst.msk [vmem:[#allocation2 + $0x8] sm:$0xf0] %vm342, %v537
      %s540 = scalar_lea.vmem %s165, 32
      %v541 = vld [vmem:[%s540] sm:$0xf]
      %v543 = vunpack.c.l.b16 %v541
      %v544 = vpack.c.b16 %v543, %v543
      %545 = vrot.lane.b32.xlu0 %v544, 24
      %v546 = vpop.permute.xlu0 %545
      %548 = vst.msk [vmem:[#allocation2 + $0x8] sm:$0xf0] %vm352, %v546
      %v549 = vld [vmem:[%s540] sm:$0xf]
      %v551 = vunpack.c.l.b16 %v549
      %v552 = vpack.c.b16 %v551, %v551
      %553 = vrot.lane.b32.xlu0 %v552, 24
      %v554 = vpop.permute.xlu0 %553
      %556 = vst.msk [vmem:[#allocation2 + $0x8] sm:$0xf0] %vm361, %v554
      %v557 = vld [vmem:[%s540] sm:$0xf]
      %v558 = vld [vmem:[%s540 + $0x4] sm:$0x1]
      %v561 = vunpack.c.l.b16 %v557
      %v562 = vunpack.c.l.b16 %v558
      %v563 = vpack.c.b16 %v562, %v561
      %v565 = vshrl.u32 %v563, 16
      %v567 = vrot.slane %v565, 4
      %v568 = vshll.u32 %v563, 16
      %v570 = vrot.slane %v568, 5
      %v571 = vor.u32 %v567, %v570
      %572 = vrot.lane.b32.xlu0 %v571, 32
      %v573 = vpop.permute.xlu0 %572
      %575 = vst.msk [vmem:[#allocation2 + $0x8] sm:$0xf0] %vm381, %v573
      %v576 = vld [vmem:[%s540] sm:$0xf]
      %577 = vst.msk [vmem:[#allocation2 + $0x10] sm:$0xf] %vm173, %v576
      %v578 = vld [vmem:[%s540] sm:$0xf]
      %579 = vst.msk [vmem:[#allocation2 + $0x10] sm:$0xf] %vm176, %v578
      %v580 = vld [vmem:[%s540] sm:$0xf]
      %v581 = vld [vmem:[%s540 + $0x4] sm:$0x1]
      %v584 = vunpack.c.l.b16 %v580
      %v585 = vunpack.c.l.b16 %v581
      %v586 = vpack.c.b16 %v585, %v584
      %v588 = vshrl.u32 %v586, 16
      %v590 = vshll.u32 %v586, 16
      %v592 = vrot.slane %v590, 1
      %v593 = vor.u32 %v588, %v592
      %594 = vrot.lane.b32.xlu0 %v593, 8
      %v595 = vpop.permute.xlu0 %594
      %597 = vst.msk [vmem:[#allocation2 + $0x10] sm:$0xf] %vm195, %v595
      %v598 = vld [vmem:[%s540] sm:$0xf]
      %v600 = vunpack.c.l.b16 %v598
      %v601 = vpack.c.b16 %v600, %v600
      %602 = vrot.lane.b32.xlu0 %v601, 4
      %v603 = vpop.permute.xlu0 %602
      %605 = vst.msk [vmem:[#allocation2 + $0x10] sm:$0xf] %vm204, %v603
      %v606 = vld [vmem:[%s540] sm:$0xf]
      %v608 = vunpack.c.l.b16 %v606
      %v609 = vpack.c.b16 %v608, %v608
      %610 = vrot.lane.b32.xlu0 %v609, 4
      %v611 = vpop.permute.xlu0 %610
      %613 = vst.msk [vmem:[#allocation2 + $0x10] sm:$0xf] %vm213, %v611
      %v614 = vld [vmem:[%s540] sm:$0xf]
      %v615 = vld [vmem:[%s540 + $0x4] sm:$0x1]
      %v618 = vunpack.c.l.b16 %v614
      %v619 = vunpack.c.l.b16 %v615
      %v620 = vpack.c.b16 %v619, %v618
      %v622 = vshrl.u32 %v620, 16
      %v624 = vshll.u32 %v620, 16
      %v626 = vrot.slane %v624, 1
      %v627 = vor.u32 %v622, %v626
      %628 = vrot.lane.b32.xlu0 %v627, 12
      %v629 = vpop.permute.xlu0 %628
      %631 = vst.msk [vmem:[#allocation2 + $0x10] sm:$0xf] %vm232, %v629
      %s632 = scalar_lea.vmem %s165, 40
      %v633 = vld [vmem:[%s632] sm:$0xf]
      %v635 = vunpack.c.l.b16 %v633
      %v636 = vpack.c.b16 %v635, %v635
      %637 = vrot.lane.b32.xlu0 %v636, 24
      %v638 = vpop.permute.xlu0 %637
      %640 = vst.msk [vmem:[#allocation2 + $0x10] sm:$0xf] %vm242, %v638
      %v641 = vld [vmem:[%s632] sm:$0xf]
      %v643 = vunpack.c.l.b16 %v641
      %v644 = vpack.c.b16 %v643, %v643
      %645 = vrot.lane.b32.xlu0 %v644, 24
      %v646 = vpop.permute.xlu0 %645
      %648 = vst.msk [vmem:[#allocation2 + $0x10] sm:$0xf] %vm251, %v646
      %v649 = vld [vmem:[%s632] sm:$0xf]
      %v650 = vld [vmem:[%s632 + $0x4] sm:$0x1]
      %v653 = vunpack.c.l.b16 %v649
      %v654 = vunpack.c.l.b16 %v650
      %v655 = vpack.c.b16 %v654, %v653
      %v657 = vshrl.u32 %v655, 16
      %v659 = vshll.u32 %v655, 16
      %v661 = vrot.slane %v659, 1
      %v662 = vor.u32 %v657, %v661
      %663 = vrot.lane.b32.xlu0 %v662, 32
      %v664 = vpop.permute.xlu0 %663
      %666 = vst.msk [vmem:[#allocation2 + $0x10] sm:$0xf] %vm270, %v664
      %v667 = vld [vmem:[%s632] sm:$0xf]
      %v669 = vunpack.c.l.b16 %v667
      %v670 = vpack.c.b16 %v669, %v669
      %672 = vst.msk [vmem:[#allocation2 + $0x10] sm:$0xf0] %vm277, %v670
      %v673 = vld [vmem:[%s632] sm:$0xf]
      %v675 = vunpack.c.l.b16 %v673
      %v676 = vpack.c.b16 %v675, %v675
      %678 = vst.msk [vmem:[#allocation2 + $0x10] sm:$0xf0] %vm284, %v676
      %v679 = vld [vmem:[%s632] sm:$0xf]
      %v680 = vld [vmem:[%s632 + $0x4] sm:$0x1]
      %v683 = vunpack.c.l.b16 %v679
      %v684 = vunpack.c.l.b16 %v680
      %v685 = vpack.c.b16 %v684, %v683
      %v687 = vshrl.u32 %v685, 16
      %v689 = vrot.slane %v687, 4
      %v690 = vshll.u32 %v685, 16
      %v692 = vrot.slane %v690, 5
      %v693 = vor.u32 %v689, %v692
      %694 = vrot.lane.b32.xlu0 %v693, 8
      %v695 = vpop.permute.xlu0 %694
      %697 = vst.msk [vmem:[#allocation2 + $0x10] sm:$0xf0] %vm304, %v695
      %v698 = vld [vmem:[%s632] sm:$0xf]
      %v700 = vunpack.c.l.b16 %v698
      %v701 = vpack.c.b16 %v700, %v700
      %702 = vrot.lane.b32.xlu0 %v701, 4
      %v703 = vpop.permute.xlu0 %702
      %705 = vst.msk [vmem:[#allocation2 + $0x10] sm:$0xf0] %vm313, %v703
      %v706 = vld [vmem:[%s632] sm:$0xf]
      %v708 = vunpack.c.l.b16 %v706
      %v709 = vpack.c.b16 %v708, %v708
      %710 = vrot.lane.b32.xlu0 %v709, 4
      %v711 = vpop.permute.xlu0 %710
      %713 = vst.msk [vmem:[#allocation2 + $0x10] sm:$0xf0] %vm322, %v711
      %v714 = vld [vmem:[%s632] sm:$0xf]
      %v715 = vld [vmem:[%s632 + $0x4] sm:$0x1]
      %v718 = vunpack.c.l.b16 %v714
      %v719 = vunpack.c.l.b16 %v715
      %v720 = vpack.c.b16 %v719, %v718
      %v722 = vshrl.u32 %v720, 16
      %v724 = vrot.slane %v722, 4
      %v725 = vshll.u32 %v720, 16
      %v727 = vrot.slane %v725, 5
      %v728 = vor.u32 %v724, %v727
      %729 = vrot.lane.b32.xlu0 %v728, 12
      %v730 = vpop.permute.xlu0 %729
      %732 = vst.msk [vmem:[#allocation2 + $0x10] sm:$0xf0] %vm342, %v730
      %s733 = scalar_lea.vmem %s165, 48
      %v734 = vld [vmem:[%s733] sm:$0xf]
      %v736 = vunpack.c.l.b16 %v734
      %v737 = vpack.c.b16 %v736, %v736
      %738 = vrot.lane.b32.xlu0 %v737, 24
      %v739 = vpop.permute.xlu0 %738
      %741 = vst.msk [vmem:[#allocation2 + $0x10] sm:$0xf0] %vm352, %v739
      %v742 = vld [vmem:[%s733] sm:$0xf]
      %v744 = vunpack.c.l.b16 %v742
      %v745 = vpack.c.b16 %v744, %v744
      %746 = vrot.lane.b32.xlu0 %v745, 24
      %v747 = vpop.permute.xlu0 %746
      %749 = vst.msk [vmem:[#allocation2 + $0x10] sm:$0xf0] %vm361, %v747
      %v750 = vld [vmem:[%s733] sm:$0xf]
      %v751 = vld [vmem:[%s733 + $0x4] sm:$0x1]
      %v754 = vunpack.c.l.b16 %v750
      %v755 = vunpack.c.l.b16 %v751
      %v756 = vpack.c.b16 %v755, %v754
      %v758 = vshrl.u32 %v756, 16
      %v760 = vrot.slane %v758, 4
      %v761 = vshll.u32 %v756, 16
      %v763 = vrot.slane %v761, 5
      %v764 = vor.u32 %v760, %v763
      %765 = vrot.lane.b32.xlu0 %v764, 32
      %v766 = vpop.permute.xlu0 %765
      %768 = vst.msk [vmem:[#allocation2 + $0x10] sm:$0xf0] %vm381, %v766
      %v769 = vld [vmem:[%s733] sm:$0xf]
      %770 = vst.msk [vmem:[#allocation2 + $0x18] sm:$0xf] %vm173, %v769
      %v771 = vld [vmem:[%s733] sm:$0xf]
      %772 = vst.msk [vmem:[#allocation2 + $0x18] sm:$0xf] %vm176, %v771
      %v773 = vld [vmem:[%s733] sm:$0xf]
      %v774 = vld [vmem:[%s733 + $0x4] sm:$0x1]
      %v777 = vunpack.c.l.b16 %v773
      %v778 = vunpack.c.l.b16 %v774
      %v779 = vpack.c.b16 %v778, %v777
      %v781 = vshrl.u32 %v779, 16
      %v783 = vshll.u32 %v779, 16
      %v785 = vrot.slane %v783, 1
      %v786 = vor.u32 %v781, %v785
      %787 = vrot.lane.b32.xlu0 %v786, 8
      %v788 = vpop.permute.xlu0 %787
      %790 = vst.msk [vmem:[#allocation2 + $0x18] sm:$0xf] %vm195, %v788
      %v791 = vld [vmem:[%s733] sm:$0xf]
      %v793 = vunpack.c.l.b16 %v791
      %v794 = vpack.c.b16 %v793, %v793
      %795 = vrot.lane.b32.xlu0 %v794, 4
      %v796 = vpop.permute.xlu0 %795
      %798 = vst.msk [vmem:[#allocation2 + $0x18] sm:$0xf] %vm204, %v796
      %v799 = vld [vmem:[%s733] sm:$0xf]
      %v801 = vunpack.c.l.b16 %v799
      %v802 = vpack.c.b16 %v801, %v801
      %803 = vrot.lane.b32.xlu0 %v802, 4
      %v804 = vpop.permute.xlu0 %803
      %806 = vst.msk [vmem:[#allocation2 + $0x18] sm:$0xf] %vm213, %v804
      %v807 = vld [vmem:[%s733] sm:$0xf]
      %v808 = vld [vmem:[%s733 + $0x4] sm:$0x1]
      %v811 = vunpack.c.l.b16 %v807
      %v812 = vunpack.c.l.b16 %v808
      %v813 = vpack.c.b16 %v812, %v811
      %v815 = vshrl.u32 %v813, 16
      %v817 = vshll.u32 %v813, 16
      %v819 = vrot.slane %v817, 1
      %v820 = vor.u32 %v815, %v819
      %821 = vrot.lane.b32.xlu0 %v820, 12
      %v822 = vpop.permute.xlu0 %821
      %824 = vst.msk [vmem:[#allocation2 + $0x18] sm:$0xf] %vm232, %v822
      %s825 = scalar_lea.vmem %s165, 56
      %v826 = vld [vmem:[%s825] sm:$0xf]
      %v828 = vunpack.c.l.b16 %v826
      %v829 = vpack.c.b16 %v828, %v828
      %830 = vrot.lane.b32.xlu0 %v829, 24
      %v831 = vpop.permute.xlu0 %830
      %833 = vst.msk [vmem:[#allocation2 + $0x18] sm:$0xf] %vm242, %v831
      %v834 = vld [vmem:[%s825] sm:$0xf]
      %v836 = vunpack.c.l.b16 %v834
      %v837 = vpack.c.b16 %v836, %v836
      %838 = vrot.lane.b32.xlu0 %v837, 24
      %v839 = vpop.permute.xlu0 %838
      %841 = vst.msk [vmem:[#allocation2 + $0x18] sm:$0xf] %vm251, %v839
      %v842 = vld [vmem:[%s825] sm:$0xf]
      %v843 = vld [vmem:[%s825 + $0x4] sm:$0x1]
      %v846 = vunpack.c.l.b16 %v842
      %v847 = vunpack.c.l.b16 %v843
      %v848 = vpack.c.b16 %v847, %v846
      %v850 = vshrl.u32 %v848, 16
      %v852 = vshll.u32 %v848, 16
      %v854 = vrot.slane %v852, 1
      %v855 = vor.u32 %v850, %v854
      %856 = vrot.lane.b32.xlu0 %v855, 32
      %v857 = vpop.permute.xlu0 %856
      %859 = vst.msk [vmem:[#allocation2 + $0x18] sm:$0xf] %vm270, %v857
      %v860 = vld [vmem:[%s825] sm:$0xf]
      %v862 = vunpack.c.l.b16 %v860
      %v863 = vpack.c.b16 %v862, %v862
      %865 = vst.msk [vmem:[#allocation2 + $0x18] sm:$0xf0] %vm277, %v863
      %v866 = vld [vmem:[%s825] sm:$0xf]
      %v868 = vunpack.c.l.b16 %v866
      %v869 = vpack.c.b16 %v868, %v868
      %871 = vst.msk [vmem:[#allocation2 + $0x18] sm:$0xf0] %vm284, %v869
      %v872 = vld [vmem:[%s825] sm:$0xf]
      %v873 = vld [vmem:[%s825 + $0x4] sm:$0x1]
      %v876 = vunpack.c.l.b16 %v872
      %v877 = vunpack.c.l.b16 %v873
      %v878 = vpack.c.b16 %v877, %v876
      %v880 = vshrl.u32 %v878, 16
      %v882 = vrot.slane %v880, 4
      %v883 = vshll.u32 %v878, 16
      %v885 = vrot.slane %v883, 5
      %v886 = vor.u32 %v882, %v885
      %887 = vrot.lane.b32.xlu0 %v886, 8
      %v888 = vpop.permute.xlu0 %887
      %890 = vst.msk [vmem:[#allocation2 + $0x18] sm:$0xf0] %vm304, %v888
      %v891 = vld [vmem:[%s825] sm:$0xf]
      %v893 = vunpack.c.l.b16 %v891
      %v894 = vpack.c.b16 %v893, %v893
      %895 = vrot.lane.b32.xlu0 %v894, 4
      %v896 = vpop.permute.xlu0 %895
      %898 = vst.msk [vmem:[#allocation2 + $0x18] sm:$0xf0] %vm313, %v896
      %v899 = vld [vmem:[%s825] sm:$0xf]
      %v901 = vunpack.c.l.b16 %v899
      %v902 = vpack.c.b16 %v901, %v901
      %903 = vrot.lane.b32.xlu0 %v902, 4
      %v904 = vpop.permute.xlu0 %903
      %906 = vst.msk [vmem:[#allocation2 + $0x18] sm:$0xf0] %vm322, %v904
      %v907 = vld [vmem:[%s825] sm:$0xf]
      %v908 = vld [vmem:[%s825 + $0x4] sm:$0x1]
      %v911 = vunpack.c.l.b16 %v907
      %v912 = vunpack.c.l.b16 %v908
      %v913 = vpack.c.b16 %v912, %v911
      %v915 = vshrl.u32 %v913, 16
      %v917 = vrot.slane %v915, 4
      %v918 = vshll.u32 %v913, 16
      %v920 = vrot.slane %v918, 5
      %v921 = vor.u32 %v917, %v920
      %922 = vrot.lane.b32.xlu0 %v921, 12
      %v923 = vpop.permute.xlu0 %922
      %925 = vst.msk [vmem:[#allocation2 + $0x18] sm:$0xf0] %vm342, %v923
      %s926 = scalar_lea.vmem %s165, 64
      %v927 = vld [vmem:[%s926] sm:$0xf]
      %v929 = vunpack.c.l.b16 %v927
      %v930 = vpack.c.b16 %v929, %v929
      %931 = vrot.lane.b32.xlu0 %v930, 24
      %v932 = vpop.permute.xlu0 %931
      %934 = vst.msk [vmem:[#allocation2 + $0x18] sm:$0xf0] %vm352, %v932
      %v935 = vld [vmem:[%s926] sm:$0xf]
      %v937 = vunpack.c.l.b16 %v935
      %v938 = vpack.c.b16 %v937, %v937
      %939 = vrot.lane.b32.xlu0 %v938, 24
      %v940 = vpop.permute.xlu0 %939
      %942 = vst.msk [vmem:[#allocation2 + $0x18] sm:$0xf0] %vm361, %v940
      %v943 = vld [vmem:[%s926] sm:$0xf]
      %v944 = vld [vmem:[%s926 + $0x4] sm:$0x1]
      %v947 = vunpack.c.l.b16 %v943
      %v948 = vunpack.c.l.b16 %v944
      %v949 = vpack.c.b16 %v948, %v947
      %v951 = vshrl.u32 %v949, 16
      %v953 = vrot.slane %v951, 4
      %v954 = vshll.u32 %v949, 16
      %v956 = vrot.slane %v954, 5
      %v957 = vor.u32 %v953, %v956
      %958 = vrot.lane.b32.xlu0 %v957, 32
      %v959 = vpop.permute.xlu0 %958
      %961 = vst.msk [vmem:[#allocation2 + $0x18] sm:$0xf0] %vm381, %v959
      %v962 = vld [vmem:[#allocation2] sm:$0xff]
      %v963 = vld [vmem:[#allocation2 + $0x8] sm:$0xff]
      %v964 = vld [vmem:[#allocation2 + $0x10] sm:$0xff]
      %v965 = vld [vmem:[#allocation2 + $0x18] sm:$0xff]
      %v966 = vld [vmem:[%s1] sm:$0xf]
      %v967 = vld [vmem:[%s1 + $0x4] sm:$0xf]
      %v968 = vld [vmem:[%s1 + $0x8] sm:$0xf]
      %v969 = vld [vmem:[%s1 + $0xc] sm:$0xf]
      %v970 = vld [vmem:[%s1 + $0x10] sm:$0x3]
      %v971 = vld [vmem:[%s2] sm:$0x1]
      %v973 = vlaneseq
      %v974 = vshrl.u32 %v973, 7
      %v975 = vsub.s32 0, %v974
      %v976 = vrot.slane %v971, %v975
      %v983 = vunpack.c.l.b16 %v966
      %v984 = vunpack.c.l.b16 %v967
      %v985 = vunpack.c.l.b16 %v968
      %v986 = vunpack.c.l.b16 %v969
      %v987 = vunpack.c.l.b16 %v970
      %v988 = vpack.c.b16 %v984, %v983
      %v989 = vpack.c.b16 %v986, %v985
      %v990 = vpack.c.b16 %v987, %v987
      %vm993 = vcmask 293888
      %v995 = vsel %vm993, %v962, 0
      %v998 = vsel %vm993, %v963, 0
      %v1001 = vsel %vm993, %v964, 0
      %v1004 = vsel %vm993, %v965, 0
      %vm1006 = vcmask 1041408
      %v1008 = vsel %vm1006, %v990, 0
      %1010 = vmatprep.subr.bf16.mxu0 0
      %1011 = vmatpush1.bf16.msra.mxu0 %v988
      %1012 = vmatprep.subr.bf16.mxu0 0
      %1013 = vmatpush1.bf16.msra.mxu0 %v989
      %1014 = vmatprep.subr.bf16.mxu0 0
      %1015 = vmatpush1.bf16.msra.mxu0 %v1008
      %1016 = vmatprep.subr.bf16.mxu0 0
      %1017 = vmatpush1.bf16.msra.mxu0 0
      %1018 = vmatprep.subr.bf16.mxu0 0
      %1019 = vmatpush1.bf16.msra.mxu0 0
      %1020 = vmatprep.subr.bf16.mxu0 0
      %1021 = vmatpush1.bf16.msra.mxu0 0
      %1022 = vmatprep.subr.bf16.mxu0 0
      %1023 = vmatpush1.bf16.msra.mxu0 0
      %1024 = vmatprep.subr.bf16.mxu0 0
      %1025 = vmatpush1.bf16.msra.mxu0 0
      %1026 = vmatprep.subr.bf16.mxu0 0
      %1027 = vmatpush1.bf16.msra.mxu0 0
      %1028 = vmatprep.subr.bf16.mxu0 0
      %1029 = vmatpush1.bf16.msra.mxu0 0
      %1030 = vmatprep.subr.bf16.mxu0 0
      %1031 = vmatpush1.bf16.msra.mxu0 0
      %1032 = vmatprep.subr.bf16.mxu0 0
      %1033 = vmatpush1.bf16.msra.mxu0 0
      %1034 = vmatprep.subr.bf16.mxu0 0
      %1035 = vmatpush1.bf16.msra.mxu0 0
      %1036 = vmatprep.subr.bf16.mxu0 0
      %1037 = vmatpush1.bf16.msra.mxu0 0
      %1038 = vmatprep.subr.bf16.mxu0 0
      %1039 = vmatpush1.bf16.msra.mxu0 0
      %1040 = vmatprep.subr.bf16.mxu0 0
      %1041 = vmatpush1.bf16.msra.mxu0 0
      %1042 = vmatprep.mubr.bf16.mxu0 0
      %1043 = vmatmul.mubr.bf16.gmra.mrb[0].mxu0 %v995
      %v1044 = vpop.f32.mrb[0].mxu0
      %v1045 = vadd.f32 %v976, %v1044
      %v1046 = vpop.f32.mrb[0].mxu0
      %v1047 = vpop.f32.mrb[0].mxu0
      %v1048 = vadd.f32 %v976, %v1047
      %v1049 = vpop.f32.mrb[0].mxu0
      %1050 = vmatprep.mubr.bf16.mxu0 0
      %1051 = vmatmul.mubr.bf16.gmra.mrb[0].mxu0 %v998
      %v1052 = vpop.f32.mrb[0].mxu0
      %v1053 = vadd.f32 %v976, %v1052
      %v1054 = vpop.f32.mrb[0].mxu0
      %v1055 = vpop.f32.mrb[0].mxu0
      %v1056 = vadd.f32 %v976, %v1055
      %v1057 = vpop.f32.mrb[0].mxu0
      %1058 = vmatprep.mubr.bf16.mxu0 0
      %1059 = vmatmul.mubr.bf16.gmra.mrb[0].mxu0 %v1001
      %v1060 = vpop.f32.mrb[0].mxu0
      %v1061 = vadd.f32 %v976, %v1060
      %v1062 = vpop.f32.mrb[0].mxu0
      %v1063 = vpop.f32.mrb[0].mxu0
      %v1064 = vadd.f32 %v976, %v1063
      %v1065 = vpop.f32.mrb[0].mxu0
      %1066 = vmatprep.mubr.bf16.mxu0 0
      %1067 = vmatmul.mubr.bf16.gmra.mrb[0].mxu0 %v1004
      %v1068 = vpop.f32.mrb[0].mxu0
      %v1069 = vadd.f32 %v976, %v1068
      %v1070 = vpop.f32.mrb[0].mxu0
      %v1071 = vpop.f32.mrb[0].mxu0
      %v1072 = vadd.f32 %v976, %v1071
      %v1073 = vpop.f32.mrb[0].mxu0
      %1074 = vdwg.mxu0
      %v1075 = vmax.f32 %v1045, 0.0
      %v1076 = vmax.f32 %v1048, 0.0
      %v1077 = vmax.f32 %v1053, 0.0
      %v1078 = vmax.f32 %v1056, 0.0
      %v1079 = vmax.f32 %v1061, 0.0
      %v1080 = vmax.f32 %v1064, 0.0
      %v1081 = vmax.f32 %v1069, 0.0
      %v1082 = vmax.f32 %v1072, 0.0
      %v1083 = vpack.c.bf16 %v1076, %v1075
      %v1084 = vpack.c.bf16 %v1078, %v1077
      %v1085 = vpack.c.bf16 %v1080, %v1079
      %v1086 = vpack.c.bf16 %v1082, %v1081
      %v1091 = vunpack.c.l.b16 %v1083
      %v1092 = vunpack.c.h.b16 %v1083
      %v1093 = vunpack.c.l.b16 %v1084
      %v1094 = vunpack.c.h.b16 %v1084
      %v1095 = vunpack.c.l.b16 %v1085
      %v1096 = vunpack.c.h.b16 %v1085
      %v1097 = vunpack.c.l.b16 %v1086
      %v1098 = vunpack.c.h.b16 %v1086
      %v1099 = vpack.c.b16 %v1091, %v1091
      %v1100 = vpack.c.b16 %v1092, %v1092
      %v1101 = vpack.c.b16 %v1093, %v1093
      %v1102 = vpack.c.b16 %v1094, %v1094
      %v1103 = vpack.c.b16 %v1095, %v1095
      %v1104 = vpack.c.b16 %v1096, %v1096
      %v1105 = vpack.c.b16 %v1097, %v1097
      %v1106 = vpack.c.b16 %v1098, %v1098
      %vm1115 = vcmask 125952
      %1116 = vst.msk [vmem:[%s170] sm:$0xf] %vm1115, %v1099
      %1117 = vst.msk [vmem:[%s170 + $0x4] sm:$0xf] %vm1115, %v1100
      %1118 = vst.msk [vmem:[%s170 + $0x8] sm:$0xf] %vm1115, %v1101
      %1119 = vst.msk [vmem:[%s170 + $0xc] sm:$0xf] %vm1115, %v1102
      %1120 = vst.msk [vmem:[%s170 + $0x10] sm:$0xf] %vm1115, %v1103
      %1121 = vst.msk [vmem:[%s170 + $0x14] sm:$0xf] %vm1115, %v1104
      %1122 = vst.msk [vmem:[%s170 + $0x18] sm:$0xf] %vm1115, %v1105
      %1123 = vst.msk [vmem:[%s170 + $0x1c] sm:$0xf] %vm1115, %v1106
      %p1124 = scmp.lt.s32.totalorder %s14, 1
      %s1125 = scalar_select %p1124, %s14, 1
      %s1126 = smul.addr %s1125, 8
      %s1127 = smul.addr %s1126, 4
      %s1128 = scalar_lea.vmem %s3, %s1127
      // Predicated region
      $region33: #{forward.3} parent=31 // pred_check
        %p1129 = pneg %p100
      $region34: #{forward.3} parent=31 // pred_check_branch
        %1131 = sbr.rel (%p1129) target = $region36
      $region35: #{forward.3} parent=31 // pred_region
        _
      $region36: #{forward.3} parent=31 // pred_fallthru
        _
    $region32: #{forward.3} parent=5 // pred_fallthru
      _
    %p1132 = scmp.le.s32.totalorder 2, %s9
    // Predicated region
    $region37: #{forward.3} parent=5 // pred_check
      %p1133 = pneg %p1132
    $region38: #{forward.3} parent=5 // pred_check_branch
      %1135 = sbr.rel (%p1133) target = $region40
    $region39: #{forward.3} parent=5 // pred_region
      %s1136 = ssub.s32 %s9, 2
      // Predicated region
      $region41: #{forward.3} parent=39 // pred_check
        %p1137 = pneg %p106
      $region42: #{forward.3} parent=39 // pred_check_branch
        %1139 = sbr.rel (%p1137) target = $region44
      $region43: #{forward.3} parent=39 // pred_region
        %p1140 = scmp.lt.s32.totalorder %s15, 1
        %s1141 = scalar_select %p1140, %s15, 1
        %s1142 = smul.addr %s1141, 8
        %s1143 = smul.addr %s1142, 4
        %s1144 = scalar_lea.vmem %s3, %s1143
      $region44: #{forward.3} parent=39 // pred_fallthru
        _
    $region40: #{forward.3} parent=5 // pred_fallthru
      _
  $region6: #{forward.3} parent=0 // loop_footer
    %s13 = sadd.s32 1, %s9
  $region7: #{forward.3} parent=0 // loop_footer_branch
    %8 = sbr.rel target = $region3
  $region8: #{forward.3} parent=0 // loop_exit
    _

// kernel: forward.4
$region0: #{forward.4}
  #allocation0 [shape = 'u32[]', space=smem, size = 0x4, offset = 0x4, fixed_abs, tag = 'smem constant byte address 0x4 - core index']
  #allocation1 [shape = 'u32[144,128]{1,0:T(1,128)}', space=vmem, size = 0x12000, scoped, tag = 'internal scratch']
  #allocation2 [shape = 'bf16[16,144]{1,0:T(16,128)(2,1)}', space=vmem, size = 0x2000, scoped, tag = 'scratch operand']
  %s0 = inlined_call_operand.vmem [shape: bf16[2,5,5,64], index: 0, kind: input, shape index: {}]
  %s1 = inlined_call_operand.vmem [shape: bf16[144,32], index: 1, kind: input, shape index: {}]
  %s2 = inlined_call_operand.vmem [shape: f32[1,32], index: 2, kind: input, shape index: {}]
  %s3 = inlined_call_operand.vmem [shape: bf16[2,16,32], index: 3, kind: output, shape index: {}]
  %s4 = sld [smem:[#allocation0]]
  $region45: #{forward.4} parent=0
    _
  %s6 = ssub.s32 1, %s4
  %s7 = scalar_select 0, %s6, %s4
  loop: start=0, step=1, limit=4
  $region2: #{forward.4} parent=0 // loop_pre_header
    _
  $region3: #{forward.4} parent=0 // loop_header
    %s9 = sphi 0, %s13
    %p10 = scmp.ge.s32.totalorder %s9, 4
    %s19 = sphi 0, %s21
    %s22 = sphi 0, %s19
    %s23 = sphi 0, %s22
    %s39 = sphi 0, %s23
    %s43 = sphi 0, %s43
    %s45 = sphi 0, %s43
    %s46 = sphi 0, %s45
    %s60 = sphi 0, %s46
    %s64 = sphi 0, %s64
    %s66 = sphi 0, %s64
    %s67 = sphi 0, %s66
    %s81 = sphi 0, %s67
    %s87 = sphi 0, %s89
    %s90 = sphi 0, %s87
    %s91 = sphi 0, %s90
    %s107 = sphi 0, %s91
  $region4: #{forward.4} parent=0 // loop_header_branch
    %12 = sbr.rel (%p10) target = $region8
  $region5: #{forward.4} parent=0 // loop_body
    %s14 = ssub.s32 %s9, 1
    %s15 = ssub.s32 %s9, 2
    %s16 = sadd.s32 %s9, 1
    %s17 = ssub.s32 %s9, %s16
    %p18 = scmp.eq.s32.totalorder %s17, 0
    %s20 = sadd.s32 %s19, 1
    %s21 = scalar_select %p18, %s19, %s20
    %p24 = pneg %p18
    %p25 = scmp.eq.s32.totalorder %s9, 1
    %p26 = por %p24, %p25
    %p27 = scmp.ne.s32.totalorder %s19, %s22
    %p28 = scmp.eq.s32.totalorder %s9, 0
    %p29 = por %p27, %p28
    %p30 = scmp.ne.s32.totalorder %s19, %s22
    %p31 = scmp.eq.s32.totalorder %s14, 1
    %p32 = por %p30, %p31
    %p33 = scmp.ne.s32.totalorder %s22, %s23
    %p34 = scmp.eq.s32.totalorder %s14, 0
    %p35 = por %p33, %p34
    %p36 = scmp.ne.s32.totalorder %s22, %s23
    %p37 = scmp.eq.s32.totalorder %s15, 1
    %p38 = por %p36, %p37
    %p40 = scmp.ne.s32.totalorder %s23, %s39
    %p41 = scmp.eq.s32.totalorder %s15, 0
    %p42 = por %p40, %p41
    %s44 = sadd.s32 %s43, 1
    %p47 = scmp.eq.s32.totalorder %s9, 1
    %p48 = scmp.ne.s32.totalorder %s43, %s45
    %p49 = scmp.eq.s32.totalorder %s9, 0
    %p50 = por %p48, %p49
    %p51 = scmp.ne.s32.totalorder %s43, %s45
    %p52 = scmp.eq.s32.totalorder %s14, 1
    %p53 = por %p51, %p52
    %p54 = scmp.ne.s32.totalorder %s45, %s46
    %p55 = scmp.eq.s32.totalorder %s14, 0
    %p56 = por %p54, %p55
    %p57 = scmp.ne.s32.totalorder %s45, %s46
    %p58 = scmp.eq.s32.totalorder %s15, 1
    %p59 = por %p57, %p58
    %p61 = scmp.ne.s32.totalorder %s46, %s60
    %p62 = scmp.eq.s32.totalorder %s15, 0
    %p63 = por %p61, %p62
    %s65 = sadd.s32 %s64, 1
    %p68 = scmp.eq.s32.totalorder %s9, 1
    %p69 = scmp.ne.s32.totalorder %s64, %s66
    %p70 = scmp.eq.s32.totalorder %s9, 0
    %p71 = por %p69, %p70
    %p72 = scmp.ne.s32.totalorder %s64, %s66
    %p73 = scmp.eq.s32.totalorder %s14, 1
    %p74 = por %p72, %p73
    %p75 = scmp.ne.s32.totalorder %s66, %s67
    %p76 = scmp.eq.s32.totalorder %s14, 0
    %p77 = por %p75, %p76
    %p78 = scmp.ne.s32.totalorder %s66, %s67
    %p79 = scmp.eq.s32.totalorder %s15, 1
    %p80 = por %p78, %p79
    %p82 = scmp.ne.s32.totalorder %s67, %s81
    %p83 = scmp.eq.s32.totalorder %s15, 0
    %p84 = por %p82, %p83
    %s85 = ssub.s32 %s9, %s16
    %p86 = scmp.eq.s32.totalorder %s85, 0
    %s88 = sadd.s32 %s87, 1
    %s89 = scalar_select %p86, %s87, %s88
    %p92 = pneg %p86
    %p93 = scmp.eq.s32.totalorder %s9, 1
    %p94 = por %p92, %p93
    %p95 = scmp.ne.s32.totalorder %s87, %s90
    %p96 = scmp.eq.s32.totalorder %s9, 0
    %p97 = por %p95, %p96
    %p98 = scmp.ne.s32.totalorder %s87, %s90
    %p99 = scmp.eq.s32.totalorder %s14, 1
    %p100 = por %p98, %p99
    %p101 = scmp.ne.s32.totalorder %s90, %s91
    %p102 = scmp.eq.s32.totalorder %s14, 0
    %p103 = por %p101, %p102
    %p104 = scmp.ne.s32.totalorder %s90, %s91
    %p105 = scmp.eq.s32.totalorder %s15, 1
    %p106 = por %p104, %p105
    %p108 = scmp.ne.s32.totalorder %s91, %s107
    %p109 = scmp.eq.s32.totalorder %s15, 0
    %p110 = por %p108, %p109
    %p111 = scmp.le.s32.totalorder 1, %s9
    %p112 = scmp.lt.s32.totalorder %s9, 3
    %p113 = pnand %p111, %p112
    %p114 = pneg %p113
    // Predicated region
    $region9: #{forward.4} parent=5 // pred_check
      _
    $region10: #{forward.4} parent=5 // pred_check_branch
      %116 = sbr.rel (%p113) target = $region12
    $region11: #{forward.4} parent=5 // pred_region
      %s117 = ssub.s32 %s9, 1
      // Predicated region
      $region13: #{forward.4} parent=11 // pred_check
        %p118 = pneg %p56
      $region14: #{forward.4} parent=11 // pred_check_branch
        %120 = sbr.rel (%p118) target = $region16
      $region15: #{forward.4} parent=11 // pred_region
        _
      $region16: #{forward.4} parent=11 // pred_fallthru
        _
      // Predicated region
      $region17: #{forward.4} parent=11 // pred_check
        %p121 = pneg %p77
      $region18: #{forward.4} parent=11 // pred_check_branch
        %123 = sbr.rel (%p121) target = $region20
      $region19: #{forward.4} parent=11 // pred_region
        _
      $region20: #{forward.4} parent=11 // pred_fallthru
        _
    $region12: #{forward.4} parent=5 // pred_fallthru
      _
    %p124 = scmp.lt.s32.totalorder %s9, 2
    // Predicated region
    $region21: #{forward.4} parent=5 // pred_check
      %p125 = pneg %p124
    $region22: #{forward.4} parent=5 // pred_check_branch
      %127 = sbr.rel (%p125) target = $region24
    $region23: #{forward.4} parent=5 // pred_region
      // Predicated region
      $region25: #{forward.4} parent=23 // pred_check
        %p128 = pneg %p29
      $region26: #{forward.4} parent=23 // pred_check_branch
        %130 = sbr.rel (%p128) target = $region28
      $region27: #{forward.4} parent=23 // pred_region
        %p131 = scmp.lt.s32.totalorder %s9, 1
        %s132 = scalar_select %p131, %s9, 1
        %s133 = smul.addr %s132, 5
        %s134 = smul.addr %s133, 4
        %s135 = scalar_lea.vmem %s0, %s134
      $region28: #{forward.4} parent=23 // pred_fallthru
        _
    $region24: #{forward.4} parent=5 // pred_fallthru
      _
    %p136 = scmp.le.s32.totalorder 1, %s9
    %p137 = scmp.lt.s32.totalorder %s9, 3
    %p138 = pnand %p136, %p137
    %p139 = pneg %p138
    // Predicated region
    $region29: #{forward.4} parent=5 // pred_check
      _
    $region30: #{forward.4} parent=5 // pred_check_branch
      %141 = sbr.rel (%p138) target = $region32
    $region31: #{forward.4} parent=5 // pred_region
      %s142 = ssub.s32 %s9, 1
      %p143 = scmp.lt.s32.totalorder %s14, 1
      %s144 = scalar_select %p143, %s14, 1
      %s145 = smul.addr %s144, 5
      %s146 = smul.addr %s145, 4
      %s147 = scalar_lea.vmem %s0, %s146
      %p148 = pneg %p35
      %p149 = pneg %p32
      %p150 = pneg %p56
      %p151 = pneg %p53
      %p152 = pneg %p77
      %p153 = pneg %p74
      %p154 = pneg %p103
      %p155 = pneg %p100
      %p156 = scmp.lt.s32.totalorder %s14, 1
      %s157 = scalar_select %p156, %s14, 1
      %s158 = smul.addr %s157, 2
      %s159 = smul.addr %s158, 4
      %s160 = scalar_lea.vmem %s3, %s159
      %p161 = scmp.lt.s32.totalorder %s14, 1
      %s162 = scalar_select %p161, %s14, 1
      %s163 = smul.addr %s162, 5
      %s164 = smul.addr %s163, 4
      %s165 = scalar_lea.vmem %s0, %s164
      %p166 = scmp.lt.s32.totalorder %s14, 1
      %s167 = scalar_select %p166, %s14, 1
      %s168 = smul.addr %s167, 2
      %s169 = smul.addr %s168, 4
      %s170 = scalar_lea.vmem %s3, %s169
      %v172 = vld [vmem:[%s165] sm:$0x3]
      %vm173 = vcmask 123904
      %174 = vst.msk [vmem:[#allocation2] sm:$0x3] %vm173, %v172
      %v175 = vld [vmem:[%s165] sm:$0x3]
      %vm176 = vcmask 255104
      %177 = vst.msk [vmem:[#allocation2] sm:$0x3] %vm176, %v175
      %v178 = vld [vmem:[%s165] sm:$0x7]
      %v180 = vunpack.c.l.b16 %v178
      %v181 = vpack.c.b16 %v180, %v180
      %v183 = vshrl.u32 %v181, 16
      %v185 = vshll.u32 %v181, 16
      %v187 = vrot.slane %v185, 1
      %v188 = vor.u32 %v183, %v187
      %189 = vrot.lane.b32.xlu0 %v188, 32
      %v190 = vpop.permute.xlu0 %189
      %vm192 = vcmask 386304
      %193 = vst.msk [vmem:[#allocation2] sm:$0x3] %vm192, %v190
      %v194 = vld [vmem:[%s165] sm:$0x3]
      %v196 = vunpack.c.l.b16 %v194
      %v197 = vpack.c.b16 %v196, %v196
      %198 = vrot.lane.b32.xlu0 %v197, 16
      %v199 = vpop.permute.xlu0 %198
      %vm201 = vcmask 517504
      %202 = vst.msk [vmem:[#allocation2] sm:$0x3] %vm201, %v199
      %v203 = vld [vmem:[%s165] sm:$0x3]
      %v205 = vunpack.c.l.b16 %v203
      %v206 = vpack.c.b16 %v205, %v205
      %207 = vrot.lane.b32.xlu0 %v206, 16
      %v208 = vpop.permute.xlu0 %207
      %vm210 = vcmask 648704
      %211 = vst.msk [vmem:[#allocation2] sm:$0x3] %vm210, %v208
      %v212 = vld [vmem:[%s165] sm:$0x7]
      %v214 = vunpack.c.l.b16 %v212
      %v215 = vpack.c.b16 %v214, %v214
      %v217 = vshrl.u32 %v215, 16
      %v219 = vshll.u32 %v215, 16
      %v221 = vrot.slane %v219, 1
      %v222 = vor.u32 %v217, %v221
      %223 = vrot.lane.b32.xlu0 %v222, 48
      %v224 = vpop.permute.xlu0 %223
      %vm226 = vcmask 779904
      %227 = vst.msk [vmem:[#allocation2] sm:$0x3] %vm226, %v224
      %s228 = scalar_lea.vmem %s165, 4
      %v229 = vld [vmem:[%s228] sm:$0x3]
      %v231 = vunpack.c.l.b16 %v229
      %v232 = vpack.c.b16 %v231, %v231
      %233 = vrot.lane.b32.xlu0 %v232, 96
      %v234 = vpop.permute.xlu0 %233
      %vm236 = vcmask 911104
      %237 = vst.msk [vmem:[#allocation2] sm:$0x3] %vm236, %v234
      %v238 = vld [vmem:[%s228] sm:$0x3]
      %v240 = vunpack.c.l.b16 %v238
      %v241 = vpack.c.b16 %v240, %v240
      %242 = vrot.lane.b32.xlu0 %v241, 96
      %v243 = vpop.permute.xlu0 %242
      %vm245 = vcmask 1042304
      %246 = vst.msk [vmem:[#allocation2] sm:$0x3] %vm245, %v243
      %v247 = vld [vmem:[%s228] sm:$0x7]
      %v249 = vunpack.c.l.b16 %v247
      %v250 = vpack.c.b16 %v249, %v249
      %v252 = vshrl.u32 %v250, 16
      %v254 = vshll.u32 %v250, 16
      %v256 = vrot.slane %v254, 1
      %v257 = vor.u32 %v252, %v256
      %259 = vst.msk [vmem:[#allocation2 + $0x8] sm:$0x3] %vm173, %v257
      %v260 = vld [vmem:[%s228] sm:$0x3]
      %v262 = vunpack.c.l.b16 %v260
      %v263 = vpack.c.b16 %v262, %v262
      %v264 = vrot.slane %v263, 6
      %vm266 = vcmask 125954
      %267 = vst.msk [vmem:[#allocation2] sm:$0xc] %vm266, %v264
      %v268 = vld [vmem:[%s228] sm:$0x3]
      %v270 = vunpack.c.l.b16 %v268
      %v271 = vpack.c.b16 %v270, %v270
      %v272 = vrot.slane %v271, 6
      %vm274 = vcmask 257154
      %275 = vst.msk [vmem:[#allocation2] sm:$0xc] %vm274, %v272
      %v276 = vld [vmem:[%s228] sm:$0x7]
      %v278 = vunpack.c.l.b16 %v276
      %v279 = vpack.c.b16 %v278, %v278
      %v281 = vshrl.u32 %v279, 16
      %v283 = vrot.slane %v281, 6
      %v284 = vshll.u32 %v279, 16
      %v286 = vrot.slane %v284, 7
      %v287 = vor.u32 %v283, %v286
      %288 = vrot.lane.b32.xlu0 %v287, 32
      %v289 = vpop.permute.xlu0 %288
      %vm291 = vcmask 388354
      %292 = vst.msk [vmem:[#allocation2] sm:$0xc] %vm291, %v289
      %v293 = vld [vmem:[%s228] sm:$0x3]
      %v295 = vunpack.c.l.b16 %v293
      %v296 = vpack.c.b16 %v295, %v295
      %v297 = vrot.slane %v296, 6
      %298 = vrot.lane.b32.xlu0 %v297, 16
      %v299 = vpop.permute.xlu0 %298
      %vm301 = vcmask 519554
      %302 = vst.msk [vmem:[#allocation2] sm:$0xc] %vm301, %v299
      %v303 = vld [vmem:[%s228] sm:$0x3]
      %v305 = vunpack.c.l.b16 %v303
      %v306 = vpack.c.b16 %v305, %v305
      %v307 = vrot.slane %v306, 6
      %308 = vrot.lane.b32.xlu0 %v307, 16
      %v309 = vpop.permute.xlu0 %308
      %vm311 = vcmask 650754
      %312 = vst.msk [vmem:[#allocation2] sm:$0xc] %vm311, %v309
      %v313 = vld [vmem:[%s228] sm:$0x7]
      %v315 = vunpack.c.l.b16 %v313
      %v316 = vpack.c.b16 %v315, %v315
      %v318 = vshrl.u32 %v316, 16
      %v320 = vrot.slane %v318, 6
      %v321 = vshll.u32 %v316, 16
      %v323 = vrot.slane %v321, 7
      %v324 = vor.u32 %v320, %v323
      %325 = vrot.lane.b32.xlu0 %v324, 48
      %v326 = vpop.permute.xlu0 %325
      %vm328 = vcmask 781954
      %329 = vst.msk [vmem:[#allocation2] sm:$0xc] %vm328, %v326
      %s330 = scalar_lea.vmem %s165, 8
      %v331 = vld [vmem:[%s330] sm:$0x3]
      %v333 = vunpack.c.l.b16 %v331
      %v334 = vpack.c.b16 %v333, %v333
      %v335 = vrot.slane %v334, 6
      %336 = vrot.lane.b32.xlu0 %v335, 96
      %v337 = vpop.permute.xlu0 %336
      %vm339 = vcmask 913154
      %340 = vst.msk [vmem:[#allocation2] sm:$0xc] %vm339, %v337
      %v341 = vld [vmem:[%s330] sm:$0x3]
      %v343 = vunpack.c.l.b16 %v341
      %v344 = vpack.c.b16 %v343, %v343
      %v345 = vrot.slane %v344, 6
      %346 = vrot.lane.b32.xlu0 %v345, 96
      %v347 = vpop.permute.xlu0 %346
      %vm349 = vcmask 1044354
      %350 = vst.msk [vmem:[#allocation2] sm:$0xc] %vm349, %v347
      %v351 = vld [vmem:[%s330] sm:$0x7]
      %v353 = vunpack.c.l.b16 %v351
      %v354 = vpack.c.b16 %v353, %v353
      %v356 = vshrl.u32 %v354, 16
      %v358 = vrot.slane %v356, 6
      %v359 = vshll.u32 %v354, 16
      %v361 = vrot.slane %v359, 7
      %v362 = vor.u32 %v358, %v361
      %364 = vst.msk [vmem:[#allocation2 + $0x8] sm:$0xc] %vm266, %v362
      %v365 = vld [vmem:[%s330] sm:$0x3]
      %v367 = vunpack.c.l.b16 %v365
      %v368 = vpack.c.b16 %v367, %v367
      %vm370 = vcmask 128004
      %371 = vst.msk [vmem:[#allocation2] sm:$0x30] %vm370, %v368
      %v372 = vld [vmem:[%s330] sm:$0x3]
      %v374 = vunpack.c.l.b16 %v372
      %v375 = vpack.c.b16 %v374, %v374
      %vm377 = vcmask 259204
      %378 = vst.msk [vmem:[#allocation2] sm:$0x30] %vm377, %v375
      %v379 = vld [vmem:[%s330] sm:$0x7]
      %v381 = vunpack.c.l.b16 %v379
      %v382 = vpack.c.b16 %v381, %v381
      %v384 = vshrl.u32 %v382, 16
      %v386 = vrot.slane %v384, 4
      %v387 = vshll.u32 %v382, 16
      %v389 = vrot.slane %v387, 5
      %v390 = vor.u32 %v386, %v389
      %391 = vrot.lane.b32.xlu0 %v390, 32
      %v392 = vpop.permute.xlu0 %391
      %vm394 = vcmask 390404
      %395 = vst.msk [vmem:[#allocation2] sm:$0x30] %vm394, %v392
      %v396 = vld [vmem:[%s330] sm:$0x3]
      %v398 = vunpack.c.l.b16 %v396
      %v399 = vpack.c.b16 %v398, %v398
      %400 = vrot.lane.b32.xlu0 %v399, 16
      %v401 = vpop.permute.xlu0 %400
      %vm403 = vcmask 521604
      %404 = vst.msk [vmem:[#allocation2] sm:$0x30] %vm403, %v401
      %v405 = vld [vmem:[%s330] sm:$0x3]
      %v407 = vunpack.c.l.b16 %v405
      %v408 = vpack.c.b16 %v407, %v407
      %409 = vrot.lane.b32.xlu0 %v408, 16
      %v410 = vpop.permute.xlu0 %409
      %vm412 = vcmask 652804
      %413 = vst.msk [vmem:[#allocation2] sm:$0x30] %vm412, %v410
      %v414 = vld [vmem:[%s330] sm:$0x7]
      %v416 = vunpack.c.l.b16 %v414
      %v417 = vpack.c.b16 %v416, %v416
      %v419 = vshrl.u32 %v417, 16
      %v421 = vrot.slane %v419, 4
      %v422 = vshll.u32 %v417, 16
      %v424 = vrot.slane %v422, 5
      %v425 = vor.u32 %v421, %v424
      %426 = vrot.lane.b32.xlu0 %v425, 48
      %v427 = vpop.permute.xlu0 %426
      %vm429 = vcmask 784004
      %430 = vst.msk [vmem:[#allocation2] sm:$0x30] %vm429, %v427
      %s431 = scalar_lea.vmem %s165, 12
      %v432 = vld [vmem:[%s431] sm:$0x3]
      %v434 = vunpack.c.l.b16 %v432
      %v435 = vpack.c.b16 %v434, %v434
      %436 = vrot.lane.b32.xlu0 %v435, 96
      %v437 = vpop.permute.xlu0 %436
      %vm439 = vcmask 915204
      %440 = vst.msk [vmem:[#allocation2] sm:$0x30] %vm439, %v437
      %v441 = vld [vmem:[%s431] sm:$0x3]
      %v443 = vunpack.c.l.b16 %v441
      %v444 = vpack.c.b16 %v443, %v443
      %445 = vrot.lane.b32.xlu0 %v444, 96
      %v446 = vpop.permute.xlu0 %445
      %vm448 = vcmask 1046404
      %449 = vst.msk [vmem:[#allocation2] sm:$0x30] %vm448, %v446
      %v450 = vld [vmem:[%s431] sm:$0x7]
      %v452 = vunpack.c.l.b16 %v450
      %v453 = vpack.c.b16 %v452, %v452
      %v455 = vshrl.u32 %v453, 16
      %v457 = vrot.slane %v455, 4
      %v458 = vshll.u32 %v453, 16
      %v460 = vrot.slane %v458, 5
      %v461 = vor.u32 %v457, %v460
      %463 = vst.msk [vmem:[#allocation2 + $0x8] sm:$0x30] %vm370, %v461
      %v464 = vld [vmem:[%s431] sm:$0x3]
      %v466 = vunpack.c.l.b16 %v464
      %v467 = vpack.c.b16 %v466, %v466
      %v468 = vrot.slane %v467, 2
      %vm470 = vcmask 130054
      %471 = vst.msk [vmem:[#allocation2] sm:$0xc0] %vm470, %v468
      %v472 = vld [vmem:[%s431] sm:$0x3]
      %v474 = vunpack.c.l.b16 %v472
      %v475 = vpack.c.b16 %v474, %v474
      %v476 = vrot.slane %v475, 2
      %vm478 = vcmask 261254
      %479 = vst.msk [vmem:[#allocation2] sm:$0xc0] %vm478, %v476
      %v480 = vld [vmem:[%s431] sm:$0x7]
      %v482 = vunpack.c.l.b16 %v480
      %v483 = vpack.c.b16 %v482, %v482
      %v485 = vshrl.u32 %v483, 16
      %v487 = vrot.slane %v485, 2
      %v488 = vshll.u32 %v483, 16
      %v490 = vrot.slane %v488, 3
      %v491 = vor.u32 %v487, %v490
      %492 = vrot.lane.b32.xlu0 %v491, 32
      %v493 = vpop.permute.xlu0 %492
      %vm495 = vcmask 392454
      %496 = vst.msk [vmem:[#allocation2] sm:$0xc0] %vm495, %v493
      %v497 = vld [vmem:[%s431] sm:$0x3]
      %v499 = vunpack.c.l.b16 %v497
      %v500 = vpack.c.b16 %v499, %v499
      %v501 = vrot.slane %v500, 2
      %502 = vrot.lane.b32.xlu0 %v501, 16
      %v503 = vpop.permute.xlu0 %502
      %vm505 = vcmask 523654
      %506 = vst.msk [vmem:[#allocation2] sm:$0xc0] %vm505, %v503
      %v507 = vld [vmem:[%s431] sm:$0x3]
      %v509 = vunpack.c.l.b16 %v507
      %v510 = vpack.c.b16 %v509, %v509
      %v511 = vrot.slane %v510, 2
      %512 = vrot.lane.b32.xlu0 %v511, 16
      %v513 = vpop.permute.xlu0 %512
      %vm515 = vcmask 654854
      %516 = vst.msk [vmem:[#allocation2] sm:$0xc0] %vm515, %v513
      %v517 = vld [vmem:[%s431] sm:$0x7]
      %v519 = vunpack.c.l.b16 %v517
      %v520 = vpack.c.b16 %v519, %v519
      %v522 = vshrl.u32 %v520, 16
      %v524 = vrot.slane %v522, 2
      %v525 = vshll.u32 %v520, 16
      %v527 = vrot.slane %v525, 3
      %v528 = vor.u32 %v524, %v527
      %529 = vrot.lane.b32.xlu0 %v528, 48
      %v530 = vpop.permute.xlu0 %529
      %vm532 = vcmask 786054
      %533 = vst.msk [vmem:[#allocation2] sm:$0xc0] %vm532, %v530
      %s534 = scalar_lea.vmem %s165, 16
      %v535 = vld [vmem:[%s534] sm:$0x3]
      %v537 = vunpack.c.l.b16 %v535
      %v538 = vpack.c.b16 %v537, %v537
      %v539 = vrot.slane %v538, 2
      %540 = vrot.lane.b32.xlu0 %v539, 96
      %v541 = vpop.permute.xlu0 %540
      %vm543 = vcmask 917254
      %544 = vst.msk [vmem:[#allocation2] sm:$0xc0] %vm543, %v541
      %v545 = vld [vmem:[%s534] sm:$0x3]
      %v547 = vunpack.c.l.b16 %v545
      %v548 = vpack.c.b16 %v547, %v547
      %v549 = vrot.slane %v548, 2
      %550 = vrot.lane.b32.xlu0 %v549, 96
      %v551 = vpop.permute.xlu0 %550
      %vm553 = vcmask 1048454
      %554 = vst.msk [vmem:[#allocation2] sm:$0xc0] %vm553, %v551
      %v555 = vld [vmem:[%s534] sm:$0x7]
      %v557 = vunpack.c.l.b16 %v555
      %v558 = vpack.c.b16 %v557, %v557
      %v560 = vshrl.u32 %v558, 16
      %v562 = vrot.slane %v560, 2
      %v563 = vshll.u32 %v558, 16
      %v565 = vrot.slane %v563, 3
      %v566 = vor.u32 %v562, %v565
      %568 = vst.msk [vmem:[#allocation2 + $0x8] sm:$0xc0] %vm470, %v566
      %v569 = vld [vmem:[#allocation2] sm:$0xff]
      %v570 = vld [vmem:[#allocation2 + $0x8] sm:$0xff]
      %v571 = vld [vmem:[%s1] sm:$0xf]
      %v572 = vld [vmem:[%s1 + $0x4] sm:$0xf]
      %v573 = vld [vmem:[%s1 + $0x8] sm:$0xf]
      %v574 = vld [vmem:[%s1 + $0xc] sm:$0xf]
      %v575 = vld [vmem:[%s1 + $0x10] sm:$0xf]
      %v576 = vld [vmem:[%s1 + $0x14] sm:$0xf]
      %v577 = vld [vmem:[%s1 + $0x18] sm:$0xf]
      %v578 = vld [vmem:[%s1 + $0x1c] sm:$0xf]
      %v579 = vld [vmem:[%s1 + $0x20] sm:$0xf]
      %v580 = vld [vmem:[%s1 + $0x24] sm:$0xf]
      %v581 = vld [vmem:[%s1 + $0x28] sm:$0xf]
      %v582 = vld [vmem:[%s1 + $0x2c] sm:$0xf]
      %v583 = vld [vmem:[%s1 + $0x30] sm:$0xf]
      %v584 = vld [vmem:[%s1 + $0x34] sm:$0xf]
      %v585 = vld [vmem:[%s1 + $0x38] sm:$0xf]
      %v586 = vld [vmem:[%s1 + $0x3c] sm:$0xf]
      %v587 = vld [vmem:[%s1 + $0x40] sm:$0xf]
      %v588 = vld [vmem:[%s1 + $0x44] sm:$0xf]
      %v589 = vld [vmem:[%s2] sm:$0x1]
      %v591 = vlaneseq
      %v592 = vshrl.u32 %v591, 7
      %v593 = vsub.s32 0, %v592
      %v594 = vrot.slane %v589, %v593
      %v614 = vunpack.c.l.b16 %v571
      %v615 = vunpack.c.l.b16 %v572
      %v616 = vunpack.c.l.b16 %v573
      %v617 = vunpack.c.l.b16 %v574
      %v618 = vunpack.c.l.b16 %v575
      %v619 = vunpack.c.l.b16 %v576
      %v620 = vunpack.c.l.b16 %v577
      %v621 = vunpack.c.l.b16 %v578
      %v622 = vunpack.c.l.b16 %v579
      %v623 = vunpack.c.l.b16 %v580
      %v624 = vunpack.c.l.b16 %v581
      %v625 = vunpack.c.l.b16 %v582
      %v626 = vunpack.c.l.b16 %v583
      %v627 = vunpack.c.l.b16 %v584
      %v628 = vunpack.c.l.b16 %v585
      %v629 = vunpack.c.l.b16 %v586
      %v630 = vunpack.c.l.b16 %v587
      %v631 = vunpack.c.l.b16 %v588
      %v632 = vpack.c.b16 %v615, %v614
      %v633 = vpack.c.b16 %v617, %v616
      %v634 = vpack.c.b16 %v619, %v618
      %v635 = vpack.c.b16 %v621, %v620
      %v636 = vpack.c.b16 %v623, %v622
      %v637 = vpack.c.b16 %v625, %v624
      %v638 = vpack.c.b16 %v627, %v626
      %v639 = vpack.c.b16 %v629, %v628
      %v640 = vpack.c.b16 %v631, %v630
      %vm650 = vcmask 130048
      %v652 = vsel %vm650, %v570, 0
      %654 = vmatprep.subr.bf16.mxu0 0
      %655 = vmatpush1.bf16.msra.mxu0 %v632
      %656 = vmatprep.subr.bf16.mxu0 0
      %657 = vmatpush1.bf16.msra.mxu0 %v633
      %658 = vmatprep.subr.bf16.mxu0 0
      %659 = vmatpush1.bf16.msra.mxu0 %v634
      %660 = vmatprep.subr.bf16.mxu0 0
      %661 = vmatpush1.bf16.msra.mxu0 %v635
      %662 = vmatprep.subr.bf16.mxu0 0
      %663 = vmatpush1.bf16.msra.mxu0 %v636
      %664 = vmatprep.subr.bf16.mxu0 0
      %665 = vmatpush1.bf16.msra.mxu0 %v637
      %666 = vmatprep.subr.bf16.mxu0 0
      %667 = vmatpush1.bf16.msra.mxu0 %v638
      %668 = vmatprep.subr.bf16.mxu0 0
      %669 = vmatpush1.bf16.msra.mxu0 %v639
      %670 = vmatprep.subr.bf16.mxu0 0
      %671 = vmatpush1.bf16.msra.mxu0 %v640
      %672 = vmatprep.subr.bf16.mxu0 0
      %673 = vmatpush1.bf16.msra.mxu0 0
      %674 = vmatprep.subr.bf16.mxu0 0
      %675 = vmatpush1.bf16.msra.mxu0 0
      %676 = vmatprep.subr.bf16.mxu0 0
      %677 = vmatpush1.bf16.msra.mxu0 0
      %678 = vmatprep.subr.bf16.mxu0 0
      %679 = vmatpush1.bf16.msra.mxu0 0
      %680 = vmatprep.subr.bf16.mxu0 0
      %681 = vmatpush1.bf16.msra.mxu0 0
      %682 = vmatprep.subr.bf16.mxu0 0
      %683 = vmatpush1.bf16.msra.mxu0 0
      %684 = vmatprep.subr.bf16.mxu0 0
      %685 = vmatpush1.bf16.msra.mxu0 0
      %686 = vmatprep.mubr.bf16.mxu0 %v652
      %687 = vmatmul.mubr.bf16.gmra.mrb[0].mxu0 %v569
      %v688 = vpop.f32.mrb[0].mxu0
      %v689 = vadd.f32 %v594, %v688
      %v690 = vpop.f32.mrb[0].mxu0
      %v691 = vpop.f32.mrb[0].mxu0
      %v692 = vadd.f32 %v594, %v691
      %v693 = vpop.f32.mrb[0].mxu0
      %694 = vdwg.mxu0
      %v695 = vmax.f32 %v689, 0.0
      %v696 = vmax.f32 %v692, 0.0
      %v697 = vpack.c.bf16 %v696, %v695
      %v699 = vunpack.c.l.b16 %v697
      %v700 = vunpack.c.h.b16 %v697
      %v701 = vpack.c.b16 %v699, %v699
      %v702 = vpack.c.b16 %v700, %v700
      %vm705 = vcmask 257024
      %706 = vst.msk [vmem:[%s170] sm:$0xf] %vm705, %v701
      %707 = vst.msk [vmem:[%s170 + $0x4] sm:$0xf] %vm705, %v702
      %p708 = scmp.lt.s32.totalorder %s14, 1
      %s709 = scalar_select %p708, %s14, 1
      %s710 = smul.addr %s709, 2
      %s711 = smul.addr %s710, 4
      %s712 = scalar_lea.vmem %s3, %s711
      // Predicated region
      $region33: #{forward.4} parent=31 // pred_check
        %p713 = pneg %p100
      $region34: #{forward.4} parent=31 // pred_check_branch
        %715 = sbr.rel (%p713) target = $region36
      $region35: #{forward.4} parent=31 // pred_region
        _
      $region36: #{forward.4} parent=31 // pred_fallthru
        _
    $region32: #{forward.4} parent=5 // pred_fallthru
      _
    %p716 = scmp.le.s32.totalorder 2, %s9
    // Predicated region
    $region37: #{forward.4} parent=5 // pred_check
      %p717 = pneg %p716
    $region38: #{forward.4} parent=5 // pred_check_branch
      %719 = sbr.rel (%p717) target = $region40
    $region39: #{forward.4} parent=5 // pred_region
      %s720 = ssub.s32 %s9, 2
      // Predicated region
      $region41: #{forward.4} parent=39 // pred_check
        %p721 = pneg %p106
      $region42: #{forward.4} parent=39 // pred_check_branch
        %723 = sbr.rel (%p721) target = $region44
      $region43: #{forward.4} parent=39 // pred_region
        %p724 = scmp.lt.s32.totalorder %s15, 1
        %s725 = scalar_select %p724, %s15, 1
        %s726 = smul.addr %s725, 2
        %s727 = smul.addr %s726, 4
        %s728 = scalar_lea.vmem %s3, %s727
      $region44: #{forward.4} parent=39 // pred_fallthru
        _
    $region40: #{forward.4} parent=5 // pred_fallthru
      _
  $region6: #{forward.4} parent=0 // loop_footer
    %s13 = sadd.s32 1, %s9
  $region7: #{forward.4} parent=0 // loop_footer_branch
    %8 = sbr.rel target = $region3
  $region8: #{forward.4} parent=0 // loop_exit
    _

// kernel: forward.5
$region0: #{forward.5}
  #allocation0 [shape = 'u32[]', space=smem, size = 0x4, offset = 0x4, fixed_abs, tag = 'smem constant byte address 0x4 - core index']
  #allocation1 [shape = 'u32[144,128]{1,0:T(1,128)}', space=vmem, size = 0x12000, scoped, tag = 'internal scratch']
  #allocation2 [shape = 'bf16[16,288]{1,0:T(16,128)(2,1)}', space=vmem, size = 0x3000, scoped, tag = 'scratch operand']
  %s0 = inlined_call_operand.vmem [shape: bf16[2,6,6,32], index: 0, kind: input, shape index: {}]
  %s1 = inlined_call_operand.vmem [shape: bf16[288,32], index: 1, kind: input, shape index: {}]
  %s2 = inlined_call_operand.vmem [shape: f32[1,32], index: 2, kind: input, shape index: {}]
  %s3 = inlined_call_operand.hbm [shape: f32[2,16,32], index: 3, kind: output, shape index: {}]
  %s4 = sld [smem:[#allocation0]]
  $region45: #{forward.5} parent=0
    _
  %s6 = ssub.s32 1, %s4
  %s7 = scalar_select 0, %s6, %s4
  $region1: #{forward.5} parent=0
    #allocation3 [shape = 'u8[16384]{0}', space=vmem, size = 0x4000, scoped, tag = 'output window, operand 0']
    #allocation4 [shape = 's32[2]{0}', space=sflag, size = 0x8, scoped, tag = 'scoped memory for forward.5']
    %8 = vsyncpa [#allocation4], 0
    %s9 = scalar_lea.sflag [#allocation4], 1
    %10 = vsyncpa %s9, 0
    loop: start=0, step=1, limit=4
    $region2: #{forward.5} parent=1 // loop_pre_header
      _
    $region3: #{forward.5} parent=1 // loop_header
      %s12 = sphi 0, %s16
      %p13 = scmp.ge.s32.totalorder %s12, 4
      %s22 = sphi 0, %s24
      %s25 = sphi 0, %s22
      %s26 = sphi 0, %s25
      %s42 = sphi 0, %s26
      %s46 = sphi 0, %s46
      %s48 = sphi 0, %s46
      %s49 = sphi 0, %s48
      %s63 = sphi 0, %s49
      %s67 = sphi 0, %s67
      %s69 = sphi 0, %s67
      %s70 = sphi 0, %s69
      %s84 = sphi 0, %s70
      %s90 = sphi 0, %s92
      %s93 = sphi 0, %s90
      %s94 = sphi 0, %s93
      %s110 = sphi 0, %s94
    $region4: #{forward.5} parent=1 // loop_header_branch
      %15 = sbr.rel (%p13) target = $region8
    $region5: #{forward.5} parent=1 // loop_body
      %s17 = ssub.s32 %s12, 1
      %s18 = ssub.s32 %s12, 2
      %s19 = sadd.s32 %s12, 1
      %s20 = ssub.s32 %s12, %s19
      %p21 = scmp.eq.s32.totalorder %s20, 0
      %s23 = sadd.s32 %s22, 1
      %s24 = scalar_select %p21, %s22, %s23
      %p27 = pneg %p21
      %p28 = scmp.eq.s32.totalorder %s12, 1
      %p29 = por %p27, %p28
      %p30 = scmp.ne.s32.totalorder %s22, %s25
      %p31 = scmp.eq.s32.totalorder %s12, 0
      %p32 = por %p30, %p31
      %p33 = scmp.ne.s32.totalorder %s22, %s25
      %p34 = scmp.eq.s32.totalorder %s17, 1
      %p35 = por %p33, %p34
      %p36 = scmp.ne.s32.totalorder %s25, %s26
      %p37 = scmp.eq.s32.totalorder %s17, 0
      %p38 = por %p36, %p37
      %p39 = scmp.ne.s32.totalorder %s25, %s26
      %p40 = scmp.eq.s32.totalorder %s18, 1
      %p41 = por %p39, %p40
      %p43 = scmp.ne.s32.totalorder %s26, %s42
      %p44 = scmp.eq.s32.totalorder %s18, 0
      %p45 = por %p43, %p44
      %s47 = sadd.s32 %s46, 1
      %p50 = scmp.eq.s32.totalorder %s12, 1
      %p51 = scmp.ne.s32.totalorder %s46, %s48
      %p52 = scmp.eq.s32.totalorder %s12, 0
      %p53 = por %p51, %p52
      %p54 = scmp.ne.s32.totalorder %s46, %s48
      %p55 = scmp.eq.s32.totalorder %s17, 1
      %p56 = por %p54, %p55
      %p57 = scmp.ne.s32.totalorder %s48, %s49
      %p58 = scmp.eq.s32.totalorder %s17, 0
      %p59 = por %p57, %p58
      %p60 = scmp.ne.s32.totalorder %s48, %s49
      %p61 = scmp.eq.s32.totalorder %s18, 1
      %p62 = por %p60, %p61
      %p64 = scmp.ne.s32.totalorder %s49, %s63
      %p65 = scmp.eq.s32.totalorder %s18, 0
      %p66 = por %p64, %p65
      %s68 = sadd.s32 %s67, 1
      %p71 = scmp.eq.s32.totalorder %s12, 1
      %p72 = scmp.ne.s32.totalorder %s67, %s69
      %p73 = scmp.eq.s32.totalorder %s12, 0
      %p74 = por %p72, %p73
      %p75 = scmp.ne.s32.totalorder %s67, %s69
      %p76 = scmp.eq.s32.totalorder %s17, 1
      %p77 = por %p75, %p76
      %p78 = scmp.ne.s32.totalorder %s69, %s70
      %p79 = scmp.eq.s32.totalorder %s17, 0
      %p80 = por %p78, %p79
      %p81 = scmp.ne.s32.totalorder %s69, %s70
      %p82 = scmp.eq.s32.totalorder %s18, 1
      %p83 = por %p81, %p82
      %p85 = scmp.ne.s32.totalorder %s70, %s84
      %p86 = scmp.eq.s32.totalorder %s18, 0
      %p87 = por %p85, %p86
      %s88 = ssub.s32 %s12, %s19
      %p89 = scmp.eq.s32.totalorder %s88, 0
      %s91 = sadd.s32 %s90, 1
      %s92 = scalar_select %p89, %s90, %s91
      %p95 = pneg %p89
      %p96 = scmp.eq.s32.totalorder %s12, 1
      %p97 = por %p95, %p96
      %p98 = scmp.ne.s32.totalorder %s90, %s93
      %p99 = scmp.eq.s32.totalorder %s12, 0
      %p100 = por %p98, %p99
      %p101 = scmp.ne.s32.totalorder %s90, %s93
      %p102 = scmp.eq.s32.totalorder %s17, 1
      %p103 = por %p101, %p102
      %p104 = scmp.ne.s32.totalorder %s93, %s94
      %p105 = scmp.eq.s32.totalorder %s17, 0
      %p106 = por %p104, %p105
      %p107 = scmp.ne.s32.totalorder %s93, %s94
      %p108 = scmp.eq.s32.totalorder %s18, 1
      %p109 = por %p107, %p108
      %p111 = scmp.ne.s32.totalorder %s94, %s110
      %p112 = scmp.eq.s32.totalorder %s18, 0
      %p113 = por %p111, %p112
      %p114 = scmp.le.s32.totalorder 1, %s12
      %p115 = scmp.lt.s32.totalorder %s12, 3
      %p116 = pnand %p114, %p115
      %p117 = pneg %p116
      // Predicated region
      $region9: #{forward.5} parent=5 // pred_check
        _
      $region10: #{forward.5} parent=5 // pred_check_branch
        %119 = sbr.rel (%p116) target = $region12
      $region11: #{forward.5} parent=5 // pred_region
        %s120 = ssub.s32 %s12, 1
        // Predicated region
        $region13: #{forward.5} parent=11 // pred_check
          %p121 = pneg %p59
        $region14: #{forward.5} parent=11 // pred_check_branch
          %123 = sbr.rel (%p121) target = $region16
        $region15: #{forward.5} parent=11 // pred_region
          _
        $region16: #{forward.5} parent=11 // pred_fallthru
          _
        // Predicated region
        $region17: #{forward.5} parent=11 // pred_check
          %p124 = pneg %p80
        $region18: #{forward.5} parent=11 // pred_check_branch
          %126 = sbr.rel (%p124) target = $region20
        $region19: #{forward.5} parent=11 // pred_region
          _
        $region20: #{forward.5} parent=11 // pred_fallthru
          _
      $region12: #{forward.5} parent=5 // pred_fallthru
        _
      %p127 = scmp.lt.s32.totalorder %s12, 2
      // Predicated region
      $region21: #{forward.5} parent=5 // pred_check
        %p128 = pneg %p127
      $region22: #{forward.5} parent=5 // pred_check_branch
        %130 = sbr.rel (%p128) target = $region24
      $region23: #{forward.5} parent=5 // pred_region
        // Predicated region
        $region25: #{forward.5} parent=23 // pred_check
          %p131 = pneg %p32
        $region26: #{forward.5} parent=23 // pred_check_branch
          %133 = sbr.rel (%p131) target = $region28
        $region27: #{forward.5} parent=23 // pred_region
          %p134 = scmp.lt.s32.totalorder %s12, 1
          %s135 = scalar_select %p134, %s12, 1
          %s136 = smul.addr %s135, 6
          %s137 = smul.addr %s136, 4
          %s138 = scalar_lea.vmem %s0, %s137
        $region28: #{forward.5} parent=23 // pred_fallthru
          _
      $region24: #{forward.5} parent=5 // pred_fallthru
        _
      %p139 = scmp.le.s32.totalorder 1, %s12
      %p140 = scmp.lt.s32.totalorder %s12, 3
      %p141 = pnand %p139, %p140
      %p142 = pneg %p141
      // Predicated region
      $region29: #{forward.5} parent=5 // pred_check
        _
      $region30: #{forward.5} parent=5 // pred_check_branch
        %144 = sbr.rel (%p141) target = $region32
      $region31: #{forward.5} parent=5 // pred_region
        %s145 = ssub.s32 %s12, 1
        %p146 = scmp.lt.s32.totalorder %s17, 1
        %s147 = scalar_select %p146, %s17, 1
        %s148 = smul.addr %s147, 6
        %s149 = smul.addr %s148, 4
        %s150 = scalar_lea.vmem %s0, %s149
        %p151 = pneg %p38
        %p152 = pneg %p35
        %p153 = pneg %p59
        %p154 = pneg %p56
        %p155 = pneg %p80
        %p156 = pneg %p77
        %p157 = pneg %p106
        %p158 = pneg %p103
        %s159 = sand.u32 %s93, 1
        %s160 = scalar_lea.sflag [#allocation4], %s159
        %s161 = sand.u32 %s93, 1
        %s162 = smul.addr %s161, 16
        %s163 = scalar_lea.vmem [#allocation3], %s162
        %p164 = scmp.lt.s32.totalorder %s17, 1
        %s165 = scalar_select %p164, %s17, 1
        %s166 = smul.addr %s165, 6
        %s167 = smul.addr %s166, 4
        %s168 = scalar_lea.vmem %s0, %s167
        %v170 = vld [vmem:[%s168] sm:$0x3]
        %vm171 = vcmask 254976
        %172 = vst.msk [vmem:[#allocation2] sm:$0x3] %vm171, %v170
        %v173 = vld [vmem:[%s168] sm:$0x7]
        %v175 = vunpack.c.l.b16 %v173
        %v176 = vpack.c.b16 %v175, %v175
        %v178 = vshrl.u32 %v176, 16
        %v180 = vshll.u32 %v176, 16
        %v182 = vrot.slane %v180, 1
        %v183 = vor.u32 %v178, %v182
        %184 = vrot.lane.b32.xlu0 %v183, 32
        %v185 = vpop.permute.xlu0 %184
        %vm187 = vcmask 517376
        %188 = vst.msk [vmem:[#allocation2] sm:$0x3] %vm187, %v185
        %v189 = vld [vmem:[%s168] sm:$0x6]
        %v191 = vunpack.c.l.b16 %v189
        %v192 = vpack.c.b16 %v191, %v191
        %v193 = vrot.slane %v192, 1
        %194 = vrot.lane.b32.xlu0 %v193, 64
        %v195 = vpop.permute.xlu0 %194
        %vm197 = vcmask 779776
        %198 = vst.msk [vmem:[#allocation2] sm:$0x3] %vm197, %v195
        %s199 = scalar_lea.vmem %s168, 4
        %v200 = vld [vmem:[%s199] sm:$0x3]
        %v202 = vunpack.c.l.b16 %v200
        %v203 = vpack.c.b16 %v202, %v202
        %204 = vrot.lane.b32.xlu0 %v203, 96
        %v205 = vpop.permute.xlu0 %204
        %vm207 = vcmask 1042176
        %208 = vst.msk [vmem:[#allocation2] sm:$0x3] %vm207, %v205
        %v209 = vld [vmem:[%s199] sm:$0x7]
        %v211 = vunpack.c.l.b16 %v209
        %v212 = vpack.c.b16 %v211, %v211
        %v214 = vshrl.u32 %v212, 16
        %v216 = vshll.u32 %v212, 16
        %v218 = vrot.slane %v216, 1
        %v219 = vor.u32 %v214, %v218
        %221 = vst.msk [vmem:[#allocation2 + $0x8] sm:$0x3] %vm171, %v219
        %v222 = vld [vmem:[%s199] sm:$0x6]
        %v224 = vunpack.c.l.b16 %v222
        %v225 = vpack.c.b16 %v224, %v224
        %v226 = vrot.slane %v225, 1
        %227 = vrot.lane.b32.xlu0 %v226, 32
        %v228 = vpop.permute.xlu0 %227
        %230 = vst.msk [vmem:[#allocation2 + $0x8] sm:$0x3] %vm187, %v228
        %s231 = scalar_lea.vmem %s168, 8
        %v232 = vld [vmem:[%s231] sm:$0x3]
        %v234 = vunpack.c.l.b16 %v232
        %v235 = vpack.c.b16 %v234, %v234
        %236 = vrot.lane.b32.xlu0 %v235, 64
        %v237 = vpop.permute.xlu0 %236
        %239 = vst.msk [vmem:[#allocation2 + $0x8] sm:$0x3] %vm197, %v237
        %v240 = vld [vmem:[%s231] sm:$0x7]
        %v242 = vunpack.c.l.b16 %v240
        %v243 = vpack.c.b16 %v242, %v242
        %v245 = vshrl.u32 %v243, 16
        %v247 = vshll.u32 %v243, 16
        %v249 = vrot.slane %v247, 1
        %v250 = vor.u32 %v245, %v249
        %251 = vrot.lane.b32.xlu0 %v250, 96
        %v252 = vpop.permute.xlu0 %251
        %254 = vst.msk [vmem:[#allocation2 + $0x8] sm:$0x3] %vm207, %v252
        %v255 = vld [vmem:[%s231] sm:$0x6]
        %v257 = vunpack.c.l.b16 %v255
        %v258 = vpack.c.b16 %v257, %v257
        %v259 = vrot.slane %v258, 1
        %261 = vst.msk [vmem:[#allocation2 + $0x10] sm:$0x3] %vm171, %v259
        %v262 = vld [vmem:[%s199] sm:$0x3]
        %v264 = vunpack.c.l.b16 %v262
        %v265 = vpack.c.b16 %v264, %v264
        %v266 = vrot.slane %v265, 6
        %vm268 = vcmask 257026
        %269 = vst.msk [vmem:[#allocation2] sm:$0xc] %vm268, %v266
        %v270 = vld [vmem:[%s199] sm:$0x7]
        %v272 = vunpack.c.l.b16 %v270
        %v273 = vpack.c.b16 %v272, %v272
        %v275 = vshrl.u32 %v273, 16
        %v277 = vrot.slane %v275, 6
        %v278 = vshll.u32 %v273, 16
        %v280 = vrot.slane %v278, 7
        %v281 = vor.u32 %v277, %v280
        %282 = vrot.lane.b32.xlu0 %v281, 32
        %v283 = vpop.permute.xlu0 %282
        %vm285 = vcmask 519426
        %286 = vst.msk [vmem:[#allocation2] sm:$0xc] %vm285, %v283
        %v287 = vld [vmem:[%s199] sm:$0x6]
        %v289 = vunpack.c.l.b16 %v287
        %v290 = vpack.c.b16 %v289, %v289
        %v291 = vrot.slane %v290, 7
        %292 = vrot.lane.b32.xlu0 %v291, 64
        %v293 = vpop.permute.xlu0 %292
        %vm295 = vcmask 781826
        %296 = vst.msk [vmem:[#allocation2] sm:$0xc] %vm295, %v293
        %v297 = vld [vmem:[%s231] sm:$0x3]
        %v299 = vunpack.c.l.b16 %v297
        %v300 = vpack.c.b16 %v299, %v299
        %v301 = vrot.slane %v300, 6
        %302 = vrot.lane.b32.xlu0 %v301, 96
        %v303 = vpop.permute.xlu0 %302
        %vm305 = vcmask 1044226
        %306 = vst.msk [vmem:[#allocation2] sm:$0xc] %vm305, %v303
        %v307 = vld [vmem:[%s231] sm:$0x7]
        %v309 = vunpack.c.l.b16 %v307
        %v310 = vpack.c.b16 %v309, %v309
        %v312 = vshrl.u32 %v310, 16
        %v314 = vrot.slane %v312, 6
        %v315 = vshll.u32 %v310, 16
        %v317 = vrot.slane %v315, 7
        %v318 = vor.u32 %v314, %v317
        %320 = vst.msk [vmem:[#allocation2 + $0x8] sm:$0xc] %vm268, %v318
        %v321 = vld [vmem:[%s231] sm:$0x6]
        %v323 = vunpack.c.l.b16 %v321
        %v324 = vpack.c.b16 %v323, %v323
        %v325 = vrot.slane %v324, 7
        %326 = vrot.lane.b32.xlu0 %v325, 32
        %v327 = vpop.permute.xlu0 %326
        %329 = vst.msk [vmem:[#allocation2 + $0x8] sm:$0xc] %vm285, %v327
        %s330 = scalar_lea.vmem %s168, 12
        %v331 = vld [vmem:[%s330] sm:$0x3]
        %v333 = vunpack.c.l.b16 %v331
        %v334 = vpack.c.b16 %v333, %v333
        %v335 = vrot.slane %v334, 6
        %336 = vrot.lane.b32.xlu0 %v335, 64
        %v337 = vpop.permute.xlu0 %336
        %339 = vst.msk [vmem:[#allocation2 + $0x8] sm:$0xc] %vm295, %v337
        %v340 = vld [vmem:[%s330] sm:$0x7]
        %v342 = vunpack.c.l.b16 %v340
        %v343 = vpack.c.b16 %v342, %v342
        %v345 = vshrl.u32 %v343, 16
        %v347 = vrot.slane %v345, 6
        %v348 = vshll.u32 %v343, 16
        %v350 = vrot.slane %v348, 7
        %v351 = vor.u32 %v347, %v350
        %352 = vrot.lane.b32.xlu0 %v351, 96
        %v353 = vpop.permute.xlu0 %352
        %355 = vst.msk [vmem:[#allocation2 + $0x8] sm:$0xc] %vm305, %v353
        %v356 = vld [vmem:[%s330] sm:$0x6]
        %v358 = vunpack.c.l.b16 %v356
        %v359 = vpack.c.b16 %v358, %v358
        %v360 = vrot.slane %v359, 7
        %362 = vst.msk [vmem:[#allocation2 + $0x10] sm:$0xc] %vm268, %v360
        %v363 = vld [vmem:[%s231] sm:$0x3]
        %v365 = vunpack.c.l.b16 %v363
        %v366 = vpack.c.b16 %v365, %v365
        %vm368 = vcmask 259076
        %369 = vst.msk [vmem:[#allocation2] sm:$0x30] %vm368, %v366
        %v370 = vld [vmem:[%s231] sm:$0x7]
        %v372 = vunpack.c.l.b16 %v370
        %v373 = vpack.c.b16 %v372, %v372
        %v375 = vshrl.u32 %v373, 16
        %v377 = vrot.slane %v375, 4
        %v378 = vshll.u32 %v373, 16
        %v380 = vrot.slane %v378, 5
        %v381 = vor.u32 %v377, %v380
        %382 = vrot.lane.b32.xlu0 %v381, 32
        %v383 = vpop.permute.xlu0 %382
        %vm385 = vcmask 521476
        %386 = vst.msk [vmem:[#allocation2] sm:$0x30] %vm385, %v383
        %v387 = vld [vmem:[%s231] sm:$0x6]
        %v389 = vunpack.c.l.b16 %v387
        %v390 = vpack.c.b16 %v389, %v389
        %v391 = vrot.slane %v390, 5
        %392 = vrot.lane.b32.xlu0 %v391, 64
        %v393 = vpop.permute.xlu0 %392
        %vm395 = vcmask 783876
        %396 = vst.msk [vmem:[#allocation2] sm:$0x30] %vm395, %v393
        %v397 = vld [vmem:[%s330] sm:$0x3]
        %v399 = vunpack.c.l.b16 %v397
        %v400 = vpack.c.b16 %v399, %v399
        %401 = vrot.lane.b32.xlu0 %v400, 96
        %v402 = vpop.permute.xlu0 %401
        %vm404 = vcmask 1046276
        %405 = vst.msk [vmem:[#allocation2] sm:$0x30] %vm404, %v402
        %v406 = vld [vmem:[%s330] sm:$0x7]
        %v408 = vunpack.c.l.b16 %v406
        %v409 = vpack.c.b16 %v408, %v408
        %v411 = vshrl.u32 %v409, 16
        %v413 = vrot.slane %v411, 4
        %v414 = vshll.u32 %v409, 16
        %v416 = vrot.slane %v414, 5
        %v417 = vor.u32 %v413, %v416
        %419 = vst.msk [vmem:[#allocation2 + $0x8] sm:$0x30] %vm368, %v417
        %v420 = vld [vmem:[%s330] sm:$0x6]
        %v422 = vunpack.c.l.b16 %v420
        %v423 = vpack.c.b16 %v422, %v422
        %v424 = vrot.slane %v423, 5
        %425 = vrot.lane.b32.xlu0 %v424, 32
        %v426 = vpop.permute.xlu0 %425
        %428 = vst.msk [vmem:[#allocation2 + $0x8] sm:$0x30] %vm385, %v426
        %s429 = scalar_lea.vmem %s168, 16
        %v430 = vld [vmem:[%s429] sm:$0x3]
        %v432 = vunpack.c.l.b16 %v430
        %v433 = vpack.c.b16 %v432, %v432
        %434 = vrot.lane.b32.xlu0 %v433, 64
        %v435 = vpop.permute.xlu0 %434
        %437 = vst.msk [vmem:[#allocation2 + $0x8] sm:$0x30] %vm395, %v435
        %v438 = vld [vmem:[%s429] sm:$0x7]
        %v440 = vunpack.c.l.b16 %v438
        %v441 = vpack.c.b16 %v440, %v440
        %v443 = vshrl.u32 %v441, 16
        %v445 = vrot.slane %v443, 4
        %v446 = vshll.u32 %v441, 16
        %v448 = vrot.slane %v446, 5
        %v449 = vor.u32 %v445, %v448
        %450 = vrot.lane.b32.xlu0 %v449, 96
        %v451 = vpop.permute.xlu0 %450
        %453 = vst.msk [vmem:[#allocation2 + $0x8] sm:$0x30] %vm404, %v451
        %v454 = vld [vmem:[%s429] sm:$0x6]
        %v456 = vunpack.c.l.b16 %v454
        %v457 = vpack.c.b16 %v456, %v456
        %v458 = vrot.slane %v457, 5
        %460 = vst.msk [vmem:[#allocation2 + $0x10] sm:$0x30] %vm368, %v458
        %v461 = vld [vmem:[%s330] sm:$0x3]
        %v463 = vunpack.c.l.b16 %v461
        %v464 = vpack.c.b16 %v463, %v463
        %v465 = vrot.slane %v464, 2
        %vm467 = vcmask 261126
        %468 = vst.msk [vmem:[#allocation2] sm:$0xc0] %vm467, %v465
        %v469 = vld [vmem:[%s330] sm:$0x7]
        %v471 = vunpack.c.l.b16 %v469
        %v472 = vpack.c.b16 %v471, %v471
        %v474 = vshrl.u32 %v472, 16
        %v476 = vrot.slane %v474, 2
        %v477 = vshll.u32 %v472, 16
        %v479 = vrot.slane %v477, 3
        %v480 = vor.u32 %v476, %v479
        %481 = vrot.lane.b32.xlu0 %v480, 32
        %v482 = vpop.permute.xlu0 %481
        %vm484 = vcmask 523526
        %485 = vst.msk [vmem:[#allocation2] sm:$0xc0] %vm484, %v482
        %v486 = vld [vmem:[%s330] sm:$0x6]
        %v488 = vunpack.c.l.b16 %v486
        %v489 = vpack.c.b16 %v488, %v488
        %v490 = vrot.slane %v489, 3
        %491 = vrot.lane.b32.xlu0 %v490, 64
        %v492 = vpop.permute.xlu0 %491
        %vm494 = vcmask 785926
        %495 = vst.msk [vmem:[#allocation2] sm:$0xc0] %vm494, %v492
        %v496 = vld [vmem:[%s429] sm:$0x3]
        %v498 = vunpack.c.l.b16 %v496
        %v499 = vpack.c.b16 %v498, %v498
        %v500 = vrot.slane %v499, 2
        %501 = vrot.lane.b32.xlu0 %v500, 96
        %v502 = vpop.permute.xlu0 %501
        %vm504 = vcmask 1048326
        %505 = vst.msk [vmem:[#allocation2] sm:$0xc0] %vm504, %v502
        %v506 = vld [vmem:[%s429] sm:$0x7]
        %v508 = vunpack.c.l.b16 %v506
        %v509 = vpack.c.b16 %v508, %v508
        %v511 = vshrl.u32 %v509, 16
        %v513 = vrot.slane %v511, 2
        %v514 = vshll.u32 %v509, 16
        %v516 = vrot.slane %v514, 3
        %v517 = vor.u32 %v513, %v516
        %519 = vst.msk [vmem:[#allocation2 + $0x8] sm:$0xc0] %vm467, %v517
        %v520 = vld [vmem:[%s429] sm:$0x6]
        %v522 = vunpack.c.l.b16 %v520
        %v523 = vpack.c.b16 %v522, %v522
        %v524 = vrot.slane %v523, 3
        %525 = vrot.lane.b32.xlu0 %v524, 32
        %v526 = vpop.permute.xlu0 %525
        %528 = vst.msk [vmem:[#allocation2 + $0x8] sm:$0xc0] %vm484, %v526
        %s529 = scalar_lea.vmem %s168, 20
        %v530 = vld [vmem:[%s529] sm:$0x3]
        %v532 = vunpack.c.l.b16 %v530
        %v533 = vpack.c.b16 %v532, %v532
        %v534 = vrot.slane %v533, 2
        %535 = vrot.lane.b32.xlu0 %v534, 64
        %v536 = vpop.permute.xlu0 %535
        %538 = vst.msk [vmem:[#allocation2 + $0x8] sm:$0xc0] %vm494, %v536
        %v539 = vld [vmem:[%s529] sm:$0x7]
        %v541 = vunpack.c.l.b16 %v539
        %v542 = vpack.c.b16 %v541, %v541
        %v544 = vshrl.u32 %v542, 16
        %v546 = vrot.slane %v544, 2
        %v547 = vshll.u32 %v542, 16
        %v549 = vrot.slane %v547, 3
        %v550 = vor.u32 %v546, %v549
        %551 = vrot.lane.b32.xlu0 %v550, 96
        %v552 = vpop.permute.xlu0 %551
        %554 = vst.msk [vmem:[#allocation2 + $0x8] sm:$0xc0] %vm504, %v552
        %v555 = vld [vmem:[%s529] sm:$0x6]
        %v557 = vunpack.c.l.b16 %v555
        %v558 = vpack.c.b16 %v557, %v557
        %v559 = vrot.slane %v558, 3
        %561 = vst.msk [vmem:[#allocation2 + $0x10] sm:$0xc0] %vm467, %v559
        %v562 = vld [vmem:[#allocation2] sm:$0xff]
        %v563 = vld [vmem:[#allocation2 + $0x8] sm:$0xff]
        %v564 = vld [vmem:[#allocation2 + $0x10] sm:$0xff]
        %v565 = vld [vmem:[%s1] sm:$0xf]
        %v566 = vld [vmem:[%s1 + $0x4] sm:$0xf]
        %v567 = vld [vmem:[%s1 + $0x8] sm:$0xf]
        %v568 = vld [vmem:[%s1 + $0xc] sm:$0xf]
        %v569 = vld [vmem:[%s1 + $0x10] sm:$0xf]
        %v570 = vld [vmem:[%s1 + $0x14] sm:$0xf]
        %v571 = vld [vmem:[%s1 + $0x18] sm:$0xf]
        %v572 = vld [vmem:[%s1 + $0x1c] sm:$0xf]
        %v573 = vld [vmem:[%s1 + $0x20] sm:$0xf]
        %v574 = vld [vmem:[%s1 + $0x24] sm:$0xf]
        %v575 = vld [vmem:[%s1 + $0x28] sm:$0xf]
        %v576 = vld [vmem:[%s1 + $0x2c] sm:$0xf]
        %v577 = vld [vmem:[%s1 + $0x30] sm:$0xf]
        %v578 = vld [vmem:[%s1 + $0x34] sm:$0xf]
        %v579 = vld [vmem:[%s1 + $0x38] sm:$0xf]
        %v580 = vld [vmem:[%s1 + $0x3c] sm:$0xf]
        %v581 = vld [vmem:[%s1 + $0x40] sm:$0xf]
        %v582 = vld [vmem:[%s1 + $0x44] sm:$0xf]
        %v583 = vld [vmem:[%s1 + $0x48] sm:$0xf]
        %v584 = vld [vmem:[%s1 + $0x4c] sm:$0xf]
        %v585 = vld [vmem:[%s1 + $0x50] sm:$0xf]
        %v586 = vld [vmem:[%s1 + $0x54] sm:$0xf]
        %v587 = vld [vmem:[%s1 + $0x58] sm:$0xf]
        %v588 = vld [vmem:[%s1 + $0x5c] sm:$0xf]
        %v589 = vld [vmem:[%s1 + $0x60] sm:$0xf]
        %v590 = vld [vmem:[%s1 + $0x64] sm:$0xf]
        %v591 = vld [vmem:[%s1 + $0x68] sm:$0xf]
        %v592 = vld [vmem:[%s1 + $0x6c] sm:$0xf]
        %v593 = vld [vmem:[%s1 + $0x70] sm:$0xf]
        %v594 = vld [vmem:[%s1 + $0x74] sm:$0xf]
        %v595 = vld [vmem:[%s1 + $0x78] sm:$0xf]
        %v596 = vld [vmem:[%s1 + $0x7c] sm:$0xf]
        %v597 = vld [vmem:[%s1 + $0x80] sm:$0xf]
        %v598 = vld [vmem:[%s1 + $0x84] sm:$0xf]
        %v599 = vld [vmem:[%s1 + $0x88] sm:$0xf]
        %v600 = vld [vmem:[%s1 + $0x8c] sm:$0xf]
        %v601 = vld [vmem:[%s2] sm:$0x1]
        %v603 = vlaneseq
        %v604 = vshrl.u32 %v603, 7
        %v605 = vsub.s32 0, %v604
        %v606 = vrot.slane %v601, %v605
        %v644 = vunpack.c.l.b16 %v565
        %v645 = vunpack.c.l.b16 %v566
        %v646 = vunpack.c.l.b16 %v567
        %v647 = vunpack.c.l.b16 %v568
        %v648 = vunpack.c.l.b16 %v569
        %v649 = vunpack.c.l.b16 %v570
        %v650 = vunpack.c.l.b16 %v571
        %v651 = vunpack.c.l.b16 %v572
        %v652 = vunpack.c.l.b16 %v573
        %v653 = vunpack.c.l.b16 %v574
        %v654 = vunpack.c.l.b16 %v575
        %v655 = vunpack.c.l.b16 %v576
        %v656 = vunpack.c.l.b16 %v577
        %v657 = vunpack.c.l.b16 %v578
        %v658 = vunpack.c.l.b16 %v579
        %v659 = vunpack.c.l.b16 %v580
        %v660 = vunpack.c.l.b16 %v581
        %v661 = vunpack.c.l.b16 %v582
        %v662 = vunpack.c.l.b16 %v583
        %v663 = vunpack.c.l.b16 %v584
        %v664 = vunpack.c.l.b16 %v585
        %v665 = vunpack.c.l.b16 %v586
        %v666 = vunpack.c.l.b16 %v587
        %v667 = vunpack.c.l.b16 %v588
        %v668 = vunpack.c.l.b16 %v589
        %v669 = vunpack.c.l.b16 %v590
        %v670 = vunpack.c.l.b16 %v591
        %v671 = vunpack.c.l.b16 %v592
        %v672 = vunpack.c.l.b16 %v593
        %v673 = vunpack.c.l.b16 %v594
        %v674 = vunpack.c.l.b16 %v595
        %v675 = vunpack.c.l.b16 %v596
        %v676 = vunpack.c.l.b16 %v597
        %v677 = vunpack.c.l.b16 %v598
        %v678 = vunpack.c.l.b16 %v599
        %v679 = vunpack.c.l.b16 %v600
        %v680 = vpack.c.b16 %v645, %v644
        %v681 = vpack.c.b16 %v647, %v646
        %v682 = vpack.c.b16 %v649, %v648
        %v683 = vpack.c.b16 %v651, %v650
        %v684 = vpack.c.b16 %v653, %v652
        %v685 = vpack.c.b16 %v655, %v654
        %v686 = vpack.c.b16 %v657, %v656
        %v687 = vpack.c.b16 %v659, %v658
        %v688 = vpack.c.b16 %v661, %v660
        %v689 = vpack.c.b16 %v663, %v662
        %v690 = vpack.c.b16 %v665, %v664
        %v691 = vpack.c.b16 %v667, %v666
        %v692 = vpack.c.b16 %v669, %v668
        %v693 = vpack.c.b16 %v671, %v670
        %v694 = vpack.c.b16 %v673, %v672
        %v695 = vpack.c.b16 %v675, %v674
        %v696 = vpack.c.b16 %v677, %v676
        %v697 = vpack.c.b16 %v679, %v678
        %vm716 = vcmask 261120
        %v718 = vsel %vm716, %v564, 0
        %720 = vmatprep.subr.bf16.mxu0 0
        %721 = vmatpush1.bf16.msra.mxu0 %v680
        %722 = vmatprep.subr.bf16.mxu0 0
        %723 = vmatpush1.bf16.msra.mxu0 %v681
        %724 = vmatprep.subr.bf16.mxu0 0
        %725 = vmatpush1.bf16.msra.mxu0 %v682
        %726 = vmatprep.subr.bf16.mxu0 0
        %727 = vmatpush1.bf16.msra.mxu0 %v683
        %728 = vmatprep.subr.bf16.mxu0 0
        %729 = vmatpush1.bf16.msra.mxu0 %v684
        %730 = vmatprep.subr.bf16.mxu0 0
        %731 = vmatpush1.bf16.msra.mxu0 %v685
        %732 = vmatprep.subr.bf16.mxu0 0
        %733 = vmatpush1.bf16.msra.mxu0 %v686
        %734 = vmatprep.subr.bf16.mxu0 0
        %735 = vmatpush1.bf16.msra.mxu0 %v687
        %736 = vmatprep.subr.bf16.mxu0 0
        %737 = vmatpush1.bf16.msra.mxu0 %v688
        %738 = vmatprep.subr.bf16.mxu0 0
        %739 = vmatpush1.bf16.msra.mxu0 %v689
        %740 = vmatprep.subr.bf16.mxu0 0
        %741 = vmatpush1.bf16.msra.mxu0 %v690
        %742 = vmatprep.subr.bf16.mxu0 0
        %743 = vmatpush1.bf16.msra.mxu0 %v691
        %744 = vmatprep.subr.bf16.mxu0 0
        %745 = vmatpush1.bf16.msra.mxu0 %v692
        %746 = vmatprep.subr.bf16.mxu0 0
        %747 = vmatpush1.bf16.msra.mxu0 %v693
        %748 = vmatprep.subr.bf16.mxu0 0
        %749 = vmatpush1.bf16.msra.mxu0 %v694
        %750 = vmatprep.subr.bf16.mxu0 0
        %751 = vmatpush1.bf16.msra.mxu0 %v695
        %752 = vmatprep.mubr.bf16.mxu0 %v563
        %753 = vmatmul.mubr.bf16.gmra.mrb[0].mxu0 %v562
        %v754 = vpop.f32.mrb[0].mxu0
        %v755 = vadd.f32 %v606, %v754
        %v756 = vpop.f32.mrb[0].mxu0
        %v757 = vpop.f32.mrb[0].mxu0
        %v758 = vadd.f32 %v606, %v757
        %v759 = vpop.f32.mrb[0].mxu0
        %760 = vdwg.mxu0
        %761 = vmatprep.subr.bf16.mxu0 0
        %762 = vmatpush1.bf16.msra.mxu0 %v696
        %763 = vmatprep.subr.bf16.mxu0 0
        %764 = vmatpush1.bf16.msra.mxu0 %v697
        %765 = vmatprep.subr.bf16.mxu0 0
        %766 = vmatpush1.bf16.msra.mxu0 0
        %767 = vmatprep.subr.bf16.mxu0 0
        %768 = vmatpush1.bf16.msra.mxu0 0
        %769 = vmatprep.subr.bf16.mxu0 0
        %770 = vmatpush1.bf16.msra.mxu0 0
        %771 = vmatprep.subr.bf16.mxu0 0
        %772 = vmatpush1.bf16.msra.mxu0 0
        %773 = vmatprep.subr.bf16.mxu0 0
        %774 = vmatpush1.bf16.msra.mxu0 0
        %775 = vmatprep.subr.bf16.mxu0 0
        %776 = vmatpush1.bf16.msra.mxu0 0
        %777 = vmatprep.subr.bf16.mxu0 0
        %778 = vmatpush1.bf16.msra.mxu0 0
        %779 = vmatprep.subr.bf16.mxu0 0
        %780 = vmatpush1.bf16.msra.mxu0 0
        %781 = vmatprep.subr.bf16.mxu0 0
        %782 = vmatpush1.bf16.msra.mxu0 0
        %783 = vmatprep.subr.bf16.mxu0 0
        %784 = vmatpush1.bf16.msra.mxu0 0
        %785 = vmatprep.subr.bf16.mxu0 0
        %786 = vmatpush1.bf16.msra.mxu0 0
        %787 = vmatprep.subr.bf16.mxu0 0
        %788 = vmatpush1.bf16.msra.mxu0 0
        %789 = vmatprep.subr.bf16.mxu0 0
        %790 = vmatpush1.bf16.msra.mxu0 0
        %791 = vmatprep.subr.bf16.mxu0 0
        %792 = vmatpush1.bf16.msra.mxu0 0
        %793 = vmatprep.mubr.bf16.mxu0 0
        %794 = vmatmul.mubr.bf16.gmra.mrb[0].mxu0 %v718
        %v795 = vpop.f32.mrb[0].mxu0
        %v796 = vadd.f32 %v755, %v795
        %v797 = vpop.f32.mrb[0].mxu0
        %v798 = vpop.f32.mrb[0].mxu0
        %v799 = vadd.f32 %v758, %v798
        %v800 = vpop.f32.mrb[0].mxu0
        %801 = vdwg.mxu0
        %v802 = vmax.f32 %v796, 0.0
        %v803 = vmax.f32 %v799, 0.0
        %804 = vst.msk [vmem:[%s163] sm:$0xff] %vm716, %v802
        %805 = vst.msk [vmem:[%s163 + $0x8] sm:$0xff] %vm716, %v803
        %s806 = sand.u32 %s93, 1
        %s807 = scalar_lea.sflag [#allocation4], %s806
        %s808 = sand.u32 %s93, 1
        %s809 = smul.addr %s808, 16
        %s810 = scalar_lea.vmem [#allocation3], %s809
        // Predicated region
        $region33: #{forward.5} parent=31 // pred_check
          %p811 = pneg %p103
        $region34: #{forward.5} parent=31 // pred_check_branch
          %813 = sbr.rel (%p811) target = $region36
        $region35: #{forward.5} parent=31 // pred_region
          %s815 = ssub.s32 256, 256
          %816 = vsyncadd %s807, %s815
          %s817 = smul.addr %s17, 2
          %s818 = smul.addr %s817, 128
          %s819 = scalar_lea.hbm %s3, %s818
          %s820 = sshll.u32 %s810, 4
          %s821 = int_to_ptr.vmem [resolvable:$true] %s820
          %826 = dma.vmem_to_hbm [thread:$0]  %s821, 256, %s819, %s807, 128, 128, 8
        $region36: #{forward.5} parent=31 // pred_fallthru
          _
      $region32: #{forward.5} parent=5 // pred_fallthru
        _
      %p827 = scmp.le.s32.totalorder 2, %s12
      // Predicated region
      $region37: #{forward.5} parent=5 // pred_check
        %p828 = pneg %p827
      $region38: #{forward.5} parent=5 // pred_check_branch
        %830 = sbr.rel (%p828) target = $region40
      $region39: #{forward.5} parent=5 // pred_region
        %s831 = ssub.s32 %s12, 2
        // Predicated region
        $region41: #{forward.5} parent=39 // pred_check
          %p832 = pneg %p109
        $region42: #{forward.5} parent=39 // pred_check_branch
          %834 = sbr.rel (%p832) target = $region44
        $region43: #{forward.5} parent=39 // pred_region
          %s835 = sand.u32 %s94, 1
          %s836 = scalar_lea.sflag [#allocation4], %s835
          %s837 = sand.u32 %s94, 1
          %s838 = smul.addr %s837, 16
          %s839 = scalar_lea.vmem [#allocation3], %s838
          %840 = dma.done %s836, 256
        $region44: #{forward.5} parent=39 // pred_fallthru
          _
      $region40: #{forward.5} parent=5 // pred_fallthru
        _
    $region6: #{forward.5} parent=1 // loop_footer
      %s16 = sadd.s32 1, %s12
    $region7: #{forward.5} parent=1 // loop_footer_branch
      %11 = sbr.rel target = $region3
    $region8: #{forward.5} parent=1 // loop_exit
      _
    %841 = vsyncpa [#allocation4], 1
    %s842 = scalar_lea.sflag [#allocation4], 1
    %843 = vsyncpa %s842, 1

</llo_original>
